<compile_context>
chip_gen: v7x
topology: tpu7x:2x2x1
jax: 0.10.0
libtpu: 0.0.40
codegen_flags: <defaults>
</compile_context>

<pallas_src>
import math

import jax
import jax.numpy as jnp
from jax.experimental import pallas as pl
from jax.experimental.pallas import tpu as pltpu

# ----------------------------- small config ---------------------------------
B = 2             # batch
S = 8             # sequence length
H = 32            # hidden_size
NH = 2            # attention heads
HD = H // NH      # head dim
INTER = 64        # FFN intermediate size
L = 2             # ALBERT depth (single layer's weights shared L times)
VOCAB = 100
NTYPES = 2
FC1 = 128         # classifier hidden
NCLS = 2          # output classes
LOGITS_PAD = 128  # lane-dense padded logits width (wrapper slices back to NCLS)


# --------------------------- kernel helpers ---------------------------------
def _layernorm(v, g, b, eps=1e-12):
    mu = jnp.mean(v, axis=-1, keepdims=True)
    var = jnp.mean(jnp.square(v - mu), axis=-1, keepdims=True)
    return (v - mu) * jax.lax.rsqrt(var + eps) * g + b


def _gelu(x):
    c = math.sqrt(2.0 / math.pi)
    return 0.5 * x * (1.0 + jnp.tanh(c * (x + 0.044715 * x * x * x)))


# ---------------------- fused ALBERT + classifier kernel ---------------------
def albert_fwd_kernel(x_ref, mask_ref,
                      wq_ref, bq_ref, wk_ref, bk_ref, wv_ref, bv_ref,
                      wo_ref, bo_ref, ln1g_ref, ln1b_ref,
                      w1_ref, b1_ref, w2_ref, b2_ref,
                      ln2g_ref, ln2b_ref,
                      fc1w_ref, fc1b_ref, fc2w_ref, fc2b_ref,
                      logits_ref, hidden_ref):
    x = x_ref[...]                            # (B*S, H) flattened activations
    bias = (1.0 - mask_ref[...]) * -1e9       # (B, S) additive key-mask bias, built in-kernel

    # Shared-layer weights: loaded once, resident in VMEM for all L iterations.
    wq = wq_ref[...]; bq = bq_ref[...]
    wk = wk_ref[...]; bk = bk_ref[...]
    wv = wv_ref[...]; bv = bv_ref[...]
    wo = wo_ref[...]; bo = bo_ref[...]
    ln1g = ln1g_ref[...]; ln1b = ln1b_ref[...]
    w1 = w1_ref[...]; b1 = b1_ref[...]
    w2 = w2_ref[...]; b2 = b2_ref[...]
    ln2g = ln2g_ref[...]; ln2b = ln2b_ref[...]

    scale = 1.0 / math.sqrt(HD)

    for _ in range(L):  # ALBERT weight sharing: static unroll inside one kernel
        # QKV / FFN matmuls run on the whole flattened batch at once.
        q = jnp.dot(x, wq, preferred_element_type=jnp.float32) + bq
        k = jnp.dot(x, wk, preferred_element_type=jnp.float32) + bk
        v = jnp.dot(x, wv, preferred_element_type=jnp.float32) + bv

        # Attention: tiny static (batch, head) loops (B*NH = 4).  Each head's
        # context is folded straight into the output projection, so there is
        # no lane-axis concatenate of 16-lane slices.
        attn_rows = []
        for b in range(B):
            bias_b = bias[b:b + 1, :]                       # (1, S)
            attn_b = jnp.zeros((S, H), jnp.float32)
            for h in range(NH):
                sl = slice(h * HD, (h + 1) * HD)
                qh = q[b * S:(b + 1) * S, sl]               # (S, HD)
                kh = k[b * S:(b + 1) * S, sl]
                vh = v[b * S:(b + 1) * S, sl]
                s = jnp.dot(qh, kh.T, preferred_element_type=jnp.float32) * scale + bias_b
                s = s - jnp.max(s, axis=-1, keepdims=True)
                p = jnp.exp(s)
                p = p * pl.reciprocal(jnp.sum(p, axis=-1, keepdims=True), approx=True)
                ctx_h = jnp.dot(p, vh, preferred_element_type=jnp.float32)          # (S, HD)
                attn_b = attn_b + jnp.dot(ctx_h, wo[sl, :],
                                          preferred_element_type=jnp.float32)       # (S, H)
            attn_rows.append(attn_b + bo)
        attn = jnp.concatenate(attn_rows, axis=0)           # (B*S, H) sublane concat

        x1 = _layernorm(x + attn, ln1g, ln1b)
        ff = _gelu(jnp.dot(x1, w1, preferred_element_type=jnp.float32) + b1)
        ff = jnp.dot(ff, w2, preferred_element_type=jnp.float32) + b2
        x = _layernorm(x1 + ff, ln2g, ln2b)

    # ---- fused classifier head on the CLS rows (rows b*S of flattened x) ----
    cls = jnp.concatenate([x[b * S:b * S + 1, :] for b in range(B)], axis=0)  # (B, H)
    last_hidden = (jnp.dot(cls, fc1w_ref[...],
                           preferred_element_type=jnp.float32) + fc1b_ref[...])   # (B, FC1)
    # PyTorch's relu/dropout branch never feeds the returned logits (fc2 uses the
    # pre-relu last_hidden); dropout is identity at inference — omitted here.
    hidden_ref[...] = last_hidden
    logits_ref[...] = (jnp.dot(last_hidden, fc2w_ref[...],
                               preferred_element_type=jnp.float32) + fc2b_ref[...])  # (B, 128) padded


def _full_spec(a):
    nd = a.ndim
    return pl.BlockSpec(a.shape, lambda i, _nd=nd: (0,) * _nd)


def albert_forward_fused(x_flat, mask, layer_params, fc1_w, fc1_b, fc2_w_pad, fc2_b_pad):
    inputs = (x_flat, mask) + tuple(layer_params) + (fc1_w, fc1_b, fc2_w_pad, fc2_b_pad)
    logits_pad, last_hidden = pl.pallas_call(
        albert_fwd_kernel,
        out_shape=(jax.ShapeDtypeStruct((B, LOGITS_PAD), jnp.float32),
                   jax.ShapeDtypeStruct((B, FC1), jnp.float32)),
        grid=(1,),
        in_specs=[_full_spec(a) for a in inputs],
        out_specs=(pl.BlockSpec((B, LOGITS_PAD), lambda i: (0, 0)),
                   pl.BlockSpec((B, FC1), lambda i: (0, 0))),
        compiler_params=pltpu.CompilerParams(dimension_semantics=("arbitrary",)),
    )(*inputs)
    return logits_pad, last_hidden


# ------------------------------ parameters -----------------------------------
def init_params(key):
    ks = jax.random.split(key, 16)
    n = lambda k, shape: (0.02 * jax.random.normal(k, shape)).astype(jnp.float32)
    zeros = lambda shape: jnp.zeros(shape, jnp.float32)
    ones = lambda shape: jnp.ones(shape, jnp.float32)

    layer = (
        n(ks[0], (H, H)), zeros((1, H)),          # Wq, bq
        n(ks[1], (H, H)), zeros((1, H)),          # Wk, bk
        n(ks[2], (H, H)), zeros((1, H)),          # Wv, bv
        n(ks[3], (H, H)), zeros((1, H)),          # Wo, bo
        ones((1, H)), zeros((1, H)),              # LN1 gamma/beta
        n(ks[4], (H, INTER)), zeros((1, INTER)),  # FFN W1, b1
        n(ks[5], (INTER, H)), zeros((1, H)),      # FFN W2, b2
        ones((1, H)), zeros((1, H)),              # LN2 gamma/beta
    )
    fc2_w = n(ks[10], (FC1, NCLS))
    fc2_w_pad = jnp.zeros((FC1, LOGITS_PAD), jnp.float32).at[:, :NCLS].set(fc2_w)
    fc2_b_pad = jnp.zeros((1, LOGITS_PAD), jnp.float32)
    return dict(
        word_emb=n(ks[6], (VOCAB, H)),
        pos_emb=n(ks[7], (S, H)),
        type_emb=n(ks[8], (NTYPES, H)),
        emb_ln_g=jnp.ones((H,), jnp.float32),
        emb_ln_b=jnp.zeros((H,), jnp.float32),
        layer=layer,
        fc1_w=n(ks[9], (H, FC1)),
        fc1_b=jnp.zeros((1, FC1), jnp.float32),
        fc2_w_pad=fc2_w_pad,
        fc2_b_pad=fc2_b_pad,
    )


# ------------------------------ forward pass ----------------------------------
def albert_embed(params, input_ids, token_type_ids):
    # Gather-based embedding lookup is glue (plain JAX); LN is tiny here too.
    x = (params['word_emb'][input_ids]
         + params['pos_emb'][None, :, :]
         + params['type_emb'][token_type_ids])
    mu = x.mean(-1, keepdims=True)
    var = ((x - mu) ** 2).mean(-1, keepdims=True)
    return (x - mu) / jnp.sqrt(var + 1e-12) * params['emb_ln_g'] + params['emb_ln_b']


def albert_classifier_forward(params, input_ids, attn_masks, token_type_ids,
                              return_hidden=False):
    x = albert_embed(params, input_ids, token_type_ids)     # (B, S, H)
    x_flat = x.reshape(B * S, H)                             # flatten batch for the kernel
    mask = attn_masks.astype(jnp.float32)                    # (B, S); bias built in-kernel

    logits_pad, last_hidden = albert_forward_fused(
        x_flat, mask, params['layer'],
        params['fc1_w'], params['fc1_b'], params['fc2_w_pad'], params['fc2_b_pad'])

    logits = logits_pad[:, :NCLS]
    return last_hidden if return_hidden else logits


# ---------------------------------- main --------------------------------------
if __name__ == "__main__":
    params = init_params(jax.random.PRNGKey(0))

    kid, _ = jax.random.split(jax.random.PRNGKey(0))
    input_ids = jax.random.randint(kid, (B, S), 0, VOCAB, dtype=jnp.int32)
    token_type_ids = jnp.zeros((B, S), jnp.int32)
    attn_masks = jnp.ones((B, S), jnp.float32).at[:, 6:].set(0.0)  # pad last 2 positions

    logits = albert_classifier_forward(params, input_ids, attn_masks, token_type_ids)
    jax.block_until_ready(logits)
    assert logits.shape == (B, NCLS)
    print("KERNEL_OK")
</pallas_src>

<mosaic_0001>
module attributes {stable_mosaic.version = 11 : i64} {
  func.func @albert_fwd_kernel(%arg0: i32, %arg1: memref<16x32xf32, #tpu.memory_space<vmem>>, %arg2: memref<2x8xf32, #tpu.memory_space<vmem>>, %arg3: memref<32x32xf32, #tpu.memory_space<vmem>>, %arg4: memref<1x32xf32, #tpu.memory_space<vmem>>, %arg5: memref<32x32xf32, #tpu.memory_space<vmem>>, %arg6: memref<1x32xf32, #tpu.memory_space<vmem>>, %arg7: memref<32x32xf32, #tpu.memory_space<vmem>>, %arg8: memref<1x32xf32, #tpu.memory_space<vmem>>, %arg9: memref<32x32xf32, #tpu.memory_space<vmem>>, %arg10: memref<1x32xf32, #tpu.memory_space<vmem>>, %arg11: memref<1x32xf32, #tpu.memory_space<vmem>>, %arg12: memref<1x32xf32, #tpu.memory_space<vmem>>, %arg13: memref<32x64xf32, #tpu.memory_space<vmem>>, %arg14: memref<1x64xf32, #tpu.memory_space<vmem>>, %arg15: memref<64x32xf32, #tpu.memory_space<vmem>>, %arg16: memref<1x32xf32, #tpu.memory_space<vmem>>, %arg17: memref<1x32xf32, #tpu.memory_space<vmem>>, %arg18: memref<1x32xf32, #tpu.memory_space<vmem>>, %arg19: memref<32x128xf32, #tpu.memory_space<vmem>>, %arg20: memref<1x128xf32, #tpu.memory_space<vmem>>, %arg21: memref<128x128xf32, #tpu.memory_space<vmem>>, %arg22: memref<1x128xf32, #tpu.memory_space<vmem>>, %arg23: memref<2x128xf32, #tpu.memory_space<vmem>>, %arg24: memref<2x128xf32, #tpu.memory_space<vmem>>) attributes {dimension_semantics = [#tpu.dimension_semantics<arbitrary>], iteration_bounds = array<i64: 1>, scalar_prefetch = 0 : i64, scratch_operands = 0 : i64, tpu.core_type = #tpu.core_type<tc>, window_params = [{pipeline_mode = #tpu.pipeline_mode<synchronous>, transform_indices = @transform_0, window_bounds = array<i64: 16, 32>}, {pipeline_mode = #tpu.pipeline_mode<synchronous>, transform_indices = @transform_1, window_bounds = array<i64: 2, 8>}, {pipeline_mode = #tpu.pipeline_mode<synchronous>, transform_indices = @transform_2, window_bounds = array<i64: 32, 32>}, {pipeline_mode = #tpu.pipeline_mode<synchronous>, transform_indices = @transform_3, window_bounds = array<i64: 1, 32>}, {pipeline_mode = #tpu.pipeline_mode<synchronous>, transform_indices = @transform_4, window_bounds = array<i64: 32, 32>}, {pipeline_mode = #tpu.pipeline_mode<synchronous>, transform_indices = @transform_5, window_bounds = array<i64: 1, 32>}, {pipeline_mode = #tpu.pipeline_mode<synchronous>, transform_indices = @transform_6, window_bounds = array<i64: 32, 32>}, {pipeline_mode = #tpu.pipeline_mode<synchronous>, transform_indices = @transform_7, window_bounds = array<i64: 1, 32>}, {pipeline_mode = #tpu.pipeline_mode<synchronous>, transform_indices = @transform_8, window_bounds = array<i64: 32, 32>}, {pipeline_mode = #tpu.pipeline_mode<synchronous>, transform_indices = @transform_9, window_bounds = array<i64: 1, 32>}, {pipeline_mode = #tpu.pipeline_mode<synchronous>, transform_indices = @transform_10, window_bounds = array<i64: 1, 32>}, {pipeline_mode = #tpu.pipeline_mode<synchronous>, transform_indices = @transform_11, window_bounds = array<i64: 1, 32>}, {pipeline_mode = #tpu.pipeline_mode<synchronous>, transform_indices = @transform_12, window_bounds = array<i64: 32, 64>}, {pipeline_mode = #tpu.pipeline_mode<synchronous>, transform_indices = @transform_13, window_bounds = array<i64: 1, 64>}, {pipeline_mode = #tpu.pipeline_mode<synchronous>, transform_indices = @transform_14, window_bounds = array<i64: 64, 32>}, {pipeline_mode = #tpu.pipeline_mode<synchronous>, transform_indices = @transform_15, window_bounds = array<i64: 1, 32>}, {pipeline_mode = #tpu.pipeline_mode<synchronous>, transform_indices = @transform_16, window_bounds = array<i64: 1, 32>}, {pipeline_mode = #tpu.pipeline_mode<synchronous>, transform_indices = @transform_17, window_bounds = array<i64: 1, 32>}, {pipeline_mode = #tpu.pipeline_mode<synchronous>, transform_indices = @transform_18, window_bounds = array<i64: 32, 128>}, {pipeline_mode = #tpu.pipeline_mode<synchronous>, transform_indices = @transform_19, window_bounds = array<i64: 1, 128>}, {pipeline_mode = #tpu.pipeline_mode<synchronous>, transform_indices = @transform_20, window_bounds = array<i64: 128, 128>}, {pipeline_mode = #tpu.pipeline_mode<synchronous>, transform_indices = @transform_21, window_bounds = array<i64: 1, 128>}, {pipeline_mode = #tpu.pipeline_mode<synchronous>, transform_indices = @transform_22, window_bounds = array<i64: 2, 128>}, {pipeline_mode = #tpu.pipeline_mode<synchronous>, transform_indices = @transform_23, window_bounds = array<i64: 2, 128>}]} {
    %c0 = arith.constant 0 : index
    %c0_0 = arith.constant 0 : index
    %0 = vector.load %arg1[%c0, %c0_0] : memref<16x32xf32, #tpu.memory_space<vmem>>, vector<16x32xf32>
    %c0_1 = arith.constant 0 : index
    %c0_2 = arith.constant 0 : index
    %1 = vector.load %arg2[%c0_1, %c0_2] : memref<2x8xf32, #tpu.memory_space<vmem>>, vector<2x8xf32>
    %cst = arith.constant 1.000000e+00 : f32
    %2 = vector.broadcast %cst : f32 to vector<2x8xf32>
    %3 = arith.subf %2, %1 : vector<2x8xf32>
    %cst_3 = arith.constant -1.000000e+09 : f32
    %4 = vector.broadcast %cst_3 : f32 to vector<2x8xf32>
    %5 = arith.mulf %3, %4 : vector<2x8xf32>
    %c0_4 = arith.constant 0 : index
    %c0_5 = arith.constant 0 : index
    %6 = vector.load %arg3[%c0_4, %c0_5] : memref<32x32xf32, #tpu.memory_space<vmem>>, vector<32x32xf32>
    %c0_6 = arith.constant 0 : index
    %c0_7 = arith.constant 0 : index
    %7 = vector.load %arg4[%c0_6, %c0_7] : memref<1x32xf32, #tpu.memory_space<vmem>>, vector<1x32xf32>
    %c0_8 = arith.constant 0 : index
    %c0_9 = arith.constant 0 : index
    %8 = vector.load %arg5[%c0_8, %c0_9] : memref<32x32xf32, #tpu.memory_space<vmem>>, vector<32x32xf32>
    %c0_10 = arith.constant 0 : index
    %c0_11 = arith.constant 0 : index
    %9 = vector.load %arg6[%c0_10, %c0_11] : memref<1x32xf32, #tpu.memory_space<vmem>>, vector<1x32xf32>
    %c0_12 = arith.constant 0 : index
    %c0_13 = arith.constant 0 : index
    %10 = vector.load %arg7[%c0_12, %c0_13] : memref<32x32xf32, #tpu.memory_space<vmem>>, vector<32x32xf32>
    %c0_14 = arith.constant 0 : index
    %c0_15 = arith.constant 0 : index
    %11 = vector.load %arg8[%c0_14, %c0_15] : memref<1x32xf32, #tpu.memory_space<vmem>>, vector<1x32xf32>
    %c0_16 = arith.constant 0 : index
    %c0_17 = arith.constant 0 : index
    %12 = vector.load %arg9[%c0_16, %c0_17] : memref<32x32xf32, #tpu.memory_space<vmem>>, vector<32x32xf32>
    %c0_18 = arith.constant 0 : index
    %c0_19 = arith.constant 0 : index
    %13 = vector.load %arg10[%c0_18, %c0_19] : memref<1x32xf32, #tpu.memory_space<vmem>>, vector<1x32xf32>
    %c0_20 = arith.constant 0 : index
    %c0_21 = arith.constant 0 : index
    %14 = vector.load %arg11[%c0_20, %c0_21] : memref<1x32xf32, #tpu.memory_space<vmem>>, vector<1x32xf32>
    %c0_22 = arith.constant 0 : index
    %c0_23 = arith.constant 0 : index
    %15 = vector.load %arg12[%c0_22, %c0_23] : memref<1x32xf32, #tpu.memory_space<vmem>>, vector<1x32xf32>
    %c0_24 = arith.constant 0 : index
    %c0_25 = arith.constant 0 : index
    %16 = vector.load %arg13[%c0_24, %c0_25] : memref<32x64xf32, #tpu.memory_space<vmem>>, vector<32x64xf32>
    %c0_26 = arith.constant 0 : index
    %c0_27 = arith.constant 0 : index
    %17 = vector.load %arg14[%c0_26, %c0_27] : memref<1x64xf32, #tpu.memory_space<vmem>>, vector<1x64xf32>
    %c0_28 = arith.constant 0 : index
    %c0_29 = arith.constant 0 : index
    %18 = vector.load %arg15[%c0_28, %c0_29] : memref<64x32xf32, #tpu.memory_space<vmem>>, vector<64x32xf32>
    %c0_30 = arith.constant 0 : index
    %c0_31 = arith.constant 0 : index
    %19 = vector.load %arg16[%c0_30, %c0_31] : memref<1x32xf32, #tpu.memory_space<vmem>>, vector<1x32xf32>
    %c0_32 = arith.constant 0 : index
    %c0_33 = arith.constant 0 : index
    %20 = vector.load %arg17[%c0_32, %c0_33] : memref<1x32xf32, #tpu.memory_space<vmem>>, vector<1x32xf32>
    %c0_34 = arith.constant 0 : index
    %c0_35 = arith.constant 0 : index
    %21 = vector.load %arg18[%c0_34, %c0_35] : memref<1x32xf32, #tpu.memory_space<vmem>>, vector<1x32xf32>
    %cst_36 = arith.constant dense<0.000000e+00> : vector<16x32xf32>
    %22 = tpu.matmul %0, %6, %cst_36 {dimension_numbers = #tpu.dot_dimension_numbers<[1], [0], [0], [1], [0, 0, 1, 1], [], []>} : vector<16x32xf32>, vector<32x32xf32>, vector<16x32xf32> -> vector<16x32xf32>
    %23 = vector.broadcast %7 : vector<1x32xf32> to vector<16x32xf32>
    %24 = arith.addf %22, %23 : vector<16x32xf32>
    %cst_37 = arith.constant dense<0.000000e+00> : vector<16x32xf32>
    %25 = tpu.matmul %0, %8, %cst_37 {dimension_numbers = #tpu.dot_dimension_numbers<[1], [0], [0], [1], [0, 0, 1, 1], [], []>} : vector<16x32xf32>, vector<32x32xf32>, vector<16x32xf32> -> vector<16x32xf32>
    %26 = vector.broadcast %9 : vector<1x32xf32> to vector<16x32xf32>
    %27 = arith.addf %25, %26 : vector<16x32xf32>
    %cst_38 = arith.constant dense<0.000000e+00> : vector<16x32xf32>
    %28 = tpu.matmul %0, %10, %cst_38 {dimension_numbers = #tpu.dot_dimension_numbers<[1], [0], [0], [1], [0, 0, 1, 1], [], []>} : vector<16x32xf32>, vector<32x32xf32>, vector<16x32xf32> -> vector<16x32xf32>
    %29 = vector.broadcast %11 : vector<1x32xf32> to vector<16x32xf32>
    %30 = arith.addf %28, %29 : vector<16x32xf32>
    %31 = vector.extract_strided_slice %5 {offsets = [0, 0], sizes = [1, 8], strides = [1, 1]} : vector<2x8xf32> to vector<1x8xf32>
    %cst_39 = arith.constant 0.000000e+00 : f32
    %32 = vector.broadcast %cst_39 : f32 to vector<8x32xf32>
    %33 = vector.extract_strided_slice %24 {offsets = [0, 0], sizes = [8, 16], strides = [1, 1]} : vector<16x32xf32> to vector<8x16xf32>
    %34 = vector.extract_strided_slice %27 {offsets = [0, 0], sizes = [8, 16], strides = [1, 1]} : vector<16x32xf32> to vector<8x16xf32>
    %35 = vector.extract_strided_slice %30 {offsets = [0, 0], sizes = [8, 16], strides = [1, 1]} : vector<16x32xf32> to vector<8x16xf32>
    %36 = tpu.transpose %34, [1, 0] : vector<8x16xf32> -> vector<16x8xf32>
    %cst_40 = arith.constant dense<0.000000e+00> : vector<8x8xf32>
    %37 = tpu.matmul %33, %36, %cst_40 {dimension_numbers = #tpu.dot_dimension_numbers<[1], [0], [0], [1], [0, 0, 1, 1], [], []>} : vector<8x16xf32>, vector<16x8xf32>, vector<8x8xf32> -> vector<8x8xf32>
    %cst_41 = arith.constant 2.500000e-01 : f32
    %38 = vector.broadcast %cst_41 : f32 to vector<8x8xf32>
    %39 = arith.mulf %37, %38 : vector<8x8xf32>
    %40 = vector.broadcast %31 : vector<1x8xf32> to vector<8x8xf32>
    %41 = arith.addf %39, %40 : vector<8x8xf32>
    %cst_42 = arith.constant dense<0xFF800000> : vector<8xf32>
    %42 = vector.multi_reduction <maximumf>, %41, %cst_42 [1] : vector<8x8xf32> to vector<8xf32>
    %43 = vector.shape_cast %42 : vector<8xf32> to vector<8x1xf32>
    %44 = vector.broadcast %43 : vector<8x1xf32> to vector<8x8xf32>
    %45 = arith.subf %41, %44 : vector<8x8xf32>
    %46 = math.exp %45 : vector<8x8xf32>
    %cst_43 = arith.constant dense<0.000000e+00> : vector<8xf32>
    %47 = vector.multi_reduction <add>, %46, %cst_43 [1] : vector<8x8xf32> to vector<8xf32>
    %48 = vector.shape_cast %47 : vector<8xf32> to vector<8x1xf32>
    %49 = tpu.reciprocal %48 {approx = true} : vector<8x1xf32> -> vector<8x1xf32>
    %50 = vector.broadcast %49 : vector<8x1xf32> to vector<8x8xf32>
    %51 = arith.mulf %46, %50 : vector<8x8xf32>
    %cst_44 = arith.constant dense<0.000000e+00> : vector<8x16xf32>
    %52 = tpu.matmul %51, %35, %cst_44 {dimension_numbers = #tpu.dot_dimension_numbers<[1], [0], [0], [1], [0, 0, 1, 1], [], []>} : vector<8x8xf32>, vector<8x16xf32>, vector<8x16xf32> -> vector<8x16xf32>
    %53 = vector.extract_strided_slice %12 {offsets = [0, 0], sizes = [16, 32], strides = [1, 1]} : vector<32x32xf32> to vector<16x32xf32>
    %cst_45 = arith.constant dense<0.000000e+00> : vector<8x32xf32>
    %54 = tpu.matmul %52, %53, %cst_45 {dimension_numbers = #tpu.dot_dimension_numbers<[1], [0], [0], [1], [0, 0, 1, 1], [], []>} : vector<8x16xf32>, vector<16x32xf32>, vector<8x32xf32> -> vector<8x32xf32>
    %55 = arith.addf %32, %54 : vector<8x32xf32>
    %56 = vector.extract_strided_slice %24 {offsets = [0, 16], sizes = [8, 16], strides = [1, 1]} : vector<16x32xf32> to vector<8x16xf32>
    %57 = vector.extract_strided_slice %27 {offsets = [0, 16], sizes = [8, 16], strides = [1, 1]} : vector<16x32xf32> to vector<8x16xf32>
    %58 = vector.extract_strided_slice %30 {offsets = [0, 16], sizes = [8, 16], strides = [1, 1]} : vector<16x32xf32> to vector<8x16xf32>
    %59 = tpu.transpose %57, [1, 0] : vector<8x16xf32> -> vector<16x8xf32>
    %cst_46 = arith.constant dense<0.000000e+00> : vector<8x8xf32>
    %60 = tpu.matmul %56, %59, %cst_46 {dimension_numbers = #tpu.dot_dimension_numbers<[1], [0], [0], [1], [0, 0, 1, 1], [], []>} : vector<8x16xf32>, vector<16x8xf32>, vector<8x8xf32> -> vector<8x8xf32>
    %cst_47 = arith.constant 2.500000e-01 : f32
    %61 = vector.broadcast %cst_47 : f32 to vector<8x8xf32>
    %62 = arith.mulf %60, %61 : vector<8x8xf32>
    %63 = vector.broadcast %31 : vector<1x8xf32> to vector<8x8xf32>
    %64 = arith.addf %62, %63 : vector<8x8xf32>
    %cst_48 = arith.constant dense<0xFF800000> : vector<8xf32>
    %65 = vector.multi_reduction <maximumf>, %64, %cst_48 [1] : vector<8x8xf32> to vector<8xf32>
    %66 = vector.shape_cast %65 : vector<8xf32> to vector<8x1xf32>
    %67 = vector.broadcast %66 : vector<8x1xf32> to vector<8x8xf32>
    %68 = arith.subf %64, %67 : vector<8x8xf32>
    %69 = math.exp %68 : vector<8x8xf32>
    %cst_49 = arith.constant dense<0.000000e+00> : vector<8xf32>
    %70 = vector.multi_reduction <add>, %69, %cst_49 [1] : vector<8x8xf32> to vector<8xf32>
    %71 = vector.shape_cast %70 : vector<8xf32> to vector<8x1xf32>
    %72 = tpu.reciprocal %71 {approx = true} : vector<8x1xf32> -> vector<8x1xf32>
    %73 = vector.broadcast %72 : vector<8x1xf32> to vector<8x8xf32>
    %74 = arith.mulf %69, %73 : vector<8x8xf32>
    %cst_50 = arith.constant dense<0.000000e+00> : vector<8x16xf32>
    %75 = tpu.matmul %74, %58, %cst_50 {dimension_numbers = #tpu.dot_dimension_numbers<[1], [0], [0], [1], [0, 0, 1, 1], [], []>} : vector<8x8xf32>, vector<8x16xf32>, vector<8x16xf32> -> vector<8x16xf32>
    %76 = vector.extract_strided_slice %12 {offsets = [16, 0], sizes = [16, 32], strides = [1, 1]} : vector<32x32xf32> to vector<16x32xf32>
    %cst_51 = arith.constant dense<0.000000e+00> : vector<8x32xf32>
    %77 = tpu.matmul %75, %76, %cst_51 {dimension_numbers = #tpu.dot_dimension_numbers<[1], [0], [0], [1], [0, 0, 1, 1], [], []>} : vector<8x16xf32>, vector<16x32xf32>, vector<8x32xf32> -> vector<8x32xf32>
    %78 = arith.addf %55, %77 : vector<8x32xf32>
    %79 = vector.broadcast %13 : vector<1x32xf32> to vector<8x32xf32>
    %80 = arith.addf %78, %79 : vector<8x32xf32>
    %81 = vector.extract_strided_slice %5 {offsets = [1, 0], sizes = [1, 8], strides = [1, 1]} : vector<2x8xf32> to vector<1x8xf32>
    %cst_52 = arith.constant 0.000000e+00 : f32
    %82 = vector.broadcast %cst_52 : f32 to vector<8x32xf32>
    %83 = vector.extract_strided_slice %24 {offsets = [8, 0], sizes = [8, 16], strides = [1, 1]} : vector<16x32xf32> to vector<8x16xf32>
    %84 = vector.extract_strided_slice %27 {offsets = [8, 0], sizes = [8, 16], strides = [1, 1]} : vector<16x32xf32> to vector<8x16xf32>
    %85 = vector.extract_strided_slice %30 {offsets = [8, 0], sizes = [8, 16], strides = [1, 1]} : vector<16x32xf32> to vector<8x16xf32>
    %86 = tpu.transpose %84, [1, 0] : vector<8x16xf32> -> vector<16x8xf32>
    %cst_53 = arith.constant dense<0.000000e+00> : vector<8x8xf32>
    %87 = tpu.matmul %83, %86, %cst_53 {dimension_numbers = #tpu.dot_dimension_numbers<[1], [0], [0], [1], [0, 0, 1, 1], [], []>} : vector<8x16xf32>, vector<16x8xf32>, vector<8x8xf32> -> vector<8x8xf32>
    %cst_54 = arith.constant 2.500000e-01 : f32
    %88 = vector.broadcast %cst_54 : f32 to vector<8x8xf32>
    %89 = arith.mulf %87, %88 : vector<8x8xf32>
    %90 = vector.broadcast %81 : vector<1x8xf32> to vector<8x8xf32>
    %91 = arith.addf %89, %90 : vector<8x8xf32>
    %cst_55 = arith.constant dense<0xFF800000> : vector<8xf32>
    %92 = vector.multi_reduction <maximumf>, %91, %cst_55 [1] : vector<8x8xf32> to vector<8xf32>
    %93 = vector.shape_cast %92 : vector<8xf32> to vector<8x1xf32>
    %94 = vector.broadcast %93 : vector<8x1xf32> to vector<8x8xf32>
    %95 = arith.subf %91, %94 : vector<8x8xf32>
    %96 = math.exp %95 : vector<8x8xf32>
    %cst_56 = arith.constant dense<0.000000e+00> : vector<8xf32>
    %97 = vector.multi_reduction <add>, %96, %cst_56 [1] : vector<8x8xf32> to vector<8xf32>
    %98 = vector.shape_cast %97 : vector<8xf32> to vector<8x1xf32>
    %99 = tpu.reciprocal %98 {approx = true} : vector<8x1xf32> -> vector<8x1xf32>
    %100 = vector.broadcast %99 : vector<8x1xf32> to vector<8x8xf32>
    %101 = arith.mulf %96, %100 : vector<8x8xf32>
    %cst_57 = arith.constant dense<0.000000e+00> : vector<8x16xf32>
    %102 = tpu.matmul %101, %85, %cst_57 {dimension_numbers = #tpu.dot_dimension_numbers<[1], [0], [0], [1], [0, 0, 1, 1], [], []>} : vector<8x8xf32>, vector<8x16xf32>, vector<8x16xf32> -> vector<8x16xf32>
    %103 = vector.extract_strided_slice %12 {offsets = [0, 0], sizes = [16, 32], strides = [1, 1]} : vector<32x32xf32> to vector<16x32xf32>
    %cst_58 = arith.constant dense<0.000000e+00> : vector<8x32xf32>
    %104 = tpu.matmul %102, %103, %cst_58 {dimension_numbers = #tpu.dot_dimension_numbers<[1], [0], [0], [1], [0, 0, 1, 1], [], []>} : vector<8x16xf32>, vector<16x32xf32>, vector<8x32xf32> -> vector<8x32xf32>
    %105 = arith.addf %82, %104 : vector<8x32xf32>
    %106 = vector.extract_strided_slice %24 {offsets = [8, 16], sizes = [8, 16], strides = [1, 1]} : vector<16x32xf32> to vector<8x16xf32>
    %107 = vector.extract_strided_slice %27 {offsets = [8, 16], sizes = [8, 16], strides = [1, 1]} : vector<16x32xf32> to vector<8x16xf32>
    %108 = vector.extract_strided_slice %30 {offsets = [8, 16], sizes = [8, 16], strides = [1, 1]} : vector<16x32xf32> to vector<8x16xf32>
    %109 = tpu.transpose %107, [1, 0] : vector<8x16xf32> -> vector<16x8xf32>
    %cst_59 = arith.constant dense<0.000000e+00> : vector<8x8xf32>
    %110 = tpu.matmul %106, %109, %cst_59 {dimension_numbers = #tpu.dot_dimension_numbers<[1], [0], [0], [1], [0, 0, 1, 1], [], []>} : vector<8x16xf32>, vector<16x8xf32>, vector<8x8xf32> -> vector<8x8xf32>
    %cst_60 = arith.constant 2.500000e-01 : f32
    %111 = vector.broadcast %cst_60 : f32 to vector<8x8xf32>
    %112 = arith.mulf %110, %111 : vector<8x8xf32>
    %113 = vector.broadcast %81 : vector<1x8xf32> to vector<8x8xf32>
    %114 = arith.addf %112, %113 : vector<8x8xf32>
    %cst_61 = arith.constant dense<0xFF800000> : vector<8xf32>
    %115 = vector.multi_reduction <maximumf>, %114, %cst_61 [1] : vector<8x8xf32> to vector<8xf32>
    %116 = vector.shape_cast %115 : vector<8xf32> to vector<8x1xf32>
    %117 = vector.broadcast %116 : vector<8x1xf32> to vector<8x8xf32>
    %118 = arith.subf %114, %117 : vector<8x8xf32>
    %119 = math.exp %118 : vector<8x8xf32>
    %cst_62 = arith.constant dense<0.000000e+00> : vector<8xf32>
    %120 = vector.multi_reduction <add>, %119, %cst_62 [1] : vector<8x8xf32> to vector<8xf32>
    %121 = vector.shape_cast %120 : vector<8xf32> to vector<8x1xf32>
    %122 = tpu.reciprocal %121 {approx = true} : vector<8x1xf32> -> vector<8x1xf32>
    %123 = vector.broadcast %122 : vector<8x1xf32> to vector<8x8xf32>
    %124 = arith.mulf %119, %123 : vector<8x8xf32>
    %cst_63 = arith.constant dense<0.000000e+00> : vector<8x16xf32>
    %125 = tpu.matmul %124, %108, %cst_63 {dimension_numbers = #tpu.dot_dimension_numbers<[1], [0], [0], [1], [0, 0, 1, 1], [], []>} : vector<8x8xf32>, vector<8x16xf32>, vector<8x16xf32> -> vector<8x16xf32>
    %126 = vector.extract_strided_slice %12 {offsets = [16, 0], sizes = [16, 32], strides = [1, 1]} : vector<32x32xf32> to vector<16x32xf32>
    %cst_64 = arith.constant dense<0.000000e+00> : vector<8x32xf32>
    %127 = tpu.matmul %125, %126, %cst_64 {dimension_numbers = #tpu.dot_dimension_numbers<[1], [0], [0], [1], [0, 0, 1, 1], [], []>} : vector<8x16xf32>, vector<16x32xf32>, vector<8x32xf32> -> vector<8x32xf32>
    %128 = arith.addf %105, %127 : vector<8x32xf32>
    %129 = vector.broadcast %13 : vector<1x32xf32> to vector<8x32xf32>
    %130 = arith.addf %128, %129 : vector<8x32xf32>
    %131 = tpu.concatenate %80, %130 in 0 : vector<8x32xf32>, vector<8x32xf32> -> vector<16x32xf32>
    %132 = arith.addf %0, %131 : vector<16x32xf32>
    %cst_65 = arith.constant dense<0.000000e+00> : vector<16xf32>
    %133 = vector.multi_reduction <add>, %132, %cst_65 [1] : vector<16x32xf32> to vector<16xf32>
    %134 = vector.shape_cast %133 : vector<16xf32> to vector<16x1xf32>
    %cst_66 = arith.constant 3.200000e+01 : f32
    %135 = vector.broadcast %cst_66 : f32 to vector<16x1xf32>
    %136 = arith.divf %134, %135 : vector<16x1xf32>
    %137 = vector.broadcast %136 : vector<16x1xf32> to vector<16x32xf32>
    %138 = arith.subf %132, %137 : vector<16x32xf32>
    %139 = arith.mulf %138, %138 : vector<16x32xf32>
    %cst_67 = arith.constant dense<0.000000e+00> : vector<16xf32>
    %140 = vector.multi_reduction <add>, %139, %cst_67 [1] : vector<16x32xf32> to vector<16xf32>
    %141 = vector.shape_cast %140 : vector<16xf32> to vector<16x1xf32>
    %cst_68 = arith.constant 3.200000e+01 : f32
    %142 = vector.broadcast %cst_68 : f32 to vector<16x1xf32>
    %143 = arith.divf %141, %142 : vector<16x1xf32>
    %144 = vector.broadcast %136 : vector<16x1xf32> to vector<16x32xf32>
    %145 = arith.subf %132, %144 : vector<16x32xf32>
    %cst_69 = arith.constant 9.99999996E-13 : f32
    %146 = vector.broadcast %cst_69 : f32 to vector<16x1xf32>
    %147 = arith.addf %143, %146 : vector<16x1xf32>
    %148 = math.rsqrt %147 : vector<16x1xf32>
    %149 = vector.broadcast %148 : vector<16x1xf32> to vector<16x32xf32>
    %150 = arith.mulf %145, %149 : vector<16x32xf32>
    %151 = vector.broadcast %14 : vector<1x32xf32> to vector<16x32xf32>
    %152 = arith.mulf %150, %151 : vector<16x32xf32>
    %153 = vector.broadcast %15 : vector<1x32xf32> to vector<16x32xf32>
    %154 = arith.addf %152, %153 : vector<16x32xf32>
    %cst_70 = arith.constant dense<0.000000e+00> : vector<16x64xf32>
    %155 = tpu.matmul %154, %16, %cst_70 {dimension_numbers = #tpu.dot_dimension_numbers<[1], [0], [0], [1], [0, 0, 1, 1], [], []>} : vector<16x32xf32>, vector<32x64xf32>, vector<16x64xf32> -> vector<16x64xf32>
    %156 = vector.broadcast %17 : vector<1x64xf32> to vector<16x64xf32>
    %157 = arith.addf %155, %156 : vector<16x64xf32>
    %cst_71 = arith.constant 5.000000e-01 : f32
    %158 = vector.broadcast %cst_71 : f32 to vector<16x64xf32>
    %159 = arith.mulf %158, %157 : vector<16x64xf32>
    %cst_72 = arith.constant 4.471500e-02 : f32
    %160 = vector.broadcast %cst_72 : f32 to vector<16x64xf32>
    %161 = arith.mulf %160, %157 : vector<16x64xf32>
    %162 = arith.mulf %161, %157 : vector<16x64xf32>
    %163 = arith.mulf %162, %157 : vector<16x64xf32>
    %164 = arith.addf %157, %163 : vector<16x64xf32>
    %cst_73 = arith.constant 0.797884583 : f32
    %165 = vector.broadcast %cst_73 : f32 to vector<16x64xf32>
    %166 = arith.mulf %165, %164 : vector<16x64xf32>
    %167 = math.tanh %166 : vector<16x64xf32>
    %cst_74 = arith.constant 1.000000e+00 : f32
    %168 = vector.broadcast %cst_74 : f32 to vector<16x64xf32>
    %169 = arith.addf %168, %167 : vector<16x64xf32>
    %170 = arith.mulf %159, %169 : vector<16x64xf32>
    %cst_75 = arith.constant dense<0.000000e+00> : vector<16x32xf32>
    %171 = tpu.matmul %170, %18, %cst_75 {dimension_numbers = #tpu.dot_dimension_numbers<[1], [0], [0], [1], [0, 0, 1, 1], [], []>} : vector<16x64xf32>, vector<64x32xf32>, vector<16x32xf32> -> vector<16x32xf32>
    %172 = vector.broadcast %19 : vector<1x32xf32> to vector<16x32xf32>
    %173 = arith.addf %171, %172 : vector<16x32xf32>
    %174 = arith.addf %154, %173 : vector<16x32xf32>
    %cst_76 = arith.constant dense<0.000000e+00> : vector<16xf32>
    %175 = vector.multi_reduction <add>, %174, %cst_76 [1] : vector<16x32xf32> to vector<16xf32>
    %176 = vector.shape_cast %175 : vector<16xf32> to vector<16x1xf32>
    %cst_77 = arith.constant 3.200000e+01 : f32
    %177 = vector.broadcast %cst_77 : f32 to vector<16x1xf32>
    %178 = arith.divf %176, %177 : vector<16x1xf32>
    %179 = vector.broadcast %178 : vector<16x1xf32> to vector<16x32xf32>
    %180 = arith.subf %174, %179 : vector<16x32xf32>
    %181 = arith.mulf %180, %180 : vector<16x32xf32>
    %cst_78 = arith.constant dense<0.000000e+00> : vector<16xf32>
    %182 = vector.multi_reduction <add>, %181, %cst_78 [1] : vector<16x32xf32> to vector<16xf32>
    %183 = vector.shape_cast %182 : vector<16xf32> to vector<16x1xf32>
    %cst_79 = arith.constant 3.200000e+01 : f32
    %184 = vector.broadcast %cst_79 : f32 to vector<16x1xf32>
    %185 = arith.divf %183, %184 : vector<16x1xf32>
    %186 = vector.broadcast %178 : vector<16x1xf32> to vector<16x32xf32>
    %187 = arith.subf %174, %186 : vector<16x32xf32>
    %cst_80 = arith.constant 9.99999996E-13 : f32
    %188 = vector.broadcast %cst_80 : f32 to vector<16x1xf32>
    %189 = arith.addf %185, %188 : vector<16x1xf32>
    %190 = math.rsqrt %189 : vector<16x1xf32>
    %191 = vector.broadcast %190 : vector<16x1xf32> to vector<16x32xf32>
    %192 = arith.mulf %187, %191 : vector<16x32xf32>
    %193 = vector.broadcast %20 : vector<1x32xf32> to vector<16x32xf32>
    %194 = arith.mulf %192, %193 : vector<16x32xf32>
    %195 = vector.broadcast %21 : vector<1x32xf32> to vector<16x32xf32>
    %196 = arith.addf %194, %195 : vector<16x32xf32>
    %cst_81 = arith.constant dense<0.000000e+00> : vector<16x32xf32>
    %197 = tpu.matmul %196, %6, %cst_81 {dimension_numbers = #tpu.dot_dimension_numbers<[1], [0], [0], [1], [0, 0, 1, 1], [], []>} : vector<16x32xf32>, vector<32x32xf32>, vector<16x32xf32> -> vector<16x32xf32>
    %198 = vector.broadcast %7 : vector<1x32xf32> to vector<16x32xf32>
    %199 = arith.addf %197, %198 : vector<16x32xf32>
    %cst_82 = arith.constant dense<0.000000e+00> : vector<16x32xf32>
    %200 = tpu.matmul %196, %8, %cst_82 {dimension_numbers = #tpu.dot_dimension_numbers<[1], [0], [0], [1], [0, 0, 1, 1], [], []>} : vector<16x32xf32>, vector<32x32xf32>, vector<16x32xf32> -> vector<16x32xf32>
    %201 = vector.broadcast %9 : vector<1x32xf32> to vector<16x32xf32>
    %202 = arith.addf %200, %201 : vector<16x32xf32>
    %cst_83 = arith.constant dense<0.000000e+00> : vector<16x32xf32>
    %203 = tpu.matmul %196, %10, %cst_83 {dimension_numbers = #tpu.dot_dimension_numbers<[1], [0], [0], [1], [0, 0, 1, 1], [], []>} : vector<16x32xf32>, vector<32x32xf32>, vector<16x32xf32> -> vector<16x32xf32>
    %204 = vector.broadcast %11 : vector<1x32xf32> to vector<16x32xf32>
    %205 = arith.addf %203, %204 : vector<16x32xf32>
    %206 = vector.extract_strided_slice %5 {offsets = [0, 0], sizes = [1, 8], strides = [1, 1]} : vector<2x8xf32> to vector<1x8xf32>
    %cst_84 = arith.constant 0.000000e+00 : f32
    %207 = vector.broadcast %cst_84 : f32 to vector<8x32xf32>
    %208 = vector.extract_strided_slice %199 {offsets = [0, 0], sizes = [8, 16], strides = [1, 1]} : vector<16x32xf32> to vector<8x16xf32>
    %209 = vector.extract_strided_slice %202 {offsets = [0, 0], sizes = [8, 16], strides = [1, 1]} : vector<16x32xf32> to vector<8x16xf32>
    %210 = vector.extract_strided_slice %205 {offsets = [0, 0], sizes = [8, 16], strides = [1, 1]} : vector<16x32xf32> to vector<8x16xf32>
    %211 = tpu.transpose %209, [1, 0] : vector<8x16xf32> -> vector<16x8xf32>
    %cst_85 = arith.constant dense<0.000000e+00> : vector<8x8xf32>
    %212 = tpu.matmul %208, %211, %cst_85 {dimension_numbers = #tpu.dot_dimension_numbers<[1], [0], [0], [1], [0, 0, 1, 1], [], []>} : vector<8x16xf32>, vector<16x8xf32>, vector<8x8xf32> -> vector<8x8xf32>
    %cst_86 = arith.constant 2.500000e-01 : f32
    %213 = vector.broadcast %cst_86 : f32 to vector<8x8xf32>
    %214 = arith.mulf %212, %213 : vector<8x8xf32>
    %215 = vector.broadcast %206 : vector<1x8xf32> to vector<8x8xf32>
    %216 = arith.addf %214, %215 : vector<8x8xf32>
    %cst_87 = arith.constant dense<0xFF800000> : vector<8xf32>
    %217 = vector.multi_reduction <maximumf>, %216, %cst_87 [1] : vector<8x8xf32> to vector<8xf32>
    %218 = vector.shape_cast %217 : vector<8xf32> to vector<8x1xf32>
    %219 = vector.broadcast %218 : vector<8x1xf32> to vector<8x8xf32>
    %220 = arith.subf %216, %219 : vector<8x8xf32>
    %221 = math.exp %220 : vector<8x8xf32>
    %cst_88 = arith.constant dense<0.000000e+00> : vector<8xf32>
    %222 = vector.multi_reduction <add>, %221, %cst_88 [1] : vector<8x8xf32> to vector<8xf32>
    %223 = vector.shape_cast %222 : vector<8xf32> to vector<8x1xf32>
    %224 = tpu.reciprocal %223 {approx = true} : vector<8x1xf32> -> vector<8x1xf32>
    %225 = vector.broadcast %224 : vector<8x1xf32> to vector<8x8xf32>
    %226 = arith.mulf %221, %225 : vector<8x8xf32>
    %cst_89 = arith.constant dense<0.000000e+00> : vector<8x16xf32>
    %227 = tpu.matmul %226, %210, %cst_89 {dimension_numbers = #tpu.dot_dimension_numbers<[1], [0], [0], [1], [0, 0, 1, 1], [], []>} : vector<8x8xf32>, vector<8x16xf32>, vector<8x16xf32> -> vector<8x16xf32>
    %228 = vector.extract_strided_slice %12 {offsets = [0, 0], sizes = [16, 32], strides = [1, 1]} : vector<32x32xf32> to vector<16x32xf32>
    %cst_90 = arith.constant dense<0.000000e+00> : vector<8x32xf32>
    %229 = tpu.matmul %227, %228, %cst_90 {dimension_numbers = #tpu.dot_dimension_numbers<[1], [0], [0], [1], [0, 0, 1, 1], [], []>} : vector<8x16xf32>, vector<16x32xf32>, vector<8x32xf32> -> vector<8x32xf32>
    %230 = arith.addf %207, %229 : vector<8x32xf32>
    %231 = vector.extract_strided_slice %199 {offsets = [0, 16], sizes = [8, 16], strides = [1, 1]} : vector<16x32xf32> to vector<8x16xf32>
    %232 = vector.extract_strided_slice %202 {offsets = [0, 16], sizes = [8, 16], strides = [1, 1]} : vector<16x32xf32> to vector<8x16xf32>
    %233 = vector.extract_strided_slice %205 {offsets = [0, 16], sizes = [8, 16], strides = [1, 1]} : vector<16x32xf32> to vector<8x16xf32>
    %234 = tpu.transpose %232, [1, 0] : vector<8x16xf32> -> vector<16x8xf32>
    %cst_91 = arith.constant dense<0.000000e+00> : vector<8x8xf32>
    %235 = tpu.matmul %231, %234, %cst_91 {dimension_numbers = #tpu.dot_dimension_numbers<[1], [0], [0], [1], [0, 0, 1, 1], [], []>} : vector<8x16xf32>, vector<16x8xf32>, vector<8x8xf32> -> vector<8x8xf32>
    %cst_92 = arith.constant 2.500000e-01 : f32
    %236 = vector.broadcast %cst_92 : f32 to vector<8x8xf32>
    %237 = arith.mulf %235, %236 : vector<8x8xf32>
    %238 = vector.broadcast %206 : vector<1x8xf32> to vector<8x8xf32>
    %239 = arith.addf %237, %238 : vector<8x8xf32>
    %cst_93 = arith.constant dense<0xFF800000> : vector<8xf32>
    %240 = vector.multi_reduction <maximumf>, %239, %cst_93 [1] : vector<8x8xf32> to vector<8xf32>
    %241 = vector.shape_cast %240 : vector<8xf32> to vector<8x1xf32>
    %242 = vector.broadcast %241 : vector<8x1xf32> to vector<8x8xf32>
    %243 = arith.subf %239, %242 : vector<8x8xf32>
    %244 = math.exp %243 : vector<8x8xf32>
    %cst_94 = arith.constant dense<0.000000e+00> : vector<8xf32>
    %245 = vector.multi_reduction <add>, %244, %cst_94 [1] : vector<8x8xf32> to vector<8xf32>
    %246 = vector.shape_cast %245 : vector<8xf32> to vector<8x1xf32>
    %247 = tpu.reciprocal %246 {approx = true} : vector<8x1xf32> -> vector<8x1xf32>
    %248 = vector.broadcast %247 : vector<8x1xf32> to vector<8x8xf32>
    %249 = arith.mulf %244, %248 : vector<8x8xf32>
    %cst_95 = arith.constant dense<0.000000e+00> : vector<8x16xf32>
    %250 = tpu.matmul %249, %233, %cst_95 {dimension_numbers = #tpu.dot_dimension_numbers<[1], [0], [0], [1], [0, 0, 1, 1], [], []>} : vector<8x8xf32>, vector<8x16xf32>, vector<8x16xf32> -> vector<8x16xf32>
    %251 = vector.extract_strided_slice %12 {offsets = [16, 0], sizes = [16, 32], strides = [1, 1]} : vector<32x32xf32> to vector<16x32xf32>
    %cst_96 = arith.constant dense<0.000000e+00> : vector<8x32xf32>
    %252 = tpu.matmul %250, %251, %cst_96 {dimension_numbers = #tpu.dot_dimension_numbers<[1], [0], [0], [1], [0, 0, 1, 1], [], []>} : vector<8x16xf32>, vector<16x32xf32>, vector<8x32xf32> -> vector<8x32xf32>
    %253 = arith.addf %230, %252 : vector<8x32xf32>
    %254 = vector.broadcast %13 : vector<1x32xf32> to vector<8x32xf32>
    %255 = arith.addf %253, %254 : vector<8x32xf32>
    %256 = vector.extract_strided_slice %5 {offsets = [1, 0], sizes = [1, 8], strides = [1, 1]} : vector<2x8xf32> to vector<1x8xf32>
    %cst_97 = arith.constant 0.000000e+00 : f32
    %257 = vector.broadcast %cst_97 : f32 to vector<8x32xf32>
    %258 = vector.extract_strided_slice %199 {offsets = [8, 0], sizes = [8, 16], strides = [1, 1]} : vector<16x32xf32> to vector<8x16xf32>
    %259 = vector.extract_strided_slice %202 {offsets = [8, 0], sizes = [8, 16], strides = [1, 1]} : vector<16x32xf32> to vector<8x16xf32>
    %260 = vector.extract_strided_slice %205 {offsets = [8, 0], sizes = [8, 16], strides = [1, 1]} : vector<16x32xf32> to vector<8x16xf32>
    %261 = tpu.transpose %259, [1, 0] : vector<8x16xf32> -> vector<16x8xf32>
    %cst_98 = arith.constant dense<0.000000e+00> : vector<8x8xf32>
    %262 = tpu.matmul %258, %261, %cst_98 {dimension_numbers = #tpu.dot_dimension_numbers<[1], [0], [0], [1], [0, 0, 1, 1], [], []>} : vector<8x16xf32>, vector<16x8xf32>, vector<8x8xf32> -> vector<8x8xf32>
    %cst_99 = arith.constant 2.500000e-01 : f32
    %263 = vector.broadcast %cst_99 : f32 to vector<8x8xf32>
    %264 = arith.mulf %262, %263 : vector<8x8xf32>
    %265 = vector.broadcast %256 : vector<1x8xf32> to vector<8x8xf32>
    %266 = arith.addf %264, %265 : vector<8x8xf32>
    %cst_100 = arith.constant dense<0xFF800000> : vector<8xf32>
    %267 = vector.multi_reduction <maximumf>, %266, %cst_100 [1] : vector<8x8xf32> to vector<8xf32>
    %268 = vector.shape_cast %267 : vector<8xf32> to vector<8x1xf32>
    %269 = vector.broadcast %268 : vector<8x1xf32> to vector<8x8xf32>
    %270 = arith.subf %266, %269 : vector<8x8xf32>
    %271 = math.exp %270 : vector<8x8xf32>
    %cst_101 = arith.constant dense<0.000000e+00> : vector<8xf32>
    %272 = vector.multi_reduction <add>, %271, %cst_101 [1] : vector<8x8xf32> to vector<8xf32>
    %273 = vector.shape_cast %272 : vector<8xf32> to vector<8x1xf32>
    %274 = tpu.reciprocal %273 {approx = true} : vector<8x1xf32> -> vector<8x1xf32>
    %275 = vector.broadcast %274 : vector<8x1xf32> to vector<8x8xf32>
    %276 = arith.mulf %271, %275 : vector<8x8xf32>
    %cst_102 = arith.constant dense<0.000000e+00> : vector<8x16xf32>
    %277 = tpu.matmul %276, %260, %cst_102 {dimension_numbers = #tpu.dot_dimension_numbers<[1], [0], [0], [1], [0, 0, 1, 1], [], []>} : vector<8x8xf32>, vector<8x16xf32>, vector<8x16xf32> -> vector<8x16xf32>
    %278 = vector.extract_strided_slice %12 {offsets = [0, 0], sizes = [16, 32], strides = [1, 1]} : vector<32x32xf32> to vector<16x32xf32>
    %cst_103 = arith.constant dense<0.000000e+00> : vector<8x32xf32>
    %279 = tpu.matmul %277, %278, %cst_103 {dimension_numbers = #tpu.dot_dimension_numbers<[1], [0], [0], [1], [0, 0, 1, 1], [], []>} : vector<8x16xf32>, vector<16x32xf32>, vector<8x32xf32> -> vector<8x32xf32>
    %280 = arith.addf %257, %279 : vector<8x32xf32>
    %281 = vector.extract_strided_slice %199 {offsets = [8, 16], sizes = [8, 16], strides = [1, 1]} : vector<16x32xf32> to vector<8x16xf32>
    %282 = vector.extract_strided_slice %202 {offsets = [8, 16], sizes = [8, 16], strides = [1, 1]} : vector<16x32xf32> to vector<8x16xf32>
    %283 = vector.extract_strided_slice %205 {offsets = [8, 16], sizes = [8, 16], strides = [1, 1]} : vector<16x32xf32> to vector<8x16xf32>
    %284 = tpu.transpose %282, [1, 0] : vector<8x16xf32> -> vector<16x8xf32>
    %cst_104 = arith.constant dense<0.000000e+00> : vector<8x8xf32>
    %285 = tpu.matmul %281, %284, %cst_104 {dimension_numbers = #tpu.dot_dimension_numbers<[1], [0], [0], [1], [0, 0, 1, 1], [], []>} : vector<8x16xf32>, vector<16x8xf32>, vector<8x8xf32> -> vector<8x8xf32>
    %cst_105 = arith.constant 2.500000e-01 : f32
    %286 = vector.broadcast %cst_105 : f32 to vector<8x8xf32>
    %287 = arith.mulf %285, %286 : vector<8x8xf32>
    %288 = vector.broadcast %256 : vector<1x8xf32> to vector<8x8xf32>
    %289 = arith.addf %287, %288 : vector<8x8xf32>
    %cst_106 = arith.constant dense<0xFF800000> : vector<8xf32>
    %290 = vector.multi_reduction <maximumf>, %289, %cst_106 [1] : vector<8x8xf32> to vector<8xf32>
    %291 = vector.shape_cast %290 : vector<8xf32> to vector<8x1xf32>
    %292 = vector.broadcast %291 : vector<8x1xf32> to vector<8x8xf32>
    %293 = arith.subf %289, %292 : vector<8x8xf32>
    %294 = math.exp %293 : vector<8x8xf32>
    %cst_107 = arith.constant dense<0.000000e+00> : vector<8xf32>
    %295 = vector.multi_reduction <add>, %294, %cst_107 [1] : vector<8x8xf32> to vector<8xf32>
    %296 = vector.shape_cast %295 : vector<8xf32> to vector<8x1xf32>
    %297 = tpu.reciprocal %296 {approx = true} : vector<8x1xf32> -> vector<8x1xf32>
    %298 = vector.broadcast %297 : vector<8x1xf32> to vector<8x8xf32>
    %299 = arith.mulf %294, %298 : vector<8x8xf32>
    %cst_108 = arith.constant dense<0.000000e+00> : vector<8x16xf32>
    %300 = tpu.matmul %299, %283, %cst_108 {dimension_numbers = #tpu.dot_dimension_numbers<[1], [0], [0], [1], [0, 0, 1, 1], [], []>} : vector<8x8xf32>, vector<8x16xf32>, vector<8x16xf32> -> vector<8x16xf32>
    %301 = vector.extract_strided_slice %12 {offsets = [16, 0], sizes = [16, 32], strides = [1, 1]} : vector<32x32xf32> to vector<16x32xf32>
    %cst_109 = arith.constant dense<0.000000e+00> : vector<8x32xf32>
    %302 = tpu.matmul %300, %301, %cst_109 {dimension_numbers = #tpu.dot_dimension_numbers<[1], [0], [0], [1], [0, 0, 1, 1], [], []>} : vector<8x16xf32>, vector<16x32xf32>, vector<8x32xf32> -> vector<8x32xf32>
    %303 = arith.addf %280, %302 : vector<8x32xf32>
    %304 = vector.broadcast %13 : vector<1x32xf32> to vector<8x32xf32>
    %305 = arith.addf %303, %304 : vector<8x32xf32>
    %306 = tpu.concatenate %255, %305 in 0 : vector<8x32xf32>, vector<8x32xf32> -> vector<16x32xf32>
    %307 = arith.addf %196, %306 : vector<16x32xf32>
    %cst_110 = arith.constant dense<0.000000e+00> : vector<16xf32>
    %308 = vector.multi_reduction <add>, %307, %cst_110 [1] : vector<16x32xf32> to vector<16xf32>
    %309 = vector.shape_cast %308 : vector<16xf32> to vector<16x1xf32>
    %cst_111 = arith.constant 3.200000e+01 : f32
    %310 = vector.broadcast %cst_111 : f32 to vector<16x1xf32>
    %311 = arith.divf %309, %310 : vector<16x1xf32>
    %312 = vector.broadcast %311 : vector<16x1xf32> to vector<16x32xf32>
    %313 = arith.subf %307, %312 : vector<16x32xf32>
    %314 = arith.mulf %313, %313 : vector<16x32xf32>
    %cst_112 = arith.constant dense<0.000000e+00> : vector<16xf32>
    %315 = vector.multi_reduction <add>, %314, %cst_112 [1] : vector<16x32xf32> to vector<16xf32>
    %316 = vector.shape_cast %315 : vector<16xf32> to vector<16x1xf32>
    %cst_113 = arith.constant 3.200000e+01 : f32
    %317 = vector.broadcast %cst_113 : f32 to vector<16x1xf32>
    %318 = arith.divf %316, %317 : vector<16x1xf32>
    %319 = vector.broadcast %311 : vector<16x1xf32> to vector<16x32xf32>
    %320 = arith.subf %307, %319 : vector<16x32xf32>
    %cst_114 = arith.constant 9.99999996E-13 : f32
    %321 = vector.broadcast %cst_114 : f32 to vector<16x1xf32>
    %322 = arith.addf %318, %321 : vector<16x1xf32>
    %323 = math.rsqrt %322 : vector<16x1xf32>
    %324 = vector.broadcast %323 : vector<16x1xf32> to vector<16x32xf32>
    %325 = arith.mulf %320, %324 : vector<16x32xf32>
    %326 = vector.broadcast %14 : vector<1x32xf32> to vector<16x32xf32>
    %327 = arith.mulf %325, %326 : vector<16x32xf32>
    %328 = vector.broadcast %15 : vector<1x32xf32> to vector<16x32xf32>
    %329 = arith.addf %327, %328 : vector<16x32xf32>
    %cst_115 = arith.constant dense<0.000000e+00> : vector<16x64xf32>
    %330 = tpu.matmul %329, %16, %cst_115 {dimension_numbers = #tpu.dot_dimension_numbers<[1], [0], [0], [1], [0, 0, 1, 1], [], []>} : vector<16x32xf32>, vector<32x64xf32>, vector<16x64xf32> -> vector<16x64xf32>
    %331 = vector.broadcast %17 : vector<1x64xf32> to vector<16x64xf32>
    %332 = arith.addf %330, %331 : vector<16x64xf32>
    %cst_116 = arith.constant 5.000000e-01 : f32
    %333 = vector.broadcast %cst_116 : f32 to vector<16x64xf32>
    %334 = arith.mulf %333, %332 : vector<16x64xf32>
    %cst_117 = arith.constant 4.471500e-02 : f32
    %335 = vector.broadcast %cst_117 : f32 to vector<16x64xf32>
    %336 = arith.mulf %335, %332 : vector<16x64xf32>
    %337 = arith.mulf %336, %332 : vector<16x64xf32>
    %338 = arith.mulf %337, %332 : vector<16x64xf32>
    %339 = arith.addf %332, %338 : vector<16x64xf32>
    %cst_118 = arith.constant 0.797884583 : f32
    %340 = vector.broadcast %cst_118 : f32 to vector<16x64xf32>
    %341 = arith.mulf %340, %339 : vector<16x64xf32>
    %342 = math.tanh %341 : vector<16x64xf32>
    %cst_119 = arith.constant 1.000000e+00 : f32
    %343 = vector.broadcast %cst_119 : f32 to vector<16x64xf32>
    %344 = arith.addf %343, %342 : vector<16x64xf32>
    %345 = arith.mulf %334, %344 : vector<16x64xf32>
    %cst_120 = arith.constant dense<0.000000e+00> : vector<16x32xf32>
    %346 = tpu.matmul %345, %18, %cst_120 {dimension_numbers = #tpu.dot_dimension_numbers<[1], [0], [0], [1], [0, 0, 1, 1], [], []>} : vector<16x64xf32>, vector<64x32xf32>, vector<16x32xf32> -> vector<16x32xf32>
    %347 = vector.broadcast %19 : vector<1x32xf32> to vector<16x32xf32>
    %348 = arith.addf %346, %347 : vector<16x32xf32>
    %349 = arith.addf %329, %348 : vector<16x32xf32>
    %cst_121 = arith.constant dense<0.000000e+00> : vector<16xf32>
    %350 = vector.multi_reduction <add>, %349, %cst_121 [1] : vector<16x32xf32> to vector<16xf32>
    %351 = vector.shape_cast %350 : vector<16xf32> to vector<16x1xf32>
    %cst_122 = arith.constant 3.200000e+01 : f32
    %352 = vector.broadcast %cst_122 : f32 to vector<16x1xf32>
    %353 = arith.divf %351, %352 : vector<16x1xf32>
    %354 = vector.broadcast %353 : vector<16x1xf32> to vector<16x32xf32>
    %355 = arith.subf %349, %354 : vector<16x32xf32>
    %356 = arith.mulf %355, %355 : vector<16x32xf32>
    %cst_123 = arith.constant dense<0.000000e+00> : vector<16xf32>
    %357 = vector.multi_reduction <add>, %356, %cst_123 [1] : vector<16x32xf32> to vector<16xf32>
    %358 = vector.shape_cast %357 : vector<16xf32> to vector<16x1xf32>
    %cst_124 = arith.constant 3.200000e+01 : f32
    %359 = vector.broadcast %cst_124 : f32 to vector<16x1xf32>
    %360 = arith.divf %358, %359 : vector<16x1xf32>
    %361 = vector.broadcast %353 : vector<16x1xf32> to vector<16x32xf32>
    %362 = arith.subf %349, %361 : vector<16x32xf32>
    %cst_125 = arith.constant 9.99999996E-13 : f32
    %363 = vector.broadcast %cst_125 : f32 to vector<16x1xf32>
    %364 = arith.addf %360, %363 : vector<16x1xf32>
    %365 = math.rsqrt %364 : vector<16x1xf32>
    %366 = vector.broadcast %365 : vector<16x1xf32> to vector<16x32xf32>
    %367 = arith.mulf %362, %366 : vector<16x32xf32>
    %368 = vector.broadcast %20 : vector<1x32xf32> to vector<16x32xf32>
    %369 = arith.mulf %367, %368 : vector<16x32xf32>
    %370 = vector.broadcast %21 : vector<1x32xf32> to vector<16x32xf32>
    %371 = arith.addf %369, %370 : vector<16x32xf32>
    %372 = vector.extract_strided_slice %371 {offsets = [0, 0], sizes = [1, 32], strides = [1, 1]} : vector<16x32xf32> to vector<1x32xf32>
    %373 = vector.extract_strided_slice %371 {offsets = [8, 0], sizes = [1, 32], strides = [1, 1]} : vector<16x32xf32> to vector<1x32xf32>
    %374 = tpu.concatenate %372, %373 in 0 : vector<1x32xf32>, vector<1x32xf32> -> vector<2x32xf32>
    %c0_126 = arith.constant 0 : index
    %c0_127 = arith.constant 0 : index
    %375 = vector.load %arg19[%c0_126, %c0_127] : memref<32x128xf32, #tpu.memory_space<vmem>>, vector<32x128xf32>
    %cst_128 = arith.constant dense<0.000000e+00> : vector<2x128xf32>
    %376 = tpu.matmul %374, %375, %cst_128 {dimension_numbers = #tpu.dot_dimension_numbers<[1], [0], [0], [1], [0, 0, 1, 1], [], []>} : vector<2x32xf32>, vector<32x128xf32>, vector<2x128xf32> -> vector<2x128xf32>
    %c0_129 = arith.constant 0 : index
    %c0_130 = arith.constant 0 : index
    %377 = vector.load %arg20[%c0_129, %c0_130] : memref<1x128xf32, #tpu.memory_space<vmem>>, vector<1x128xf32>
    %378 = vector.broadcast %377 : vector<1x128xf32> to vector<2x128xf32>
    %379 = arith.addf %376, %378 : vector<2x128xf32>
    %c0_131 = arith.constant 0 : index
    %c0_132 = arith.constant 0 : index
    %380 = vector.load %arg24[%c0_131, %c0_132] : memref<2x128xf32, #tpu.memory_space<vmem>>, vector<2x128xf32>
    tpu.vector_store %arg24[%c0_131, %c0_132], %379 {strides = array<i32>} : memref<2x128xf32, #tpu.memory_space<vmem>>, vector<2x128xf32>,
    %c0_133 = arith.constant 0 : index
    %c0_134 = arith.constant 0 : index
    %381 = vector.load %arg21[%c0_133, %c0_134] : memref<128x128xf32, #tpu.memory_space<vmem>>, vector<128x128xf32>
    %cst_135 = arith.constant dense<0.000000e+00> : vector<2x128xf32>
    %382 = tpu.matmul %379, %381, %cst_135 {dimension_numbers = #tpu.dot_dimension_numbers<[1], [0], [0], [1], [0, 0, 1, 1], [], []>} : vector<2x128xf32>, vector<128x128xf32>, vector<2x128xf32> -> vector<2x128xf32>
    %c0_136 = arith.constant 0 : index
    %c0_137 = arith.constant 0 : index
    %383 = vector.load %arg22[%c0_136, %c0_137] : memref<1x128xf32, #tpu.memory_space<vmem>>, vector<1x128xf32>
    %384 = vector.broadcast %383 : vector<1x128xf32> to vector<2x128xf32>
    %385 = arith.addf %382, %384 : vector<2x128xf32>
    %c0_138 = arith.constant 0 : index
    %c0_139 = arith.constant 0 : index
    %386 = vector.load %arg23[%c0_138, %c0_139] : memref<2x128xf32, #tpu.memory_space<vmem>>, vector<2x128xf32>
    tpu.vector_store %arg23[%c0_138, %c0_139], %385 {strides = array<i32>} : memref<2x128xf32, #tpu.memory_space<vmem>>, vector<2x128xf32>,
    return
  }
  func.func @transform_0(%arg0: i32) -> (i32, i32) {
    %c0_i32 = arith.constant 0 : i32
    %c0_i32_0 = arith.constant 0 : i32
    %c0_i32_1 = arith.constant 0 : i32
    return %c0_i32, %c0_i32_0 : i32, i32
  }
  func.func @transform_1(%arg0: i32) -> (i32, i32) {
    %c0_i32 = arith.constant 0 : i32
    %c0_i32_0 = arith.constant 0 : i32
    %c0_i32_1 = arith.constant 0 : i32
    return %c0_i32, %c0_i32_0 : i32, i32
  }
  func.func @transform_2(%arg0: i32) -> (i32, i32) {
    %c0_i32 = arith.constant 0 : i32
    %c0_i32_0 = arith.constant 0 : i32
    %c0_i32_1 = arith.constant 0 : i32
    return %c0_i32, %c0_i32_0 : i32, i32
  }
  func.func @transform_3(%arg0: i32) -> (i32, i32) {
    %c0_i32 = arith.constant 0 : i32
    %c0_i32_0 = arith.constant 0 : i32
    %c0_i32_1 = arith.constant 0 : i32
    return %c0_i32, %c0_i32_0 : i32, i32
  }
  func.func @transform_4(%arg0: i32) -> (i32, i32) {
    %c0_i32 = arith.constant 0 : i32
    %c0_i32_0 = arith.constant 0 : i32
    %c0_i32_1 = arith.constant 0 : i32
    return %c0_i32, %c0_i32_0 : i32, i32
  }
  func.func @transform_5(%arg0: i32) -> (i32, i32) {
    %c0_i32 = arith.constant 0 : i32
    %c0_i32_0 = arith.constant 0 : i32
    %c0_i32_1 = arith.constant 0 : i32
    return %c0_i32, %c0_i32_0 : i32, i32
  }
  func.func @transform_6(%arg0: i32) -> (i32, i32) {
    %c0_i32 = arith.constant 0 : i32
    %c0_i32_0 = arith.constant 0 : i32
    %c0_i32_1 = arith.constant 0 : i32
    return %c0_i32, %c0_i32_0 : i32, i32
  }
  func.func @transform_7(%arg0: i32) -> (i32, i32) {
    %c0_i32 = arith.constant 0 : i32
    %c0_i32_0 = arith.constant 0 : i32
    %c0_i32_1 = arith.constant 0 : i32
    return %c0_i32, %c0_i32_0 : i32, i32
  }
  func.func @transform_8(%arg0: i32) -> (i32, i32) {
    %c0_i32 = arith.constant 0 : i32
    %c0_i32_0 = arith.constant 0 : i32
    %c0_i32_1 = arith.constant 0 : i32
    return %c0_i32, %c0_i32_0 : i32, i32
  }
  func.func @transform_9(%arg0: i32) -> (i32, i32) {
    %c0_i32 = arith.constant 0 : i32
    %c0_i32_0 = arith.constant 0 : i32
    %c0_i32_1 = arith.constant 0 : i32
    return %c0_i32, %c0_i32_0 : i32, i32
  }
  func.func @transform_10(%arg0: i32) -> (i32, i32) {
    %c0_i32 = arith.constant 0 : i32
    %c0_i32_0 = arith.constant 0 : i32
    %c0_i32_1 = arith.constant 0 : i32
    return %c0_i32, %c0_i32_0 : i32, i32
  }
  func.func @transform_11(%arg0: i32) -> (i32, i32) {
    %c0_i32 = arith.constant 0 : i32
    %c0_i32_0 = arith.constant 0 : i32
    %c0_i32_1 = arith.constant 0 : i32
    return %c0_i32, %c0_i32_0 : i32, i32
  }
  func.func @transform_12(%arg0: i32) -> (i32, i32) {
    %c0_i32 = arith.constant 0 : i32
    %c0_i32_0 = arith.constant 0 : i32
    %c0_i32_1 = arith.constant 0 : i32
    return %c0_i32, %c0_i32_0 : i32, i32
  }
  func.func @transform_13(%arg0: i32) -> (i32, i32) {
    %c0_i32 = arith.constant 0 : i32
    %c0_i32_0 = arith.constant 0 : i32
    %c0_i32_1 = arith.constant 0 : i32
    return %c0_i32, %c0_i32_0 : i32, i32
  }
  func.func @transform_14(%arg0: i32) -> (i32, i32) {
    %c0_i32 = arith.constant 0 : i32
    %c0_i32_0 = arith.constant 0 : i32
    %c0_i32_1 = arith.constant 0 : i32
    return %c0_i32, %c0_i32_0 : i32, i32
  }
  func.func @transform_15(%arg0: i32) -> (i32, i32) {
    %c0_i32 = arith.constant 0 : i32
    %c0_i32_0 = arith.constant 0 : i32
    %c0_i32_1 = arith.constant 0 : i32
    return %c0_i32, %c0_i32_0 : i32, i32
  }
  func.func @transform_16(%arg0: i32) -> (i32, i32) {
    %c0_i32 = arith.constant 0 : i32
    %c0_i32_0 = arith.constant 0 : i32
    %c0_i32_1 = arith.constant 0 : i32
    return %c0_i32, %c0_i32_0 : i32, i32
  }
  func.func @transform_17(%arg0: i32) -> (i32, i32) {
    %c0_i32 = arith.constant 0 : i32
    %c0_i32_0 = arith.constant 0 : i32
    %c0_i32_1 = arith.constant 0 : i32
    return %c0_i32, %c0_i32_0 : i32, i32
  }
  func.func @transform_18(%arg0: i32) -> (i32, i32) {
    %c0_i32 = arith.constant 0 : i32
    %c0_i32_0 = arith.constant 0 : i32
    %c0_i32_1 = arith.constant 0 : i32
    return %c0_i32, %c0_i32_0 : i32, i32
  }
  func.func @transform_19(%arg0: i32) -> (i32, i32) {
    %c0_i32 = arith.constant 0 : i32
    %c0_i32_0 = arith.constant 0 : i32
    %c0_i32_1 = arith.constant 0 : i32
    return %c0_i32, %c0_i32_0 : i32, i32
  }
  func.func @transform_20(%arg0: i32) -> (i32, i32) {
    %c0_i32 = arith.constant 0 : i32
    %c0_i32_0 = arith.constant 0 : i32
    %c0_i32_1 = arith.constant 0 : i32
    return %c0_i32, %c0_i32_0 : i32, i32
  }
  func.func @transform_21(%arg0: i32) -> (i32, i32) {
    %c0_i32 = arith.constant 0 : i32
    %c0_i32_0 = arith.constant 0 : i32
    %c0_i32_1 = arith.constant 0 : i32
    return %c0_i32, %c0_i32_0 : i32, i32
  }
  func.func @transform_22(%arg0: i32) -> (i32, i32) {
    %c0_i32 = arith.constant 0 : i32
    %c0_i32_0 = arith.constant 0 : i32
    %c0_i32_1 = arith.constant 0 : i32
    return %c0_i32, %c0_i32_0 : i32, i32
  }
  func.func @transform_23(%arg0: i32) -> (i32, i32) {
    %c0_i32 = arith.constant 0 : i32
    %c0_i32_0 = arith.constant 0 : i32
    %c0_i32_1 = arith.constant 0 : i32
    return %c0_i32, %c0_i32_0 : i32, i32
  }
}

</mosaic_0001>

<llo_original>
// kernel: tpu_custom_call.1
$region0: #{tpu_custom_call.1}
  #allocation0 [shape = 'u32[]', space=smem, size = 0x4, offset = 0x4, fixed_abs, tag = 'smem constant byte address 0x4 - core index']
  #allocation1 [shape = 'u32[144,128]{1,0:T(1,128)}', space=vmem, size = 0x12000, scoped, tag = 'internal scratch']
  %s0 = inlined_call_operand.hbm [shape: f32[16,32], index: 0, kind: input, shape index: {}]
  %s1 = inlined_call_operand.vmem [shape: f32[2,8], index: 1, kind: input, shape index: {}]
  %s2 = inlined_call_operand.vmem [shape: f32[32,32], index: 2, kind: input, shape index: {}]
  %s3 = inlined_call_operand.vmem [shape: f32[1,32], index: 3, kind: input, shape index: {}]
  %s4 = inlined_call_operand.hbm [shape: f32[32,32], index: 4, kind: input, shape index: {}]
  %s5 = inlined_call_operand.vmem [shape: f32[1,32], index: 5, kind: input, shape index: {}]
  %s6 = inlined_call_operand.hbm [shape: f32[32,32], index: 6, kind: input, shape index: {}]
  %s7 = inlined_call_operand.vmem [shape: f32[1,32], index: 7, kind: input, shape index: {}]
  %s8 = inlined_call_operand.hbm [shape: f32[32,32], index: 8, kind: input, shape index: {}]
  %s9 = inlined_call_operand.vmem [shape: f32[1,32], index: 9, kind: input, shape index: {}]
  %s10 = inlined_call_operand.vmem [shape: f32[1,32], index: 10, kind: input, shape index: {}]
  %s11 = inlined_call_operand.vmem [shape: f32[1,32], index: 11, kind: input, shape index: {}]
  %s12 = inlined_call_operand.hbm [shape: f32[32,64], index: 12, kind: input, shape index: {}]
  %s13 = inlined_call_operand.vmem [shape: f32[1,64], index: 13, kind: input, shape index: {}]
  %s14 = inlined_call_operand.vmem [shape: f32[64,32], index: 14, kind: input, shape index: {}]
  %s15 = inlined_call_operand.vmem [shape: f32[1,32], index: 15, kind: input, shape index: {}]
  %s16 = inlined_call_operand.vmem [shape: f32[1,32], index: 16, kind: input, shape index: {}]
  %s17 = inlined_call_operand.hbm [shape: f32[1,32], index: 17, kind: input, shape index: {}]
  %s18 = inlined_call_operand.hbm [shape: f32[32,128], index: 18, kind: input, shape index: {}]
  %s19 = inlined_call_operand.hbm [shape: f32[1,128], index: 19, kind: input, shape index: {}]
  %s20 = inlined_call_operand.vmem [shape: f32[128,128], index: 20, kind: input, shape index: {}]
  %s21 = inlined_call_operand.vmem [shape: f32[1,128], index: 21, kind: input, shape index: {}]
  %s22 = inlined_call_operand.hbm [shape: f32[2,128], index: 22, kind: output, shape index: {0}]
  %s23 = inlined_call_operand.hbm [shape: f32[2,128], index: 23, kind: output, shape index: {1}]
  %24 = xla_tuple %s22, %s23
  %s25 = sld [smem:[#allocation0]]
  $region138: #{tpu_custom_call.1} parent=0
    _
  %s27 = ssub.s32 1, %s25
  %s28 = scalar_select 0, %s27, %s25
  $region1: #{tpu_custom_call.1} parent=0
    #allocation2 [shape = 'u8[8192]{0}', space=vmem, size = 0x2000, scoped, tag = 'input window, operand 0, single buffered']
    #allocation3 [shape = 's32[1]{0}', space=sflag, size = 0x4, scoped, tag = 'scoped memory for tpu_custom_call.1']
    #allocation4 [shape = 's32[1]{0}', space=sflag, size = 0x4, scoped, tag = 'scoped memory for tpu_custom_call.1']
    #allocation5 [shape = 'u8[16384]{0}', space=vmem, size = 0x4000, scoped, tag = 'input window, operand 4, single buffered']
    #allocation6 [shape = 's32[1]{0}', space=sflag, size = 0x4, scoped, tag = 'scoped memory for tpu_custom_call.1']
    #allocation7 [shape = 'u8[16384]{0}', space=vmem, size = 0x4000, scoped, tag = 'input window, operand 6, single buffered']
    #allocation8 [shape = 'u8[16384]{0}', space=vmem, size = 0x4000, scoped, tag = 'input window, operand 8, single buffered']
    #allocation9 [shape = 's32[1]{0}', space=sflag, size = 0x4, scoped, tag = 'scoped memory for tpu_custom_call.1']
    #allocation10 [shape = 'u8[16384]{0}', space=vmem, size = 0x4000, scoped, tag = 'input window, operand 12, single buffered']
    #allocation11 [shape = 'u8[512]{0}', space=vmem, size = 0x400, scoped, tag = 'input window, operand 17, single buffered']
    #allocation12 [shape = 's32[1]{0}', space=sflag, size = 0x4, scoped, tag = 'scoped memory for tpu_custom_call.1']
    #allocation13 [shape = 'u8[16384]{0}', space=vmem, size = 0x4000, scoped, tag = 'input window, operand 18, single buffered']
    #allocation14 [shape = 'u8[512]{0}', space=vmem, size = 0x400, scoped, tag = 'input window, operand 19, single buffered']
    #allocation15 [shape = 's32[1]{0}', space=sflag, size = 0x4, scoped, tag = 'scoped memory for tpu_custom_call.1']
    #allocation16 [shape = 'u8[1024]{0}', space=vmem, size = 0x400, scoped, tag = 'output window, operand 0, single buffered']
    #allocation17 [shape = 'u8[1024]{0}', space=vmem, size = 0x400, scoped, tag = 'output window, operand 1, single buffered']
    #allocation18 [shape = 's32[1]{0}', space=sflag, size = 0x4, scoped, tag = 'scoped memory for tpu_custom_call.1']
    %29 = vsyncpa [#allocation3], 0
    %30 = vsyncpa [#allocation6], 0
    %31 = vsyncpa [#allocation9], 0
    %32 = vsyncpa [#allocation12], 0
    %33 = vsyncpa [#allocation15], 0
    %34 = vsyncpa [#allocation4], 0
    %35 = vsyncpa [#allocation18], 0
    // Predicated region
    $region2: #{tpu_custom_call.1} parent=1 // pred_check
      _
    $region3: #{tpu_custom_call.1} parent=1 // pred_check_branch
      %37 = sbr.rel (0) target = $region5
    $region4: #{tpu_custom_call.1} parent=1 // pred_region
      %s39 = ssub.s32 256, 256
      %40 = vsyncadd [#allocation3], %s39
      %s41 = sshll.u32 [#allocation2], 4
      %s42 = int_to_ptr.vmem [resolvable:$true] %s41
      %47 = dma.hbm_to_vmem [thread:$0]  %s0, 256, %s42, [#allocation3], 128, 128, 8
    $region5: #{tpu_custom_call.1} parent=1 // pred_fallthru
      _
    // Predicated region
    $region6: #{tpu_custom_call.1} parent=1 // pred_check
      _
    $region7: #{tpu_custom_call.1} parent=1 // pred_check_branch
      %49 = sbr.rel (0) target = $region9
    $region8: #{tpu_custom_call.1} parent=1 // pred_region
      _
    $region9: #{tpu_custom_call.1} parent=1 // pred_fallthru
      _
    // Predicated region
    $region10: #{tpu_custom_call.1} parent=1 // pred_check
      _
    $region11: #{tpu_custom_call.1} parent=1 // pred_check_branch
      %51 = sbr.rel (0) target = $region13
    $region12: #{tpu_custom_call.1} parent=1 // pred_region
      _
    $region13: #{tpu_custom_call.1} parent=1 // pred_fallthru
      _
    // Predicated region
    $region14: #{tpu_custom_call.1} parent=1 // pred_check
      _
    $region15: #{tpu_custom_call.1} parent=1 // pred_check_branch
      %53 = sbr.rel (0) target = $region17
    $region16: #{tpu_custom_call.1} parent=1 // pred_region
      _
    $region17: #{tpu_custom_call.1} parent=1 // pred_fallthru
      _
    // Predicated region
    $region18: #{tpu_custom_call.1} parent=1 // pred_check
      _
    $region19: #{tpu_custom_call.1} parent=1 // pred_check_branch
      %55 = sbr.rel (0) target = $region21
    $region20: #{tpu_custom_call.1} parent=1 // pred_region
      %s57 = ssub.s32 512, 512
      %58 = vsyncadd [#allocation6], %s57
      %s59 = sshll.u32 [#allocation5], 4
      %s60 = int_to_ptr.vmem [resolvable:$true] %s59
      %65 = dma.hbm_to_vmem [thread:$0]  %s4, 512, %s60, [#allocation6], 128, 128, 8
    $region21: #{tpu_custom_call.1} parent=1 // pred_fallthru
      _
    // Predicated region
    $region22: #{tpu_custom_call.1} parent=1 // pred_check
      _
    $region23: #{tpu_custom_call.1} parent=1 // pred_check_branch
      %67 = sbr.rel (0) target = $region25
    $region24: #{tpu_custom_call.1} parent=1 // pred_region
      _
    $region25: #{tpu_custom_call.1} parent=1 // pred_fallthru
      _
    // Predicated region
    $region26: #{tpu_custom_call.1} parent=1 // pred_check
      _
    $region27: #{tpu_custom_call.1} parent=1 // pred_check_branch
      %69 = sbr.rel (0) target = $region29
    $region28: #{tpu_custom_call.1} parent=1 // pred_region
      %s71 = ssub.s32 512, 512
      %72 = vsyncadd [#allocation6], %s71
      %s73 = sshll.u32 [#allocation7], 4
      %s74 = int_to_ptr.vmem [resolvable:$true] %s73
      %79 = dma.hbm_to_vmem [thread:$0]  %s6, 512, %s74, [#allocation6], 128, 128, 8
    $region29: #{tpu_custom_call.1} parent=1 // pred_fallthru
      _
    // Predicated region
    $region30: #{tpu_custom_call.1} parent=1 // pred_check
      _
    $region31: #{tpu_custom_call.1} parent=1 // pred_check_branch
      %81 = sbr.rel (0) target = $region33
    $region32: #{tpu_custom_call.1} parent=1 // pred_region
      _
    $region33: #{tpu_custom_call.1} parent=1 // pred_fallthru
      _
    // Predicated region
    $region34: #{tpu_custom_call.1} parent=1 // pred_check
      _
    $region35: #{tpu_custom_call.1} parent=1 // pred_check_branch
      %83 = sbr.rel (0) target = $region37
    $region36: #{tpu_custom_call.1} parent=1 // pred_region
      %s85 = ssub.s32 512, 512
      %86 = vsyncadd [#allocation9], %s85
      %s87 = sshll.u32 [#allocation8], 4
      %s88 = int_to_ptr.vmem [resolvable:$true] %s87
      %93 = dma.hbm_to_vmem [thread:$0]  %s8, 512, %s88, [#allocation9], 128, 128, 8
    $region37: #{tpu_custom_call.1} parent=1 // pred_fallthru
      _
    // Predicated region
    $region38: #{tpu_custom_call.1} parent=1 // pred_check
      _
    $region39: #{tpu_custom_call.1} parent=1 // pred_check_branch
      %95 = sbr.rel (0) target = $region41
    $region40: #{tpu_custom_call.1} parent=1 // pred_region
      _
    $region41: #{tpu_custom_call.1} parent=1 // pred_fallthru
      _
    // Predicated region
    $region42: #{tpu_custom_call.1} parent=1 // pred_check
      _
    $region43: #{tpu_custom_call.1} parent=1 // pred_check_branch
      %97 = sbr.rel (0) target = $region45
    $region44: #{tpu_custom_call.1} parent=1 // pred_region
      _
    $region45: #{tpu_custom_call.1} parent=1 // pred_fallthru
      _
    // Predicated region
    $region46: #{tpu_custom_call.1} parent=1 // pred_check
      _
    $region47: #{tpu_custom_call.1} parent=1 // pred_check_branch
      %99 = sbr.rel (0) target = $region49
    $region48: #{tpu_custom_call.1} parent=1 // pred_region
      _
    $region49: #{tpu_custom_call.1} parent=1 // pred_fallthru
      _
    // Predicated region
    $region50: #{tpu_custom_call.1} parent=1 // pred_check
      _
    $region51: #{tpu_custom_call.1} parent=1 // pred_check_branch
      %101 = sbr.rel (0) target = $region53
    $region52: #{tpu_custom_call.1} parent=1 // pred_region
      %s103 = ssub.s32 512, 512
      %104 = vsyncadd [#allocation9], %s103
      %s105 = sshll.u32 [#allocation10], 4
      %s106 = int_to_ptr.vmem [resolvable:$true] %s105
      %111 = dma.hbm_to_vmem [thread:$0]  %s12, 512, %s106, [#allocation9], 128, 128, 8
    $region53: #{tpu_custom_call.1} parent=1 // pred_fallthru
      _
    // Predicated region
    $region54: #{tpu_custom_call.1} parent=1 // pred_check
      _
    $region55: #{tpu_custom_call.1} parent=1 // pred_check_branch
      %113 = sbr.rel (0) target = $region57
    $region56: #{tpu_custom_call.1} parent=1 // pred_region
      _
    $region57: #{tpu_custom_call.1} parent=1 // pred_fallthru
      _
    // Predicated region
    $region58: #{tpu_custom_call.1} parent=1 // pred_check
      _
    $region59: #{tpu_custom_call.1} parent=1 // pred_check_branch
      %115 = sbr.rel (0) target = $region61
    $region60: #{tpu_custom_call.1} parent=1 // pred_region
      _
    $region61: #{tpu_custom_call.1} parent=1 // pred_fallthru
      _
    // Predicated region
    $region62: #{tpu_custom_call.1} parent=1 // pred_check
      _
    $region63: #{tpu_custom_call.1} parent=1 // pred_check_branch
      %117 = sbr.rel (0) target = $region65
    $region64: #{tpu_custom_call.1} parent=1 // pred_region
      _
    $region65: #{tpu_custom_call.1} parent=1 // pred_fallthru
      _
    // Predicated region
    $region66: #{tpu_custom_call.1} parent=1 // pred_check
      _
    $region67: #{tpu_custom_call.1} parent=1 // pred_check_branch
      %119 = sbr.rel (0) target = $region69
    $region68: #{tpu_custom_call.1} parent=1 // pred_region
      _
    $region69: #{tpu_custom_call.1} parent=1 // pred_fallthru
      _
    // Predicated region
    $region70: #{tpu_custom_call.1} parent=1 // pred_check
      _
    $region71: #{tpu_custom_call.1} parent=1 // pred_check_branch
      %121 = sbr.rel (0) target = $region73
    $region72: #{tpu_custom_call.1} parent=1 // pred_region
      %s123 = ssub.s32 16, 16
      %124 = vsyncadd [#allocation12], %s123
      %s126 = sshll.u32 [#allocation11], 4
      %s127 = int_to_ptr.vmem [resolvable:$true] %s126
      %129 = dma.hbm_to_vmem [thread:$0]  %s17, 16, %s127, [#allocation12]
    $region73: #{tpu_custom_call.1} parent=1 // pred_fallthru
      _
    // Predicated region
    $region74: #{tpu_custom_call.1} parent=1 // pred_check
      _
    $region75: #{tpu_custom_call.1} parent=1 // pred_check_branch
      %131 = sbr.rel (0) target = $region77
    $region76: #{tpu_custom_call.1} parent=1 // pred_region
      %s133 = ssub.s32 512, 512
      %134 = vsyncadd [#allocation12], %s133
      %s135 = sshll.u32 [#allocation13], 4
      %s136 = int_to_ptr.vmem [resolvable:$true] %s135
      %141 = dma.hbm_to_vmem [thread:$0]  %s18, 512, %s136, [#allocation12], 128, 128, 8
    $region77: #{tpu_custom_call.1} parent=1 // pred_fallthru
      _
    // Predicated region
    $region78: #{tpu_custom_call.1} parent=1 // pred_check
      _
    $region79: #{tpu_custom_call.1} parent=1 // pred_check_branch
      %143 = sbr.rel (0) target = $region81
    $region80: #{tpu_custom_call.1} parent=1 // pred_region
      %s145 = ssub.s32 16, 16
      %146 = vsyncadd [#allocation15], %s145
      %s148 = sshll.u32 [#allocation14], 4
      %s149 = int_to_ptr.vmem [resolvable:$true] %s148
      %151 = dma.hbm_to_vmem [thread:$0]  %s19, 16, %s149, [#allocation15]
    $region81: #{tpu_custom_call.1} parent=1 // pred_fallthru
      _
    // Predicated region
    $region82: #{tpu_custom_call.1} parent=1 // pred_check
      _
    $region83: #{tpu_custom_call.1} parent=1 // pred_check_branch
      %153 = sbr.rel (0) target = $region85
    $region84: #{tpu_custom_call.1} parent=1 // pred_region
      _
    $region85: #{tpu_custom_call.1} parent=1 // pred_fallthru
      _
    // Predicated region
    $region86: #{tpu_custom_call.1} parent=1 // pred_check
      _
    $region87: #{tpu_custom_call.1} parent=1 // pred_check_branch
      %155 = sbr.rel (0) target = $region89
    $region88: #{tpu_custom_call.1} parent=1 // pred_region
      _
    $region89: #{tpu_custom_call.1} parent=1 // pred_fallthru
      _
    // Predicated region
    $region90: #{tpu_custom_call.1} parent=1 // pred_check
      _
    $region91: #{tpu_custom_call.1} parent=1 // pred_check_branch
      %157 = sbr.rel (0) target = $region93
    $region92: #{tpu_custom_call.1} parent=1 // pred_region
      %158 = dma.done [#allocation3], 256
    $region93: #{tpu_custom_call.1} parent=1 // pred_fallthru
      _
    // Predicated region
    $region94: #{tpu_custom_call.1} parent=1 // pred_check
      _
    $region95: #{tpu_custom_call.1} parent=1 // pred_check_branch
      %160 = sbr.rel (0) target = $region97
    $region96: #{tpu_custom_call.1} parent=1 // pred_region
      %161 = dma.done [#allocation6], 512
    $region97: #{tpu_custom_call.1} parent=1 // pred_fallthru
      _
    // Predicated region
    $region98: #{tpu_custom_call.1} parent=1 // pred_check
      _
    $region99: #{tpu_custom_call.1} parent=1 // pred_check_branch
      %163 = sbr.rel (0) target = $region101
    $region100: #{tpu_custom_call.1} parent=1 // pred_region
      %164 = dma.done [#allocation6], 512
    $region101: #{tpu_custom_call.1} parent=1 // pred_fallthru
      _
    // Predicated region
    $region102: #{tpu_custom_call.1} parent=1 // pred_check
      _
    $region103: #{tpu_custom_call.1} parent=1 // pred_check_branch
      %166 = sbr.rel (0) target = $region105
    $region104: #{tpu_custom_call.1} parent=1 // pred_region
      %167 = dma.done [#allocation9], 512
    $region105: #{tpu_custom_call.1} parent=1 // pred_fallthru
      _
    // Predicated region
    $region106: #{tpu_custom_call.1} parent=1 // pred_check
      _
    $region107: #{tpu_custom_call.1} parent=1 // pred_check_branch
      %169 = sbr.rel (0) target = $region109
    $region108: #{tpu_custom_call.1} parent=1 // pred_region
      %170 = dma.done [#allocation9], 512
    $region109: #{tpu_custom_call.1} parent=1 // pred_fallthru
      _
    // Predicated region
    $region110: #{tpu_custom_call.1} parent=1 // pred_check
      _
    $region111: #{tpu_custom_call.1} parent=1 // pred_check_branch
      %172 = sbr.rel (0) target = $region113
    $region112: #{tpu_custom_call.1} parent=1 // pred_region
      %173 = dma.done [#allocation12], 16
    $region113: #{tpu_custom_call.1} parent=1 // pred_fallthru
      _
    // Predicated region
    $region114: #{tpu_custom_call.1} parent=1 // pred_check
      _
    $region115: #{tpu_custom_call.1} parent=1 // pred_check_branch
      %175 = sbr.rel (0) target = $region117
    $region116: #{tpu_custom_call.1} parent=1 // pred_region
      %176 = dma.done [#allocation12], 512
    $region117: #{tpu_custom_call.1} parent=1 // pred_fallthru
      _
    // Predicated region
    $region118: #{tpu_custom_call.1} parent=1 // pred_check
      _
    $region119: #{tpu_custom_call.1} parent=1 // pred_check_branch
      %178 = sbr.rel (0) target = $region121
    $region120: #{tpu_custom_call.1} parent=1 // pred_region
      %179 = dma.done [#allocation15], 16
    $region121: #{tpu_custom_call.1} parent=1 // pred_fallthru
      _
    %v180 = vld [vmem:[#allocation2] sm:$0xff]
    %v181 = vld [vmem:[#allocation2 + $0x8] sm:$0xff]
    %v182 = vld [vmem:[%s1] sm:$0x3]
    %v183 = vsub.f32 1.0, %v182
    %v184 = vmul.f32 %v183, -1e+09
    %v185 = vld [vmem:[%s2] sm:$0xff]
    %v186 = vld [vmem:[%s2 + $0x8] sm:$0xff]
    %v187 = vld [vmem:[%s2 + $0x10] sm:$0xff]
    %v188 = vld [vmem:[%s2 + $0x18] sm:$0xff]
    %v189 = vld [vmem:[%s3] sm:$0x1]
    %v190 = vld [vmem:[#allocation5] sm:$0xff]
    %v191 = vld [vmem:[#allocation5 + $0x8] sm:$0xff]
    %v192 = vld [vmem:[#allocation5 + $0x10] sm:$0xff]
    %v193 = vld [vmem:[#allocation5 + $0x18] sm:$0xff]
    %v194 = vld [vmem:[%s5] sm:$0x1]
    %v195 = vld [vmem:[#allocation7] sm:$0xff]
    %v196 = vld [vmem:[#allocation7 + $0x8] sm:$0xff]
    %v197 = vld [vmem:[#allocation7 + $0x10] sm:$0xff]
    %v198 = vld [vmem:[#allocation7 + $0x18] sm:$0xff]
    %v199 = vld [vmem:[%s7] sm:$0x1]
    %v200 = vld [vmem:[#allocation8] sm:$0xff]
    %v201 = vld [vmem:[#allocation8 + $0x8] sm:$0xff]
    %v202 = vld [vmem:[#allocation8 + $0x10] sm:$0xff]
    %v203 = vld [vmem:[#allocation8 + $0x18] sm:$0xff]
    %v204 = vld [vmem:[%s9] sm:$0x1]
    %v205 = vld [vmem:[%s10] sm:$0x1]
    %v206 = vld [vmem:[%s11] sm:$0x1]
    %v207 = vld [vmem:[#allocation10] sm:$0xff]
    %v208 = vld [vmem:[#allocation10 + $0x8] sm:$0xff]
    %v209 = vld [vmem:[#allocation10 + $0x10] sm:$0xff]
    %v210 = vld [vmem:[#allocation10 + $0x18] sm:$0xff]
    %v211 = vld [vmem:[%s13] sm:$0x1]
    %v212 = vld [vmem:[%s14] sm:$0xff]
    %v213 = vld [vmem:[%s14 + $0x8] sm:$0xff]
    %v214 = vld [vmem:[%s14 + $0x10] sm:$0xff]
    %v215 = vld [vmem:[%s14 + $0x18] sm:$0xff]
    %v216 = vld [vmem:[%s14 + $0x20] sm:$0xff]
    %v217 = vld [vmem:[%s14 + $0x28] sm:$0xff]
    %v218 = vld [vmem:[%s14 + $0x30] sm:$0xff]
    %v219 = vld [vmem:[%s14 + $0x38] sm:$0xff]
    %v220 = vld [vmem:[%s15] sm:$0x1]
    %v221 = vld [vmem:[%s16] sm:$0x1]
    %v222 = vld [vmem:[#allocation11] sm:$0x1]
    %v224 = vlaneseq
    %v225 = vshrl.u32 %v224, 7
    %v226 = vsub.s32 0, %v225
    %v227 = vrot.slane %v189, %v226
    %vm229 = vcmask 261120
    %v231 = vsel %vm229, %v180, 0
    %v234 = vsel %vm229, %v181, 0
    %236 = vmatprep.subr.mxu0 0.0
    %237 = vmatpush1.msra.mxu0 %v185
    %238 = vmatprep.subr.mxu0 0.0
    %239 = vmatpush1.msra.mxu0 %v186
    %240 = vmatprep.subr.mxu0 0.0
    %241 = vmatpush1.msra.mxu0 %v187
    %242 = vmatprep.subr.mxu0 0.0
    %243 = vmatpush1.msra.mxu0 %v188
    %244 = vmatprep.subr.mxu0 0.0
    %245 = vmatpush1.msra.mxu0 0.0
    %246 = vmatprep.subr.mxu0 0.0
    %247 = vmatpush1.msra.mxu0 0.0
    %248 = vmatprep.subr.mxu0 0.0
    %249 = vmatpush1.msra.mxu0 0.0
    %250 = vmatprep.subr.mxu0 0.0
    %251 = vmatpush1.msra.mxu0 0.0
    %252 = vmatprep.subr.mxu0 0.0
    %253 = vmatpush1.msra.mxu0 0.0
    %254 = vmatprep.subr.mxu0 0.0
    %255 = vmatpush1.msra.mxu0 0.0
    %256 = vmatprep.subr.mxu0 0.0
    %257 = vmatpush1.msra.mxu0 0.0
    %258 = vmatprep.subr.mxu0 0.0
    %259 = vmatpush1.msra.mxu0 0.0
    %260 = vmatprep.subr.mxu0 0.0
    %261 = vmatpush1.msra.mxu0 0.0
    %262 = vmatprep.subr.mxu0 0.0
    %263 = vmatpush1.msra.mxu0 0.0
    %264 = vmatprep.subr.mxu0 0.0
    %265 = vmatpush1.msra.mxu0 0.0
    %266 = vmatprep.subr.mxu0 0.0
    %267 = vmatpush1.msra.mxu0 0.0
    %268 = vmatprep.subr.mxu0 0.0
    %269 = vmatpush1.msra.mxu0 0.0
    %270 = vmatprep.subr.mxu0 0.0
    %271 = vmatpush1.msra.mxu0 0.0
    %272 = vmatprep.subr.mxu0 0.0
    %273 = vmatpush1.msra.mxu0 0.0
    %274 = vmatprep.subr.mxu0 0.0
    %275 = vmatpush1.msra.mxu0 0.0
    %276 = vmatprep.subr.mxu0 0.0
    %277 = vmatpush1.msra.mxu0 0.0
    %278 = vmatprep.subr.mxu0 0.0
    %279 = vmatpush1.msra.mxu0 0.0
    %280 = vmatprep.subr.mxu0 0.0
    %281 = vmatpush1.msra.mxu0 0.0
    %282 = vmatprep.subr.mxu0 0.0
    %283 = vmatpush1.msra.mxu0 0.0
    %284 = vmatprep.subr.mxu0 0.0
    %285 = vmatpush1.msra.mxu0 0.0
    %286 = vmatprep.subr.mxu0 0.0
    %287 = vmatpush1.msra.mxu0 0.0
    %288 = vmatprep.subr.mxu0 0.0
    %289 = vmatpush1.msra.mxu0 0.0
    %290 = vmatprep.subr.mxu0 0.0
    %291 = vmatpush1.msra.mxu0 0.0
    %292 = vmatprep.subr.mxu0 0.0
    %293 = vmatpush1.msra.mxu0 0.0
    %294 = vmatprep.subr.mxu0 0.0
    %295 = vmatpush1.msra.mxu0 0.0
    %296 = vmatprep.subr.mxu0 0.0
    %297 = vmatpush1.msra.mxu0 0.0
    %298 = vmatprep.subr.mxu0 0.0
    %299 = vmatpush1.msra.mxu0 0.0
    %300 = vmatprep.mubr.f32.mxu0 0.0
    %301 = vmatmul.mubr.f32.gmra.mrb[0].mxu0 %v231
    %v302 = vpop.f32.mrb[0].mxu0
    %v303 = vadd.f32 %v227, %v302
    %v304 = vpop.f32.mrb[0].mxu0
    %305 = vmatprep.mubr.f32.mxu0 0.0
    %306 = vmatmul.mubr.f32.gmra.mrb[0].mxu0 %v234
    %v307 = vpop.f32.mrb[0].mxu0
    %v308 = vadd.f32 %v227, %v307
    %v309 = vpop.f32.mrb[0].mxu0
    %310 = vdwg.mxu0
    %v312 = vlaneseq
    %v313 = vshrl.u32 %v312, 7
    %v314 = vsub.s32 0, %v313
    %v315 = vrot.slane %v194, %v314
    %317 = vmatprep.subr.mxu0 0.0
    %318 = vmatpush1.msra.mxu0 %v190
    %319 = vmatprep.subr.mxu0 0.0
    %320 = vmatpush1.msra.mxu0 %v191
    %321 = vmatprep.subr.mxu0 0.0
    %322 = vmatpush1.msra.mxu0 %v192
    %323 = vmatprep.subr.mxu0 0.0
    %324 = vmatpush1.msra.mxu0 %v193
    %325 = vmatprep.subr.mxu0 0.0
    %326 = vmatpush1.msra.mxu0 0.0
    %327 = vmatprep.subr.mxu0 0.0
    %328 = vmatpush1.msra.mxu0 0.0
    %329 = vmatprep.subr.mxu0 0.0
    %330 = vmatpush1.msra.mxu0 0.0
    %331 = vmatprep.subr.mxu0 0.0
    %332 = vmatpush1.msra.mxu0 0.0
    %333 = vmatprep.subr.mxu0 0.0
    %334 = vmatpush1.msra.mxu0 0.0
    %335 = vmatprep.subr.mxu0 0.0
    %336 = vmatpush1.msra.mxu0 0.0
    %337 = vmatprep.subr.mxu0 0.0
    %338 = vmatpush1.msra.mxu0 0.0
    %339 = vmatprep.subr.mxu0 0.0
    %340 = vmatpush1.msra.mxu0 0.0
    %341 = vmatprep.subr.mxu0 0.0
    %342 = vmatpush1.msra.mxu0 0.0
    %343 = vmatprep.subr.mxu0 0.0
    %344 = vmatpush1.msra.mxu0 0.0
    %345 = vmatprep.subr.mxu0 0.0
    %346 = vmatpush1.msra.mxu0 0.0
    %347 = vmatprep.subr.mxu0 0.0
    %348 = vmatpush1.msra.mxu0 0.0
    %349 = vmatprep.subr.mxu0 0.0
    %350 = vmatpush1.msra.mxu0 0.0
    %351 = vmatprep.subr.mxu0 0.0
    %352 = vmatpush1.msra.mxu0 0.0
    %353 = vmatprep.subr.mxu0 0.0
    %354 = vmatpush1.msra.mxu0 0.0
    %355 = vmatprep.subr.mxu0 0.0
    %356 = vmatpush1.msra.mxu0 0.0
    %357 = vmatprep.subr.mxu0 0.0
    %358 = vmatpush1.msra.mxu0 0.0
    %359 = vmatprep.subr.mxu0 0.0
    %360 = vmatpush1.msra.mxu0 0.0
    %361 = vmatprep.subr.mxu0 0.0
    %362 = vmatpush1.msra.mxu0 0.0
    %363 = vmatprep.subr.mxu0 0.0
    %364 = vmatpush1.msra.mxu0 0.0
    %365 = vmatprep.subr.mxu0 0.0
    %366 = vmatpush1.msra.mxu0 0.0
    %367 = vmatprep.subr.mxu0 0.0
    %368 = vmatpush1.msra.mxu0 0.0
    %369 = vmatprep.subr.mxu0 0.0
    %370 = vmatpush1.msra.mxu0 0.0
    %371 = vmatprep.subr.mxu0 0.0
    %372 = vmatpush1.msra.mxu0 0.0
    %373 = vmatprep.subr.mxu0 0.0
    %374 = vmatpush1.msra.mxu0 0.0
    %375 = vmatprep.subr.mxu0 0.0
    %376 = vmatpush1.msra.mxu0 0.0
    %377 = vmatprep.subr.mxu0 0.0
    %378 = vmatpush1.msra.mxu0 0.0
    %379 = vmatprep.subr.mxu0 0.0
    %380 = vmatpush1.msra.mxu0 0.0
    %381 = vmatprep.mubr.f32.mxu0 0.0
    %382 = vmatmul.mubr.f32.gmra.mrb[0].mxu0 %v231
    %v383 = vpop.f32.mrb[0].mxu0
    %v384 = vadd.f32 %v315, %v383
    %v385 = vpop.f32.mrb[0].mxu0
    %386 = vmatprep.mubr.f32.mxu0 0.0
    %387 = vmatmul.mubr.f32.gmra.mrb[0].mxu0 %v234
    %v388 = vpop.f32.mrb[0].mxu0
    %v389 = vadd.f32 %v315, %v388
    %v390 = vpop.f32.mrb[0].mxu0
    %391 = vdwg.mxu0
    %v393 = vlaneseq
    %v394 = vshrl.u32 %v393, 7
    %v395 = vsub.s32 0, %v394
    %v396 = vrot.slane %v199, %v395
    %398 = vmatprep.subr.mxu0 0.0
    %399 = vmatpush1.msra.mxu0 %v195
    %400 = vmatprep.subr.mxu0 0.0
    %401 = vmatpush1.msra.mxu0 %v196
    %402 = vmatprep.subr.mxu0 0.0
    %403 = vmatpush1.msra.mxu0 %v197
    %404 = vmatprep.subr.mxu0 0.0
    %405 = vmatpush1.msra.mxu0 %v198
    %406 = vmatprep.subr.mxu0 0.0
    %407 = vmatpush1.msra.mxu0 0.0
    %408 = vmatprep.subr.mxu0 0.0
    %409 = vmatpush1.msra.mxu0 0.0
    %410 = vmatprep.subr.mxu0 0.0
    %411 = vmatpush1.msra.mxu0 0.0
    %412 = vmatprep.subr.mxu0 0.0
    %413 = vmatpush1.msra.mxu0 0.0
    %414 = vmatprep.subr.mxu0 0.0
    %415 = vmatpush1.msra.mxu0 0.0
    %416 = vmatprep.subr.mxu0 0.0
    %417 = vmatpush1.msra.mxu0 0.0
    %418 = vmatprep.subr.mxu0 0.0
    %419 = vmatpush1.msra.mxu0 0.0
    %420 = vmatprep.subr.mxu0 0.0
    %421 = vmatpush1.msra.mxu0 0.0
    %422 = vmatprep.subr.mxu0 0.0
    %423 = vmatpush1.msra.mxu0 0.0
    %424 = vmatprep.subr.mxu0 0.0
    %425 = vmatpush1.msra.mxu0 0.0
    %426 = vmatprep.subr.mxu0 0.0
    %427 = vmatpush1.msra.mxu0 0.0
    %428 = vmatprep.subr.mxu0 0.0
    %429 = vmatpush1.msra.mxu0 0.0
    %430 = vmatprep.subr.mxu0 0.0
    %431 = vmatpush1.msra.mxu0 0.0
    %432 = vmatprep.subr.mxu0 0.0
    %433 = vmatpush1.msra.mxu0 0.0
    %434 = vmatprep.subr.mxu0 0.0
    %435 = vmatpush1.msra.mxu0 0.0
    %436 = vmatprep.subr.mxu0 0.0
    %437 = vmatpush1.msra.mxu0 0.0
    %438 = vmatprep.subr.mxu0 0.0
    %439 = vmatpush1.msra.mxu0 0.0
    %440 = vmatprep.subr.mxu0 0.0
    %441 = vmatpush1.msra.mxu0 0.0
    %442 = vmatprep.subr.mxu0 0.0
    %443 = vmatpush1.msra.mxu0 0.0
    %444 = vmatprep.subr.mxu0 0.0
    %445 = vmatpush1.msra.mxu0 0.0
    %446 = vmatprep.subr.mxu0 0.0
    %447 = vmatpush1.msra.mxu0 0.0
    %448 = vmatprep.subr.mxu0 0.0
    %449 = vmatpush1.msra.mxu0 0.0
    %450 = vmatprep.subr.mxu0 0.0
    %451 = vmatpush1.msra.mxu0 0.0
    %452 = vmatprep.subr.mxu0 0.0
    %453 = vmatpush1.msra.mxu0 0.0
    %454 = vmatprep.subr.mxu0 0.0
    %455 = vmatpush1.msra.mxu0 0.0
    %456 = vmatprep.subr.mxu0 0.0
    %457 = vmatpush1.msra.mxu0 0.0
    %458 = vmatprep.subr.mxu0 0.0
    %459 = vmatpush1.msra.mxu0 0.0
    %460 = vmatprep.subr.mxu0 0.0
    %461 = vmatpush1.msra.mxu0 0.0
    %462 = vmatprep.mubr.f32.mxu0 0.0
    %463 = vmatmul.mubr.f32.gmra.mrb[0].mxu0 %v231
    %v464 = vpop.f32.mrb[0].mxu0
    %v465 = vadd.f32 %v396, %v464
    %v466 = vpop.f32.mrb[0].mxu0
    %467 = vmatprep.mubr.f32.mxu0 0.0
    %468 = vmatmul.mubr.f32.gmra.mrb[0].mxu0 %v234
    %v469 = vpop.f32.mrb[0].mxu0
    %v470 = vadd.f32 %v396, %v469
    %v471 = vpop.f32.mrb[0].mxu0
    %472 = vdwg.mxu0
    %vm473 = vcmask 130048
    %v475 = vsel %vm473, %v303, 0
    %v478 = vsel %vm473, %v384, 0
    %480 = vmatprep.subr.mxu0 0.0
    %481 = vmatpush1.xpose.msra.mxu0 %v478
    %482 = vmatprep.subr.mxu0 0.0
    %483 = vmatpush1.xpose.msra.mxu0 0.0
    %484 = vmatprep.subr.mxu0 0.0
    %485 = vmatpush1.xpose.msra.mxu0 0.0
    %486 = vmatprep.subr.mxu0 0.0
    %487 = vmatpush1.xpose.msra.mxu0 0.0
    %488 = vmatprep.subr.mxu0 0.0
    %489 = vmatpush1.xpose.msra.mxu0 0.0
    %490 = vmatprep.subr.mxu0 0.0
    %491 = vmatpush1.xpose.msra.mxu0 0.0
    %492 = vmatprep.subr.mxu0 0.0
    %493 = vmatpush1.xpose.msra.mxu0 0.0
    %494 = vmatprep.subr.mxu0 0.0
    %495 = vmatpush1.xpose.msra.mxu0 0.0
    %496 = vmatprep.subr.mxu0 0.0
    %497 = vmatpush1.xpose.msra.mxu0 0.0
    %498 = vmatprep.subr.mxu0 0.0
    %499 = vmatpush1.xpose.msra.mxu0 0.0
    %500 = vmatprep.subr.mxu0 0.0
    %501 = vmatpush1.xpose.msra.mxu0 0.0
    %502 = vmatprep.subr.mxu0 0.0
    %503 = vmatpush1.xpose.msra.mxu0 0.0
    %504 = vmatprep.subr.mxu0 0.0
    %505 = vmatpush1.xpose.msra.mxu0 0.0
    %506 = vmatprep.subr.mxu0 0.0
    %507 = vmatpush1.xpose.msra.mxu0 0.0
    %508 = vmatprep.subr.mxu0 0.0
    %509 = vmatpush1.xpose.msra.mxu0 0.0
    %510 = vmatprep.subr.mxu0 0.0
    %511 = vmatpush1.xpose.msra.mxu0 0.0
    %512 = vmatprep.subr.mxu0 0.0
    %513 = vmatpush1.xpose.msra.mxu0 0.0
    %514 = vmatprep.subr.mxu0 0.0
    %515 = vmatpush1.xpose.msra.mxu0 0.0
    %516 = vmatprep.subr.mxu0 0.0
    %517 = vmatpush1.xpose.msra.mxu0 0.0
    %518 = vmatprep.subr.mxu0 0.0
    %519 = vmatpush1.xpose.msra.mxu0 0.0
    %520 = vmatprep.subr.mxu0 0.0
    %521 = vmatpush1.xpose.msra.mxu0 0.0
    %522 = vmatprep.subr.mxu0 0.0
    %523 = vmatpush1.xpose.msra.mxu0 0.0
    %524 = vmatprep.subr.mxu0 0.0
    %525 = vmatpush1.xpose.msra.mxu0 0.0
    %526 = vmatprep.subr.mxu0 0.0
    %527 = vmatpush1.xpose.msra.mxu0 0.0
    %528 = vmatprep.subr.mxu0 0.0
    %529 = vmatpush1.xpose.msra.mxu0 0.0
    %530 = vmatprep.subr.mxu0 0.0
    %531 = vmatpush1.xpose.msra.mxu0 0.0
    %532 = vmatprep.subr.mxu0 0.0
    %533 = vmatpush1.xpose.msra.mxu0 0.0
    %534 = vmatprep.subr.mxu0 0.0
    %535 = vmatpush1.xpose.msra.mxu0 0.0
    %536 = vmatprep.subr.mxu0 0.0
    %537 = vmatpush1.xpose.msra.mxu0 0.0
    %538 = vmatprep.subr.mxu0 0.0
    %539 = vmatpush1.xpose.msra.mxu0 0.0
    %540 = vmatprep.subr.mxu0 0.0
    %541 = vmatpush1.xpose.msra.mxu0 0.0
    %542 = vmatprep.subr.mxu0 0.0
    %543 = vmatpush1.xpose.msra.mxu0 0.0
    %544 = vmatprep.mubr.f32.mxu0 0.0
    %545 = vmatmul.mubr.f32.gmra.mrb[0].mxu0 %v475
    %v546 = vpop.f32.mrb[0].mxu0
    %v547 = vadd.f32 0.0, %v546
    %v548 = vpop.f32.mrb[0].mxu0
    %549 = vdwg.mxu0
    %v550 = vmul.f32 %v547, 0.25
    %v551 = vlaneseq
    %v552 = vshrl.u32 %v551, 7
    %v553 = vsub.s32 0, %v552
    %v554 = vrot.slane %v184, %v553
    %v555 = vadd.f32 %v550, %v554
    %vm556 = vcmask 64512
    %v557 = vsel %vm556, %v555, -inf
    %558 = vmax.xlane.f32.xlu0 %v557
    %v559 = vpop.xlane.xlu0 %558
    %v560 = vsub.f32 %v555, %v559
    %v561 = vmul.f32 %v560, 1.442695
    %v562 = vpow.pop %v561
    %v563 = vsel %vm556, %v562, 0.0
    %564 = vadd.xlane.f32.xlu0 %v563
    %v565 = vpop.xlane.xlu0 %564
    %v566 = vrcp.pop %v565
    %v567 = vmul.f32 %v562, %v566
    %v569 = vsel %vm556, %v567, 0
    %571 = vmatprep.subr.mxu0 0.0
    %572 = vmatpush1.msra.mxu0 %v465
    %573 = vmatprep.subr.mxu0 0.0
    %574 = vmatpush1.msra.mxu0 0.0
    %575 = vmatprep.subr.mxu0 0.0
    %576 = vmatpush1.msra.mxu0 0.0
    %577 = vmatprep.subr.mxu0 0.0
    %578 = vmatpush1.msra.mxu0 0.0
    %579 = vmatprep.subr.mxu0 0.0
    %580 = vmatpush1.msra.mxu0 0.0
    %581 = vmatprep.subr.mxu0 0.0
    %582 = vmatpush1.msra.mxu0 0.0
    %583 = vmatprep.subr.mxu0 0.0
    %584 = vmatpush1.msra.mxu0 0.0
    %585 = vmatprep.subr.mxu0 0.0
    %586 = vmatpush1.msra.mxu0 0.0
    %587 = vmatprep.subr.mxu0 0.0
    %588 = vmatpush1.msra.mxu0 0.0
    %589 = vmatprep.subr.mxu0 0.0
    %590 = vmatpush1.msra.mxu0 0.0
    %591 = vmatprep.subr.mxu0 0.0
    %592 = vmatpush1.msra.mxu0 0.0
    %593 = vmatprep.subr.mxu0 0.0
    %594 = vmatpush1.msra.mxu0 0.0
    %595 = vmatprep.subr.mxu0 0.0
    %596 = vmatpush1.msra.mxu0 0.0
    %597 = vmatprep.subr.mxu0 0.0
    %598 = vmatpush1.msra.mxu0 0.0
    %599 = vmatprep.subr.mxu0 0.0
    %600 = vmatpush1.msra.mxu0 0.0
    %601 = vmatprep.subr.mxu0 0.0
    %602 = vmatpush1.msra.mxu0 0.0
    %603 = vmatprep.subr.mxu0 0.0
    %604 = vmatpush1.msra.mxu0 0.0
    %605 = vmatprep.subr.mxu0 0.0
    %606 = vmatpush1.msra.mxu0 0.0
    %607 = vmatprep.subr.mxu0 0.0
    %608 = vmatpush1.msra.mxu0 0.0
    %609 = vmatprep.subr.mxu0 0.0
    %610 = vmatpush1.msra.mxu0 0.0
    %611 = vmatprep.subr.mxu0 0.0
    %612 = vmatpush1.msra.mxu0 0.0
    %613 = vmatprep.subr.mxu0 0.0
    %614 = vmatpush1.msra.mxu0 0.0
    %615 = vmatprep.subr.mxu0 0.0
    %616 = vmatpush1.msra.mxu0 0.0
    %617 = vmatprep.subr.mxu0 0.0
    %618 = vmatpush1.msra.mxu0 0.0
    %619 = vmatprep.subr.mxu0 0.0
    %620 = vmatpush1.msra.mxu0 0.0
    %621 = vmatprep.subr.mxu0 0.0
    %622 = vmatpush1.msra.mxu0 0.0
    %623 = vmatprep.subr.mxu0 0.0
    %624 = vmatpush1.msra.mxu0 0.0
    %625 = vmatprep.subr.mxu0 0.0
    %626 = vmatpush1.msra.mxu0 0.0
    %627 = vmatprep.subr.mxu0 0.0
    %628 = vmatpush1.msra.mxu0 0.0
    %629 = vmatprep.subr.mxu0 0.0
    %630 = vmatpush1.msra.mxu0 0.0
    %631 = vmatprep.subr.mxu0 0.0
    %632 = vmatpush1.msra.mxu0 0.0
    %633 = vmatprep.subr.mxu0 0.0
    %634 = vmatpush1.msra.mxu0 0.0
    %635 = vmatprep.mubr.f32.mxu0 0.0
    %636 = vmatmul.mubr.f32.gmra.mrb[0].mxu0 %v569
    %v637 = vpop.f32.mrb[0].mxu0
    %v638 = vadd.f32 0.0, %v637
    %v639 = vpop.f32.mrb[0].mxu0
    %640 = vdwg.mxu0
    %641 = vrot.lane.b32.xlu0 %v303, 112
    %v642 = vpop.permute.xlu0 %641
    %643 = vrot.lane.b32.xlu0 %v384, 112
    %v644 = vpop.permute.xlu0 %643
    %v645 = vsel %vm473, %v642, 0
    %v647 = vsel %vm473, %v644, 0
    %649 = vmatprep.subr.mxu0 0.0
    %650 = vmatpush1.xpose.msra.mxu0 %v647
    %651 = vmatprep.subr.mxu0 0.0
    %652 = vmatpush1.xpose.msra.mxu0 0.0
    %653 = vmatprep.subr.mxu0 0.0
    %654 = vmatpush1.xpose.msra.mxu0 0.0
    %655 = vmatprep.subr.mxu0 0.0
    %656 = vmatpush1.xpose.msra.mxu0 0.0
    %657 = vmatprep.subr.mxu0 0.0
    %658 = vmatpush1.xpose.msra.mxu0 0.0
    %659 = vmatprep.subr.mxu0 0.0
    %660 = vmatpush1.xpose.msra.mxu0 0.0
    %661 = vmatprep.subr.mxu0 0.0
    %662 = vmatpush1.xpose.msra.mxu0 0.0
    %663 = vmatprep.subr.mxu0 0.0
    %664 = vmatpush1.xpose.msra.mxu0 0.0
    %665 = vmatprep.subr.mxu0 0.0
    %666 = vmatpush1.xpose.msra.mxu0 0.0
    %667 = vmatprep.subr.mxu0 0.0
    %668 = vmatpush1.xpose.msra.mxu0 0.0
    %669 = vmatprep.subr.mxu0 0.0
    %670 = vmatpush1.xpose.msra.mxu0 0.0
    %671 = vmatprep.subr.mxu0 0.0
    %672 = vmatpush1.xpose.msra.mxu0 0.0
    %673 = vmatprep.subr.mxu0 0.0
    %674 = vmatpush1.xpose.msra.mxu0 0.0
    %675 = vmatprep.subr.mxu0 0.0
    %676 = vmatpush1.xpose.msra.mxu0 0.0
    %677 = vmatprep.subr.mxu0 0.0
    %678 = vmatpush1.xpose.msra.mxu0 0.0
    %679 = vmatprep.subr.mxu0 0.0
    %680 = vmatpush1.xpose.msra.mxu0 0.0
    %681 = vmatprep.subr.mxu0 0.0
    %682 = vmatpush1.xpose.msra.mxu0 0.0
    %683 = vmatprep.subr.mxu0 0.0
    %684 = vmatpush1.xpose.msra.mxu0 0.0
    %685 = vmatprep.subr.mxu0 0.0
    %686 = vmatpush1.xpose.msra.mxu0 0.0
    %687 = vmatprep.subr.mxu0 0.0
    %688 = vmatpush1.xpose.msra.mxu0 0.0
    %689 = vmatprep.subr.mxu0 0.0
    %690 = vmatpush1.xpose.msra.mxu0 0.0
    %691 = vmatprep.subr.mxu0 0.0
    %692 = vmatpush1.xpose.msra.mxu0 0.0
    %693 = vmatprep.subr.mxu0 0.0
    %694 = vmatpush1.xpose.msra.mxu0 0.0
    %695 = vmatprep.subr.mxu0 0.0
    %696 = vmatpush1.xpose.msra.mxu0 0.0
    %697 = vmatprep.subr.mxu0 0.0
    %698 = vmatpush1.xpose.msra.mxu0 0.0
    %699 = vmatprep.subr.mxu0 0.0
    %700 = vmatpush1.xpose.msra.mxu0 0.0
    %701 = vmatprep.subr.mxu0 0.0
    %702 = vmatpush1.xpose.msra.mxu0 0.0
    %703 = vmatprep.subr.mxu0 0.0
    %704 = vmatpush1.xpose.msra.mxu0 0.0
    %705 = vmatprep.subr.mxu0 0.0
    %706 = vmatpush1.xpose.msra.mxu0 0.0
    %707 = vmatprep.subr.mxu0 0.0
    %708 = vmatpush1.xpose.msra.mxu0 0.0
    %709 = vmatprep.subr.mxu0 0.0
    %710 = vmatpush1.xpose.msra.mxu0 0.0
    %711 = vmatprep.subr.mxu0 0.0
    %712 = vmatpush1.xpose.msra.mxu0 0.0
    %713 = vmatprep.mubr.f32.mxu0 0.0
    %714 = vmatmul.mubr.f32.gmra.mrb[0].mxu0 %v645
    %v715 = vpop.f32.mrb[0].mxu0
    %v716 = vadd.f32 0.0, %v715
    %v717 = vpop.f32.mrb[0].mxu0
    %718 = vdwg.mxu0
    %v719 = vmul.f32 %v716, 0.25
    %v720 = vadd.f32 %v719, %v554
    %v721 = vsel %vm556, %v720, -inf
    %722 = vmax.xlane.f32.xlu0 %v721
    %v723 = vpop.xlane.xlu0 %722
    %v724 = vsub.f32 %v720, %v723
    %v725 = vmul.f32 %v724, 1.442695
    %v726 = vpow.pop %v725
    %v727 = vsel %vm556, %v726, 0.0
    %728 = vadd.xlane.f32.xlu0 %v727
    %v729 = vpop.xlane.xlu0 %728
    %v730 = vrcp.pop %v729
    %v731 = vmul.f32 %v726, %v730
    %733 = vrot.lane.b32.xlu0 %v465, 112
    %v734 = vpop.permute.xlu0 %733
    %v737 = vsel %vm556, %v731, 0
    %739 = vmatprep.subr.mxu0 0.0
    %740 = vmatpush1.msra.mxu0 %v734
    %741 = vmatprep.subr.mxu0 0.0
    %742 = vmatpush1.msra.mxu0 0.0
    %743 = vmatprep.subr.mxu0 0.0
    %744 = vmatpush1.msra.mxu0 0.0
    %745 = vmatprep.subr.mxu0 0.0
    %746 = vmatpush1.msra.mxu0 0.0
    %747 = vmatprep.subr.mxu0 0.0
    %748 = vmatpush1.msra.mxu0 0.0
    %749 = vmatprep.subr.mxu0 0.0
    %750 = vmatpush1.msra.mxu0 0.0
    %751 = vmatprep.subr.mxu0 0.0
    %752 = vmatpush1.msra.mxu0 0.0
    %753 = vmatprep.subr.mxu0 0.0
    %754 = vmatpush1.msra.mxu0 0.0
    %755 = vmatprep.subr.mxu0 0.0
    %756 = vmatpush1.msra.mxu0 0.0
    %757 = vmatprep.subr.mxu0 0.0
    %758 = vmatpush1.msra.mxu0 0.0
    %759 = vmatprep.subr.mxu0 0.0
    %760 = vmatpush1.msra.mxu0 0.0
    %761 = vmatprep.subr.mxu0 0.0
    %762 = vmatpush1.msra.mxu0 0.0
    %763 = vmatprep.subr.mxu0 0.0
    %764 = vmatpush1.msra.mxu0 0.0
    %765 = vmatprep.subr.mxu0 0.0
    %766 = vmatpush1.msra.mxu0 0.0
    %767 = vmatprep.subr.mxu0 0.0
    %768 = vmatpush1.msra.mxu0 0.0
    %769 = vmatprep.subr.mxu0 0.0
    %770 = vmatpush1.msra.mxu0 0.0
    %771 = vmatprep.subr.mxu0 0.0
    %772 = vmatpush1.msra.mxu0 0.0
    %773 = vmatprep.subr.mxu0 0.0
    %774 = vmatpush1.msra.mxu0 0.0
    %775 = vmatprep.subr.mxu0 0.0
    %776 = vmatpush1.msra.mxu0 0.0
    %777 = vmatprep.subr.mxu0 0.0
    %778 = vmatpush1.msra.mxu0 0.0
    %779 = vmatprep.subr.mxu0 0.0
    %780 = vmatpush1.msra.mxu0 0.0
    %781 = vmatprep.subr.mxu0 0.0
    %782 = vmatpush1.msra.mxu0 0.0
    %783 = vmatprep.subr.mxu0 0.0
    %784 = vmatpush1.msra.mxu0 0.0
    %785 = vmatprep.subr.mxu0 0.0
    %786 = vmatpush1.msra.mxu0 0.0
    %787 = vmatprep.subr.mxu0 0.0
    %788 = vmatpush1.msra.mxu0 0.0
    %789 = vmatprep.subr.mxu0 0.0
    %790 = vmatpush1.msra.mxu0 0.0
    %791 = vmatprep.subr.mxu0 0.0
    %792 = vmatpush1.msra.mxu0 0.0
    %793 = vmatprep.subr.mxu0 0.0
    %794 = vmatpush1.msra.mxu0 0.0
    %795 = vmatprep.subr.mxu0 0.0
    %796 = vmatpush1.msra.mxu0 0.0
    %797 = vmatprep.subr.mxu0 0.0
    %798 = vmatpush1.msra.mxu0 0.0
    %799 = vmatprep.subr.mxu0 0.0
    %800 = vmatpush1.msra.mxu0 0.0
    %801 = vmatprep.subr.mxu0 0.0
    %802 = vmatpush1.msra.mxu0 0.0
    %803 = vmatprep.mubr.f32.mxu0 0.0
    %804 = vmatmul.mubr.f32.gmra.mrb[0].mxu0 %v737
    %v805 = vpop.f32.mrb[0].mxu0
    %v806 = vadd.f32 0.0, %v805
    %v807 = vpop.f32.mrb[0].mxu0
    %808 = vdwg.mxu0
    %v810 = vsel %vm473, %v806, 0
    %812 = vmatprep.subr.mxu0 0.0
    %813 = vmatpush1.msra.mxu0 %v202
    %814 = vmatprep.subr.mxu0 0.0
    %815 = vmatpush1.msra.mxu0 %v203
    %816 = vmatprep.subr.mxu0 0.0
    %817 = vmatpush1.msra.mxu0 0.0
    %818 = vmatprep.subr.mxu0 0.0
    %819 = vmatpush1.msra.mxu0 0.0
    %820 = vmatprep.subr.mxu0 0.0
    %821 = vmatpush1.msra.mxu0 0.0
    %822 = vmatprep.subr.mxu0 0.0
    %823 = vmatpush1.msra.mxu0 0.0
    %824 = vmatprep.subr.mxu0 0.0
    %825 = vmatpush1.msra.mxu0 0.0
    %826 = vmatprep.subr.mxu0 0.0
    %827 = vmatpush1.msra.mxu0 0.0
    %828 = vmatprep.subr.mxu0 0.0
    %829 = vmatpush1.msra.mxu0 0.0
    %830 = vmatprep.subr.mxu0 0.0
    %831 = vmatpush1.msra.mxu0 0.0
    %832 = vmatprep.subr.mxu0 0.0
    %833 = vmatpush1.msra.mxu0 0.0
    %834 = vmatprep.subr.mxu0 0.0
    %835 = vmatpush1.msra.mxu0 0.0
    %836 = vmatprep.subr.mxu0 0.0
    %837 = vmatpush1.msra.mxu0 0.0
    %838 = vmatprep.subr.mxu0 0.0
    %839 = vmatpush1.msra.mxu0 0.0
    %840 = vmatprep.subr.mxu0 0.0
    %841 = vmatpush1.msra.mxu0 0.0
    %842 = vmatprep.subr.mxu0 0.0
    %843 = vmatpush1.msra.mxu0 0.0
    %844 = vmatprep.subr.mxu0 0.0
    %845 = vmatpush1.msra.mxu0 0.0
    %846 = vmatprep.subr.mxu0 0.0
    %847 = vmatpush1.msra.mxu0 0.0
    %848 = vmatprep.subr.mxu0 0.0
    %849 = vmatpush1.msra.mxu0 0.0
    %850 = vmatprep.subr.mxu0 0.0
    %851 = vmatpush1.msra.mxu0 0.0
    %852 = vmatprep.subr.mxu0 0.0
    %853 = vmatpush1.msra.mxu0 0.0
    %854 = vmatprep.subr.mxu0 0.0
    %855 = vmatpush1.msra.mxu0 0.0
    %856 = vmatprep.subr.mxu0 0.0
    %857 = vmatpush1.msra.mxu0 0.0
    %858 = vmatprep.subr.mxu0 0.0
    %859 = vmatpush1.msra.mxu0 0.0
    %860 = vmatprep.subr.mxu0 0.0
    %861 = vmatpush1.msra.mxu0 0.0
    %862 = vmatprep.subr.mxu0 0.0
    %863 = vmatpush1.msra.mxu0 0.0
    %864 = vmatprep.subr.mxu0 0.0
    %865 = vmatpush1.msra.mxu0 0.0
    %866 = vmatprep.subr.mxu0 0.0
    %867 = vmatpush1.msra.mxu0 0.0
    %868 = vmatprep.subr.mxu0 0.0
    %869 = vmatpush1.msra.mxu0 0.0
    %870 = vmatprep.subr.mxu0 0.0
    %871 = vmatpush1.msra.mxu0 0.0
    %872 = vmatprep.subr.mxu0 0.0
    %873 = vmatpush1.msra.mxu0 0.0
    %874 = vmatprep.subr.mxu0 0.0
    %875 = vmatpush1.msra.mxu0 0.0
    %876 = vmatprep.mubr.f32.mxu0 0.0
    %877 = vmatmul.mubr.f32.gmra.mrb[0].mxu0 %v810
    %v878 = vpop.f32.mrb[0].mxu0
    %v879 = vadd.f32 0.0, %v878
    %v880 = vpop.f32.mrb[0].mxu0
    %881 = vdwg.mxu0
    %v883 = vsel %vm473, %v638, 0
    %885 = vmatprep.subr.mxu0 0.0
    %886 = vmatpush1.msra.mxu0 %v200
    %887 = vmatprep.subr.mxu0 0.0
    %888 = vmatpush1.msra.mxu0 %v201
    %889 = vmatprep.subr.mxu0 0.0
    %890 = vmatpush1.msra.mxu0 0.0
    %891 = vmatprep.subr.mxu0 0.0
    %892 = vmatpush1.msra.mxu0 0.0
    %893 = vmatprep.subr.mxu0 0.0
    %894 = vmatpush1.msra.mxu0 0.0
    %895 = vmatprep.subr.mxu0 0.0
    %896 = vmatpush1.msra.mxu0 0.0
    %897 = vmatprep.subr.mxu0 0.0
    %898 = vmatpush1.msra.mxu0 0.0
    %899 = vmatprep.subr.mxu0 0.0
    %900 = vmatpush1.msra.mxu0 0.0
    %901 = vmatprep.subr.mxu0 0.0
    %902 = vmatpush1.msra.mxu0 0.0
    %903 = vmatprep.subr.mxu0 0.0
    %904 = vmatpush1.msra.mxu0 0.0
    %905 = vmatprep.subr.mxu0 0.0
    %906 = vmatpush1.msra.mxu0 0.0
    %907 = vmatprep.subr.mxu0 0.0
    %908 = vmatpush1.msra.mxu0 0.0
    %909 = vmatprep.subr.mxu0 0.0
    %910 = vmatpush1.msra.mxu0 0.0
    %911 = vmatprep.subr.mxu0 0.0
    %912 = vmatpush1.msra.mxu0 0.0
    %913 = vmatprep.subr.mxu0 0.0
    %914 = vmatpush1.msra.mxu0 0.0
    %915 = vmatprep.subr.mxu0 0.0
    %916 = vmatpush1.msra.mxu0 0.0
    %917 = vmatprep.subr.mxu0 0.0
    %918 = vmatpush1.msra.mxu0 0.0
    %919 = vmatprep.subr.mxu0 0.0
    %920 = vmatpush1.msra.mxu0 0.0
    %921 = vmatprep.subr.mxu0 0.0
    %922 = vmatpush1.msra.mxu0 0.0
    %923 = vmatprep.subr.mxu0 0.0
    %924 = vmatpush1.msra.mxu0 0.0
    %925 = vmatprep.subr.mxu0 0.0
    %926 = vmatpush1.msra.mxu0 0.0
    %927 = vmatprep.subr.mxu0 0.0
    %928 = vmatpush1.msra.mxu0 0.0
    %929 = vmatprep.subr.mxu0 0.0
    %930 = vmatpush1.msra.mxu0 0.0
    %931 = vmatprep.subr.mxu0 0.0
    %932 = vmatpush1.msra.mxu0 0.0
    %933 = vmatprep.subr.mxu0 0.0
    %934 = vmatpush1.msra.mxu0 0.0
    %935 = vmatprep.subr.mxu0 0.0
    %936 = vmatpush1.msra.mxu0 0.0
    %937 = vmatprep.subr.mxu0 0.0
    %938 = vmatpush1.msra.mxu0 0.0
    %939 = vmatprep.subr.mxu0 0.0
    %940 = vmatpush1.msra.mxu0 0.0
    %941 = vmatprep.subr.mxu0 0.0
    %942 = vmatpush1.msra.mxu0 0.0
    %943 = vmatprep.subr.mxu0 0.0
    %944 = vmatpush1.msra.mxu0 0.0
    %945 = vmatprep.subr.mxu0 0.0
    %946 = vmatpush1.msra.mxu0 0.0
    %947 = vmatprep.subr.mxu0 0.0
    %948 = vmatpush1.msra.mxu0 0.0
    %949 = vmatprep.mubr.f32.mxu0 0.0
    %950 = vmatmul.mubr.f32.gmra.mrb[0].mxu0 %v883
    %v951 = vpop.f32.mrb[0].mxu0
    %v952 = vadd.f32 %v879, %v951
    %v953 = vpop.f32.mrb[0].mxu0
    %954 = vdwg.mxu0
    %v956 = vlaneseq
    %v957 = vshrl.u32 %v956, 7
    %v958 = vsub.s32 0, %v957
    %v959 = vrot.slane %v204, %v958
    %v961 = vadd.f32 %v952, %v959
    %v963 = vsel %vm473, %v308, 0
    %v966 = vsel %vm473, %v389, 0
    %968 = vmatprep.subr.mxu0 0.0
    %969 = vmatpush1.xpose.msra.mxu0 %v966
    %970 = vmatprep.subr.mxu0 0.0
    %971 = vmatpush1.xpose.msra.mxu0 0.0
    %972 = vmatprep.subr.mxu0 0.0
    %973 = vmatpush1.xpose.msra.mxu0 0.0
    %974 = vmatprep.subr.mxu0 0.0
    %975 = vmatpush1.xpose.msra.mxu0 0.0
    %976 = vmatprep.subr.mxu0 0.0
    %977 = vmatpush1.xpose.msra.mxu0 0.0
    %978 = vmatprep.subr.mxu0 0.0
    %979 = vmatpush1.xpose.msra.mxu0 0.0
    %980 = vmatprep.subr.mxu0 0.0
    %981 = vmatpush1.xpose.msra.mxu0 0.0
    %982 = vmatprep.subr.mxu0 0.0
    %983 = vmatpush1.xpose.msra.mxu0 0.0
    %984 = vmatprep.subr.mxu0 0.0
    %985 = vmatpush1.xpose.msra.mxu0 0.0
    %986 = vmatprep.subr.mxu0 0.0
    %987 = vmatpush1.xpose.msra.mxu0 0.0
    %988 = vmatprep.subr.mxu0 0.0
    %989 = vmatpush1.xpose.msra.mxu0 0.0
    %990 = vmatprep.subr.mxu0 0.0
    %991 = vmatpush1.xpose.msra.mxu0 0.0
    %992 = vmatprep.subr.mxu0 0.0
    %993 = vmatpush1.xpose.msra.mxu0 0.0
    %994 = vmatprep.subr.mxu0 0.0
    %995 = vmatpush1.xpose.msra.mxu0 0.0
    %996 = vmatprep.subr.mxu0 0.0
    %997 = vmatpush1.xpose.msra.mxu0 0.0
    %998 = vmatprep.subr.mxu0 0.0
    %999 = vmatpush1.xpose.msra.mxu0 0.0
    %1000 = vmatprep.subr.mxu0 0.0
    %1001 = vmatpush1.xpose.msra.mxu0 0.0
    %1002 = vmatprep.subr.mxu0 0.0
    %1003 = vmatpush1.xpose.msra.mxu0 0.0
    %1004 = vmatprep.subr.mxu0 0.0
    %1005 = vmatpush1.xpose.msra.mxu0 0.0
    %1006 = vmatprep.subr.mxu0 0.0
    %1007 = vmatpush1.xpose.msra.mxu0 0.0
    %1008 = vmatprep.subr.mxu0 0.0
    %1009 = vmatpush1.xpose.msra.mxu0 0.0
    %1010 = vmatprep.subr.mxu0 0.0
    %1011 = vmatpush1.xpose.msra.mxu0 0.0
    %1012 = vmatprep.subr.mxu0 0.0
    %1013 = vmatpush1.xpose.msra.mxu0 0.0
    %1014 = vmatprep.subr.mxu0 0.0
    %1015 = vmatpush1.xpose.msra.mxu0 0.0
    %1016 = vmatprep.subr.mxu0 0.0
    %1017 = vmatpush1.xpose.msra.mxu0 0.0
    %1018 = vmatprep.subr.mxu0 0.0
    %1019 = vmatpush1.xpose.msra.mxu0 0.0
    %1020 = vmatprep.subr.mxu0 0.0
    %1021 = vmatpush1.xpose.msra.mxu0 0.0
    %1022 = vmatprep.subr.mxu0 0.0
    %1023 = vmatpush1.xpose.msra.mxu0 0.0
    %1024 = vmatprep.subr.mxu0 0.0
    %1025 = vmatpush1.xpose.msra.mxu0 0.0
    %1026 = vmatprep.subr.mxu0 0.0
    %1027 = vmatpush1.xpose.msra.mxu0 0.0
    %1028 = vmatprep.subr.mxu0 0.0
    %1029 = vmatpush1.xpose.msra.mxu0 0.0
    %1030 = vmatprep.subr.mxu0 0.0
    %1031 = vmatpush1.xpose.msra.mxu0 0.0
    %1032 = vmatprep.mubr.f32.mxu0 0.0
    %1033 = vmatmul.mubr.f32.gmra.mrb[0].mxu0 %v963
    %v1034 = vpop.f32.mrb[0].mxu0
    %v1035 = vadd.f32 0.0, %v1034
    %v1036 = vpop.f32.mrb[0].mxu0
    %1037 = vdwg.mxu0
    %v1038 = vmul.f32 %v1035, 0.25
    %v1039 = vlaneseq
    %v1040 = vshrl.u32 %v1039, 7
    %v1041 = vsub.s32 1, %v1040
    %v1042 = vrot.slane %v184, %v1041
    %v1043 = vadd.f32 %v1038, %v1042
    %v1044 = vsel %vm556, %v1043, -inf
    %1045 = vmax.xlane.f32.xlu0 %v1044
    %v1046 = vpop.xlane.xlu0 %1045
    %v1047 = vsub.f32 %v1043, %v1046
    %v1048 = vmul.f32 %v1047, 1.442695
    %v1049 = vpow.pop %v1048
    %v1050 = vsel %vm556, %v1049, 0.0
    %1051 = vadd.xlane.f32.xlu0 %v1050
    %v1052 = vpop.xlane.xlu0 %1051
    %v1053 = vrcp.pop %v1052
    %v1054 = vmul.f32 %v1049, %v1053
    %v1056 = vsel %vm556, %v1054, 0
    %1058 = vmatprep.subr.mxu0 0.0
    %1059 = vmatpush1.msra.mxu0 %v470
    %1060 = vmatprep.subr.mxu0 0.0
    %1061 = vmatpush1.msra.mxu0 0.0
    %1062 = vmatprep.subr.mxu0 0.0
    %1063 = vmatpush1.msra.mxu0 0.0
    %1064 = vmatprep.subr.mxu0 0.0
    %1065 = vmatpush1.msra.mxu0 0.0
    %1066 = vmatprep.subr.mxu0 0.0
    %1067 = vmatpush1.msra.mxu0 0.0
    %1068 = vmatprep.subr.mxu0 0.0
    %1069 = vmatpush1.msra.mxu0 0.0
    %1070 = vmatprep.subr.mxu0 0.0
    %1071 = vmatpush1.msra.mxu0 0.0
    %1072 = vmatprep.subr.mxu0 0.0
    %1073 = vmatpush1.msra.mxu0 0.0
    %1074 = vmatprep.subr.mxu0 0.0
    %1075 = vmatpush1.msra.mxu0 0.0
    %1076 = vmatprep.subr.mxu0 0.0
    %1077 = vmatpush1.msra.mxu0 0.0
    %1078 = vmatprep.subr.mxu0 0.0
    %1079 = vmatpush1.msra.mxu0 0.0
    %1080 = vmatprep.subr.mxu0 0.0
    %1081 = vmatpush1.msra.mxu0 0.0
    %1082 = vmatprep.subr.mxu0 0.0
    %1083 = vmatpush1.msra.mxu0 0.0
    %1084 = vmatprep.subr.mxu0 0.0
    %1085 = vmatpush1.msra.mxu0 0.0
    %1086 = vmatprep.subr.mxu0 0.0
    %1087 = vmatpush1.msra.mxu0 0.0
    %1088 = vmatprep.subr.mxu0 0.0
    %1089 = vmatpush1.msra.mxu0 0.0
    %1090 = vmatprep.subr.mxu0 0.0
    %1091 = vmatpush1.msra.mxu0 0.0
    %1092 = vmatprep.subr.mxu0 0.0
    %1093 = vmatpush1.msra.mxu0 0.0
    %1094 = vmatprep.subr.mxu0 0.0
    %1095 = vmatpush1.msra.mxu0 0.0
    %1096 = vmatprep.subr.mxu0 0.0
    %1097 = vmatpush1.msra.mxu0 0.0
    %1098 = vmatprep.subr.mxu0 0.0
    %1099 = vmatpush1.msra.mxu0 0.0
    %1100 = vmatprep.subr.mxu0 0.0
    %1101 = vmatpush1.msra.mxu0 0.0
    %1102 = vmatprep.subr.mxu0 0.0
    %1103 = vmatpush1.msra.mxu0 0.0
    %1104 = vmatprep.subr.mxu0 0.0
    %1105 = vmatpush1.msra.mxu0 0.0
    %1106 = vmatprep.subr.mxu0 0.0
    %1107 = vmatpush1.msra.mxu0 0.0
    %1108 = vmatprep.subr.mxu0 0.0
    %1109 = vmatpush1.msra.mxu0 0.0
    %1110 = vmatprep.subr.mxu0 0.0
    %1111 = vmatpush1.msra.mxu0 0.0
    %1112 = vmatprep.subr.mxu0 0.0
    %1113 = vmatpush1.msra.mxu0 0.0
    %1114 = vmatprep.subr.mxu0 0.0
    %1115 = vmatpush1.msra.mxu0 0.0
    %1116 = vmatprep.subr.mxu0 0.0
    %1117 = vmatpush1.msra.mxu0 0.0
    %1118 = vmatprep.subr.mxu0 0.0
    %1119 = vmatpush1.msra.mxu0 0.0
    %1120 = vmatprep.subr.mxu0 0.0
    %1121 = vmatpush1.msra.mxu0 0.0
    %1122 = vmatprep.mubr.f32.mxu0 0.0
    %1123 = vmatmul.mubr.f32.gmra.mrb[0].mxu0 %v1056
    %v1124 = vpop.f32.mrb[0].mxu0
    %v1125 = vadd.f32 0.0, %v1124
    %v1126 = vpop.f32.mrb[0].mxu0
    %1127 = vdwg.mxu0
    %1128 = vrot.lane.b32.xlu0 %v308, 112
    %v1129 = vpop.permute.xlu0 %1128
    %1130 = vrot.lane.b32.xlu0 %v389, 112
    %v1131 = vpop.permute.xlu0 %1130
    %v1132 = vsel %vm473, %v1129, 0
    %v1134 = vsel %vm473, %v1131, 0
    %1136 = vmatprep.subr.mxu0 0.0
    %1137 = vmatpush1.xpose.msra.mxu0 %v1134
    %1138 = vmatprep.subr.mxu0 0.0
    %1139 = vmatpush1.xpose.msra.mxu0 0.0
    %1140 = vmatprep.subr.mxu0 0.0
    %1141 = vmatpush1.xpose.msra.mxu0 0.0
    %1142 = vmatprep.subr.mxu0 0.0
    %1143 = vmatpush1.xpose.msra.mxu0 0.0
    %1144 = vmatprep.subr.mxu0 0.0
    %1145 = vmatpush1.xpose.msra.mxu0 0.0
    %1146 = vmatprep.subr.mxu0 0.0
    %1147 = vmatpush1.xpose.msra.mxu0 0.0
    %1148 = vmatprep.subr.mxu0 0.0
    %1149 = vmatpush1.xpose.msra.mxu0 0.0
    %1150 = vmatprep.subr.mxu0 0.0
    %1151 = vmatpush1.xpose.msra.mxu0 0.0
    %1152 = vmatprep.subr.mxu0 0.0
    %1153 = vmatpush1.xpose.msra.mxu0 0.0
    %1154 = vmatprep.subr.mxu0 0.0
    %1155 = vmatpush1.xpose.msra.mxu0 0.0
    %1156 = vmatprep.subr.mxu0 0.0
    %1157 = vmatpush1.xpose.msra.mxu0 0.0
    %1158 = vmatprep.subr.mxu0 0.0
    %1159 = vmatpush1.xpose.msra.mxu0 0.0
    %1160 = vmatprep.subr.mxu0 0.0
    %1161 = vmatpush1.xpose.msra.mxu0 0.0
    %1162 = vmatprep.subr.mxu0 0.0
    %1163 = vmatpush1.xpose.msra.mxu0 0.0
    %1164 = vmatprep.subr.mxu0 0.0
    %1165 = vmatpush1.xpose.msra.mxu0 0.0
    %1166 = vmatprep.subr.mxu0 0.0
    %1167 = vmatpush1.xpose.msra.mxu0 0.0
    %1168 = vmatprep.subr.mxu0 0.0
    %1169 = vmatpush1.xpose.msra.mxu0 0.0
    %1170 = vmatprep.subr.mxu0 0.0
    %1171 = vmatpush1.xpose.msra.mxu0 0.0
    %1172 = vmatprep.subr.mxu0 0.0
    %1173 = vmatpush1.xpose.msra.mxu0 0.0
    %1174 = vmatprep.subr.mxu0 0.0
    %1175 = vmatpush1.xpose.msra.mxu0 0.0
    %1176 = vmatprep.subr.mxu0 0.0
    %1177 = vmatpush1.xpose.msra.mxu0 0.0
    %1178 = vmatprep.subr.mxu0 0.0
    %1179 = vmatpush1.xpose.msra.mxu0 0.0
    %1180 = vmatprep.subr.mxu0 0.0
    %1181 = vmatpush1.xpose.msra.mxu0 0.0
    %1182 = vmatprep.subr.mxu0 0.0
    %1183 = vmatpush1.xpose.msra.mxu0 0.0
    %1184 = vmatprep.subr.mxu0 0.0
    %1185 = vmatpush1.xpose.msra.mxu0 0.0
    %1186 = vmatprep.subr.mxu0 0.0
    %1187 = vmatpush1.xpose.msra.mxu0 0.0
    %1188 = vmatprep.subr.mxu0 0.0
    %1189 = vmatpush1.xpose.msra.mxu0 0.0
    %1190 = vmatprep.subr.mxu0 0.0
    %1191 = vmatpush1.xpose.msra.mxu0 0.0
    %1192 = vmatprep.subr.mxu0 0.0
    %1193 = vmatpush1.xpose.msra.mxu0 0.0
    %1194 = vmatprep.subr.mxu0 0.0
    %1195 = vmatpush1.xpose.msra.mxu0 0.0
    %1196 = vmatprep.subr.mxu0 0.0
    %1197 = vmatpush1.xpose.msra.mxu0 0.0
    %1198 = vmatprep.subr.mxu0 0.0
    %1199 = vmatpush1.xpose.msra.mxu0 0.0
    %1200 = vmatprep.mubr.f32.mxu0 0.0
    %1201 = vmatmul.mubr.f32.gmra.mrb[0].mxu0 %v1132
    %v1202 = vpop.f32.mrb[0].mxu0
    %v1203 = vadd.f32 0.0, %v1202
    %v1204 = vpop.f32.mrb[0].mxu0
    %1205 = vdwg.mxu0
    %v1206 = vmul.f32 %v1203, 0.25
    %v1207 = vadd.f32 %v1206, %v1042
    %v1208 = vsel %vm556, %v1207, -inf
    %1209 = vmax.xlane.f32.xlu0 %v1208
    %v1210 = vpop.xlane.xlu0 %1209
    %v1211 = vsub.f32 %v1207, %v1210
    %v1212 = vmul.f32 %v1211, 1.442695
    %v1213 = vpow.pop %v1212
    %v1214 = vsel %vm556, %v1213, 0.0
    %1215 = vadd.xlane.f32.xlu0 %v1214
    %v1216 = vpop.xlane.xlu0 %1215
    %v1217 = vrcp.pop %v1216
    %v1218 = vmul.f32 %v1213, %v1217
    %1220 = vrot.lane.b32.xlu0 %v470, 112
    %v1221 = vpop.permute.xlu0 %1220
    %v1224 = vsel %vm556, %v1218, 0
    %1226 = vmatprep.subr.mxu0 0.0
    %1227 = vmatpush1.msra.mxu0 %v1221
    %1228 = vmatprep.subr.mxu0 0.0
    %1229 = vmatpush1.msra.mxu0 0.0
    %1230 = vmatprep.subr.mxu0 0.0
    %1231 = vmatpush1.msra.mxu0 0.0
    %1232 = vmatprep.subr.mxu0 0.0
    %1233 = vmatpush1.msra.mxu0 0.0
    %1234 = vmatprep.subr.mxu0 0.0
    %1235 = vmatpush1.msra.mxu0 0.0
    %1236 = vmatprep.subr.mxu0 0.0
    %1237 = vmatpush1.msra.mxu0 0.0
    %1238 = vmatprep.subr.mxu0 0.0
    %1239 = vmatpush1.msra.mxu0 0.0
    %1240 = vmatprep.subr.mxu0 0.0
    %1241 = vmatpush1.msra.mxu0 0.0
    %1242 = vmatprep.subr.mxu0 0.0
    %1243 = vmatpush1.msra.mxu0 0.0
    %1244 = vmatprep.subr.mxu0 0.0
    %1245 = vmatpush1.msra.mxu0 0.0
    %1246 = vmatprep.subr.mxu0 0.0
    %1247 = vmatpush1.msra.mxu0 0.0
    %1248 = vmatprep.subr.mxu0 0.0
    %1249 = vmatpush1.msra.mxu0 0.0
    %1250 = vmatprep.subr.mxu0 0.0
    %1251 = vmatpush1.msra.mxu0 0.0
    %1252 = vmatprep.subr.mxu0 0.0
    %1253 = vmatpush1.msra.mxu0 0.0
    %1254 = vmatprep.subr.mxu0 0.0
    %1255 = vmatpush1.msra.mxu0 0.0
    %1256 = vmatprep.subr.mxu0 0.0
    %1257 = vmatpush1.msra.mxu0 0.0
    %1258 = vmatprep.subr.mxu0 0.0
    %1259 = vmatpush1.msra.mxu0 0.0
    %1260 = vmatprep.subr.mxu0 0.0
    %1261 = vmatpush1.msra.mxu0 0.0
    %1262 = vmatprep.subr.mxu0 0.0
    %1263 = vmatpush1.msra.mxu0 0.0
    %1264 = vmatprep.subr.mxu0 0.0
    %1265 = vmatpush1.msra.mxu0 0.0
    %1266 = vmatprep.subr.mxu0 0.0
    %1267 = vmatpush1.msra.mxu0 0.0
    %1268 = vmatprep.subr.mxu0 0.0
    %1269 = vmatpush1.msra.mxu0 0.0
    %1270 = vmatprep.subr.mxu0 0.0
    %1271 = vmatpush1.msra.mxu0 0.0
    %1272 = vmatprep.subr.mxu0 0.0
    %1273 = vmatpush1.msra.mxu0 0.0
    %1274 = vmatprep.subr.mxu0 0.0
    %1275 = vmatpush1.msra.mxu0 0.0
    %1276 = vmatprep.subr.mxu0 0.0
    %1277 = vmatpush1.msra.mxu0 0.0
    %1278 = vmatprep.subr.mxu0 0.0
    %1279 = vmatpush1.msra.mxu0 0.0
    %1280 = vmatprep.subr.mxu0 0.0
    %1281 = vmatpush1.msra.mxu0 0.0
    %1282 = vmatprep.subr.mxu0 0.0
    %1283 = vmatpush1.msra.mxu0 0.0
    %1284 = vmatprep.subr.mxu0 0.0
    %1285 = vmatpush1.msra.mxu0 0.0
    %1286 = vmatprep.subr.mxu0 0.0
    %1287 = vmatpush1.msra.mxu0 0.0
    %1288 = vmatprep.subr.mxu0 0.0
    %1289 = vmatpush1.msra.mxu0 0.0
    %1290 = vmatprep.mubr.f32.mxu0 0.0
    %1291 = vmatmul.mubr.f32.gmra.mrb[0].mxu0 %v1224
    %v1292 = vpop.f32.mrb[0].mxu0
    %v1293 = vadd.f32 0.0, %v1292
    %v1294 = vpop.f32.mrb[0].mxu0
    %1295 = vdwg.mxu0
    %v1297 = vsel %vm473, %v1293, 0
    %1299 = vmatprep.subr.mxu0 0.0
    %1300 = vmatpush1.msra.mxu0 %v202
    %1301 = vmatprep.subr.mxu0 0.0
    %1302 = vmatpush1.msra.mxu0 %v203
    %1303 = vmatprep.subr.mxu0 0.0
    %1304 = vmatpush1.msra.mxu0 0.0
    %1305 = vmatprep.subr.mxu0 0.0
    %1306 = vmatpush1.msra.mxu0 0.0
    %1307 = vmatprep.subr.mxu0 0.0
    %1308 = vmatpush1.msra.mxu0 0.0
    %1309 = vmatprep.subr.mxu0 0.0
    %1310 = vmatpush1.msra.mxu0 0.0
    %1311 = vmatprep.subr.mxu0 0.0
    %1312 = vmatpush1.msra.mxu0 0.0
    %1313 = vmatprep.subr.mxu0 0.0
    %1314 = vmatpush1.msra.mxu0 0.0
    %1315 = vmatprep.subr.mxu0 0.0
    %1316 = vmatpush1.msra.mxu0 0.0
    %1317 = vmatprep.subr.mxu0 0.0
    %1318 = vmatpush1.msra.mxu0 0.0
    %1319 = vmatprep.subr.mxu0 0.0
    %1320 = vmatpush1.msra.mxu0 0.0
    %1321 = vmatprep.subr.mxu0 0.0
    %1322 = vmatpush1.msra.mxu0 0.0
    %1323 = vmatprep.subr.mxu0 0.0
    %1324 = vmatpush1.msra.mxu0 0.0
    %1325 = vmatprep.subr.mxu0 0.0
    %1326 = vmatpush1.msra.mxu0 0.0
    %1327 = vmatprep.subr.mxu0 0.0
    %1328 = vmatpush1.msra.mxu0 0.0
    %1329 = vmatprep.subr.mxu0 0.0
    %1330 = vmatpush1.msra.mxu0 0.0
    %1331 = vmatprep.subr.mxu0 0.0
    %1332 = vmatpush1.msra.mxu0 0.0
    %1333 = vmatprep.subr.mxu0 0.0
    %1334 = vmatpush1.msra.mxu0 0.0
    %1335 = vmatprep.subr.mxu0 0.0
    %1336 = vmatpush1.msra.mxu0 0.0
    %1337 = vmatprep.subr.mxu0 0.0
    %1338 = vmatpush1.msra.mxu0 0.0
    %1339 = vmatprep.subr.mxu0 0.0
    %1340 = vmatpush1.msra.mxu0 0.0
    %1341 = vmatprep.subr.mxu0 0.0
    %1342 = vmatpush1.msra.mxu0 0.0
    %1343 = vmatprep.subr.mxu0 0.0
    %1344 = vmatpush1.msra.mxu0 0.0
    %1345 = vmatprep.subr.mxu0 0.0
    %1346 = vmatpush1.msra.mxu0 0.0
    %1347 = vmatprep.subr.mxu0 0.0
    %1348 = vmatpush1.msra.mxu0 0.0
    %1349 = vmatprep.subr.mxu0 0.0
    %1350 = vmatpush1.msra.mxu0 0.0
    %1351 = vmatprep.subr.mxu0 0.0
    %1352 = vmatpush1.msra.mxu0 0.0
    %1353 = vmatprep.subr.mxu0 0.0
    %1354 = vmatpush1.msra.mxu0 0.0
    %1355 = vmatprep.subr.mxu0 0.0
    %1356 = vmatpush1.msra.mxu0 0.0
    %1357 = vmatprep.subr.mxu0 0.0
    %1358 = vmatpush1.msra.mxu0 0.0
    %1359 = vmatprep.subr.mxu0 0.0
    %1360 = vmatpush1.msra.mxu0 0.0
    %1361 = vmatprep.subr.mxu0 0.0
    %1362 = vmatpush1.msra.mxu0 0.0
    %1363 = vmatprep.mubr.f32.mxu0 0.0
    %1364 = vmatmul.mubr.f32.gmra.mrb[0].mxu0 %v1297
    %v1365 = vpop.f32.mrb[0].mxu0
    %v1366 = vadd.f32 0.0, %v1365
    %v1367 = vpop.f32.mrb[0].mxu0
    %1368 = vdwg.mxu0
    %v1370 = vsel %vm473, %v1125, 0
    %1372 = vmatprep.subr.mxu0 0.0
    %1373 = vmatpush1.msra.mxu0 %v200
    %1374 = vmatprep.subr.mxu0 0.0
    %1375 = vmatpush1.msra.mxu0 %v201
    %1376 = vmatprep.subr.mxu0 0.0
    %1377 = vmatpush1.msra.mxu0 0.0
    %1378 = vmatprep.subr.mxu0 0.0
    %1379 = vmatpush1.msra.mxu0 0.0
    %1380 = vmatprep.subr.mxu0 0.0
    %1381 = vmatpush1.msra.mxu0 0.0
    %1382 = vmatprep.subr.mxu0 0.0
    %1383 = vmatpush1.msra.mxu0 0.0
    %1384 = vmatprep.subr.mxu0 0.0
    %1385 = vmatpush1.msra.mxu0 0.0
    %1386 = vmatprep.subr.mxu0 0.0
    %1387 = vmatpush1.msra.mxu0 0.0
    %1388 = vmatprep.subr.mxu0 0.0
    %1389 = vmatpush1.msra.mxu0 0.0
    %1390 = vmatprep.subr.mxu0 0.0
    %1391 = vmatpush1.msra.mxu0 0.0
    %1392 = vmatprep.subr.mxu0 0.0
    %1393 = vmatpush1.msra.mxu0 0.0
    %1394 = vmatprep.subr.mxu0 0.0
    %1395 = vmatpush1.msra.mxu0 0.0
    %1396 = vmatprep.subr.mxu0 0.0
    %1397 = vmatpush1.msra.mxu0 0.0
    %1398 = vmatprep.subr.mxu0 0.0
    %1399 = vmatpush1.msra.mxu0 0.0
    %1400 = vmatprep.subr.mxu0 0.0
    %1401 = vmatpush1.msra.mxu0 0.0
    %1402 = vmatprep.subr.mxu0 0.0
    %1403 = vmatpush1.msra.mxu0 0.0
    %1404 = vmatprep.subr.mxu0 0.0
    %1405 = vmatpush1.msra.mxu0 0.0
    %1406 = vmatprep.subr.mxu0 0.0
    %1407 = vmatpush1.msra.mxu0 0.0
    %1408 = vmatprep.subr.mxu0 0.0
    %1409 = vmatpush1.msra.mxu0 0.0
    %1410 = vmatprep.subr.mxu0 0.0
    %1411 = vmatpush1.msra.mxu0 0.0
    %1412 = vmatprep.subr.mxu0 0.0
    %1413 = vmatpush1.msra.mxu0 0.0
    %1414 = vmatprep.subr.mxu0 0.0
    %1415 = vmatpush1.msra.mxu0 0.0
    %1416 = vmatprep.subr.mxu0 0.0
    %1417 = vmatpush1.msra.mxu0 0.0
    %1418 = vmatprep.subr.mxu0 0.0
    %1419 = vmatpush1.msra.mxu0 0.0
    %1420 = vmatprep.subr.mxu0 0.0
    %1421 = vmatpush1.msra.mxu0 0.0
    %1422 = vmatprep.subr.mxu0 0.0
    %1423 = vmatpush1.msra.mxu0 0.0
    %1424 = vmatprep.subr.mxu0 0.0
    %1425 = vmatpush1.msra.mxu0 0.0
    %1426 = vmatprep.subr.mxu0 0.0
    %1427 = vmatpush1.msra.mxu0 0.0
    %1428 = vmatprep.subr.mxu0 0.0
    %1429 = vmatpush1.msra.mxu0 0.0
    %1430 = vmatprep.subr.mxu0 0.0
    %1431 = vmatpush1.msra.mxu0 0.0
    %1432 = vmatprep.subr.mxu0 0.0
    %1433 = vmatpush1.msra.mxu0 0.0
    %1434 = vmatprep.subr.mxu0 0.0
    %1435 = vmatpush1.msra.mxu0 0.0
    %1436 = vmatprep.mubr.f32.mxu0 0.0
    %1437 = vmatmul.mubr.f32.gmra.mrb[0].mxu0 %v1370
    %v1438 = vpop.f32.mrb[0].mxu0
    %v1439 = vadd.f32 %v1366, %v1438
    %v1440 = vpop.f32.mrb[0].mxu0
    %1441 = vdwg.mxu0
    %v1442 = vadd.f32 %v1439, %v959
    %v1443 = vadd.f32 %v180, %v961
    %v1444 = vadd.f32 %v181, %v1442
    %v1445 = vsel %vm229, %v1443, 0.0
    %1446 = vadd.xlane.f32.xlu0 %v1445
    %v1447 = vpop.xlane.xlu0 %1446
    %v1448 = vsel %vm229, %v1444, 0.0
    %1449 = vadd.xlane.f32.xlu0 %v1448
    %v1450 = vpop.xlane.xlu0 %1449
    %v1451 = vrcp.pop 32.0
    %v1452 = vmul.f32 %v1447, %v1451
    %v1453 = vmul.f32 %v1450, %v1451
    %v1454 = vsub.f32 %v1443, %v1452
    %v1455 = vsub.f32 %v1444, %v1453
    %v1456 = vmul.f32 %v1454, %v1454
    %v1457 = vmul.f32 %v1455, %v1455
    %v1458 = vsel %vm229, %v1456, 0.0
    %1459 = vadd.xlane.f32.xlu0 %v1458
    %v1460 = vpop.xlane.xlu0 %1459
    %v1461 = vsel %vm229, %v1457, 0.0
    %1462 = vadd.xlane.f32.xlu0 %v1461
    %v1463 = vpop.xlane.xlu0 %1462
    %v1464 = vmul.f32 %v1460, %v1451
    %v1465 = vmul.f32 %v1463, %v1451
    %v1466 = vadd.f32 %v1464, 1e-12
    %v1467 = vadd.f32 %v1465, 1e-12
    %v1468 = vrsqrt.pop %v1466
    %v1469 = vrsqrt.pop %v1467
    %v1470 = vmul.f32 %v1454, %v1468
    %v1471 = vmul.f32 %v1455, %v1469
    %v1473 = vlaneseq
    %v1474 = vshrl.u32 %v1473, 7
    %v1475 = vsub.s32 0, %v1474
    %v1476 = vrot.slane %v205, %v1475
    %v1478 = vmul.f32 %v1470, %v1476
    %v1479 = vmul.f32 %v1471, %v1476
    %v1481 = vlaneseq
    %v1482 = vshrl.u32 %v1481, 7
    %v1483 = vsub.s32 0, %v1482
    %v1484 = vrot.slane %v206, %v1483
    %v1486 = vadd.f32 %v1478, %v1484
    %v1487 = vadd.f32 %v1479, %v1484
    %v1489 = vlaneseq
    %v1490 = vshrl.u32 %v1489, 7
    %v1491 = vsub.s32 0, %v1490
    %v1492 = vrot.slane %v211, %v1491
    %v1495 = vsel %vm229, %v1486, 0
    %v1498 = vsel %vm229, %v1487, 0
    %1500 = vmatprep.subr.mxu0 0.0
    %1501 = vmatpush1.msra.mxu0 %v207
    %1502 = vmatprep.subr.mxu0 0.0
    %1503 = vmatpush1.msra.mxu0 %v208
    %1504 = vmatprep.subr.mxu0 0.0
    %1505 = vmatpush1.msra.mxu0 %v209
    %1506 = vmatprep.subr.mxu0 0.0
    %1507 = vmatpush1.msra.mxu0 %v210
    %1508 = vmatprep.subr.mxu0 0.0
    %1509 = vmatpush1.msra.mxu0 0.0
    %1510 = vmatprep.subr.mxu0 0.0
    %1511 = vmatpush1.msra.mxu0 0.0
    %1512 = vmatprep.subr.mxu0 0.0
    %1513 = vmatpush1.msra.mxu0 0.0
    %1514 = vmatprep.subr.mxu0 0.0
    %1515 = vmatpush1.msra.mxu0 0.0
    %1516 = vmatprep.subr.mxu0 0.0
    %1517 = vmatpush1.msra.mxu0 0.0
    %1518 = vmatprep.subr.mxu0 0.0
    %1519 = vmatpush1.msra.mxu0 0.0
    %1520 = vmatprep.subr.mxu0 0.0
    %1521 = vmatpush1.msra.mxu0 0.0
    %1522 = vmatprep.subr.mxu0 0.0
    %1523 = vmatpush1.msra.mxu0 0.0
    %1524 = vmatprep.subr.mxu0 0.0
    %1525 = vmatpush1.msra.mxu0 0.0
    %1526 = vmatprep.subr.mxu0 0.0
    %1527 = vmatpush1.msra.mxu0 0.0
    %1528 = vmatprep.subr.mxu0 0.0
    %1529 = vmatpush1.msra.mxu0 0.0
    %1530 = vmatprep.subr.mxu0 0.0
    %1531 = vmatpush1.msra.mxu0 0.0
    %1532 = vmatprep.subr.mxu0 0.0
    %1533 = vmatpush1.msra.mxu0 0.0
    %1534 = vmatprep.subr.mxu0 0.0
    %1535 = vmatpush1.msra.mxu0 0.0
    %1536 = vmatprep.subr.mxu0 0.0
    %1537 = vmatpush1.msra.mxu0 0.0
    %1538 = vmatprep.subr.mxu0 0.0
    %1539 = vmatpush1.msra.mxu0 0.0
    %1540 = vmatprep.subr.mxu0 0.0
    %1541 = vmatpush1.msra.mxu0 0.0
    %1542 = vmatprep.subr.mxu0 0.0
    %1543 = vmatpush1.msra.mxu0 0.0
    %1544 = vmatprep.subr.mxu0 0.0
    %1545 = vmatpush1.msra.mxu0 0.0
    %1546 = vmatprep.subr.mxu0 0.0
    %1547 = vmatpush1.msra.mxu0 0.0
    %1548 = vmatprep.subr.mxu0 0.0
    %1549 = vmatpush1.msra.mxu0 0.0
    %1550 = vmatprep.subr.mxu0 0.0
    %1551 = vmatpush1.msra.mxu0 0.0
    %1552 = vmatprep.subr.mxu0 0.0
    %1553 = vmatpush1.msra.mxu0 0.0
    %1554 = vmatprep.subr.mxu0 0.0
    %1555 = vmatpush1.msra.mxu0 0.0
    %1556 = vmatprep.subr.mxu0 0.0
    %1557 = vmatpush1.msra.mxu0 0.0
    %1558 = vmatprep.subr.mxu0 0.0
    %1559 = vmatpush1.msra.mxu0 0.0
    %1560 = vmatprep.subr.mxu0 0.0
    %1561 = vmatpush1.msra.mxu0 0.0
    %1562 = vmatprep.subr.mxu0 0.0
    %1563 = vmatpush1.msra.mxu0 0.0
    %1564 = vmatprep.mubr.f32.mxu0 0.0
    %1565 = vmatmul.mubr.f32.gmra.mrb[0].mxu0 %v1495
    %v1566 = vpop.f32.mrb[0].mxu0
    %v1567 = vadd.f32 %v1492, %v1566
    %v1568 = vpop.f32.mrb[0].mxu0
    %1569 = vmatprep.mubr.f32.mxu0 0.0
    %1570 = vmatmul.mubr.f32.gmra.mrb[0].mxu0 %v1498
    %v1571 = vpop.f32.mrb[0].mxu0
    %v1572 = vadd.f32 %v1492, %v1571
    %v1573 = vpop.f32.mrb[0].mxu0
    %1574 = vdwg.mxu0
    %v1575 = vmul.f32 %v1567, 0.5
    %v1576 = vmul.f32 %v1572, 0.5
    %v1577 = vmul.f32 %v1567, 0.044715
    %v1578 = vmul.f32 %v1572, 0.044715
    %v1579 = vmul.f32 %v1577, %v1567
    %v1580 = vmul.f32 %v1578, %v1572
    %v1581 = vmul.f32 %v1579, %v1567
    %v1582 = vmul.f32 %v1580, %v1572
    %v1583 = vadd.f32 %v1567, %v1581
    %v1584 = vadd.f32 %v1572, %v1582
    %v1585 = vmul.f32 %v1583, 0.7978846
    %v1586 = vmul.f32 %v1584, 0.7978846
    %v1587 = vtanh.pop %v1585
    %v1588 = vtanh.pop %v1586
    %v1589 = vadd.f32 %v1587, 1.0
    %v1590 = vadd.f32 %v1588, 1.0
    %v1591 = vmul.f32 %v1575, %v1589
    %v1592 = vmul.f32 %v1576, %v1590
    %v1594 = vlaneseq
    %v1595 = vshrl.u32 %v1594, 7
    %v1596 = vsub.s32 0, %v1595
    %v1597 = vrot.slane %v220, %v1596
    %vm1599 = vcmask 523264
    %v1601 = vsel %vm1599, %v1591, 0
    %v1604 = vsel %vm1599, %v1592, 0
    %1606 = vmatprep.subr.mxu0 0.0
    %1607 = vmatpush1.msra.mxu0 %v212
    %1608 = vmatprep.subr.mxu0 0.0
    %1609 = vmatpush1.msra.mxu0 %v213
    %1610 = vmatprep.subr.mxu0 0.0
    %1611 = vmatpush1.msra.mxu0 %v214
    %1612 = vmatprep.subr.mxu0 0.0
    %1613 = vmatpush1.msra.mxu0 %v215
    %1614 = vmatprep.subr.mxu0 0.0
    %1615 = vmatpush1.msra.mxu0 %v216
    %1616 = vmatprep.subr.mxu0 0.0
    %1617 = vmatpush1.msra.mxu0 %v217
    %1618 = vmatprep.subr.mxu0 0.0
    %1619 = vmatpush1.msra.mxu0 %v218
    %1620 = vmatprep.subr.mxu0 0.0
    %1621 = vmatpush1.msra.mxu0 %v219
    %1622 = vmatprep.subr.mxu0 0.0
    %1623 = vmatpush1.msra.mxu0 0.0
    %1624 = vmatprep.subr.mxu0 0.0
    %1625 = vmatpush1.msra.mxu0 0.0
    %1626 = vmatprep.subr.mxu0 0.0
    %1627 = vmatpush1.msra.mxu0 0.0
    %1628 = vmatprep.subr.mxu0 0.0
    %1629 = vmatpush1.msra.mxu0 0.0
    %1630 = vmatprep.subr.mxu0 0.0
    %1631 = vmatpush1.msra.mxu0 0.0
    %1632 = vmatprep.subr.mxu0 0.0
    %1633 = vmatpush1.msra.mxu0 0.0
    %1634 = vmatprep.subr.mxu0 0.0
    %1635 = vmatpush1.msra.mxu0 0.0
    %1636 = vmatprep.subr.mxu0 0.0
    %1637 = vmatpush1.msra.mxu0 0.0
    %1638 = vmatprep.subr.mxu0 0.0
    %1639 = vmatpush1.msra.mxu0 0.0
    %1640 = vmatprep.subr.mxu0 0.0
    %1641 = vmatpush1.msra.mxu0 0.0
    %1642 = vmatprep.subr.mxu0 0.0
    %1643 = vmatpush1.msra.mxu0 0.0
    %1644 = vmatprep.subr.mxu0 0.0
    %1645 = vmatpush1.msra.mxu0 0.0
    %1646 = vmatprep.subr.mxu0 0.0
    %1647 = vmatpush1.msra.mxu0 0.0
    %1648 = vmatprep.subr.mxu0 0.0
    %1649 = vmatpush1.msra.mxu0 0.0
    %1650 = vmatprep.subr.mxu0 0.0
    %1651 = vmatpush1.msra.mxu0 0.0
    %1652 = vmatprep.subr.mxu0 0.0
    %1653 = vmatpush1.msra.mxu0 0.0
    %1654 = vmatprep.subr.mxu0 0.0
    %1655 = vmatpush1.msra.mxu0 0.0
    %1656 = vmatprep.subr.mxu0 0.0
    %1657 = vmatpush1.msra.mxu0 0.0
    %1658 = vmatprep.subr.mxu0 0.0
    %1659 = vmatpush1.msra.mxu0 0.0
    %1660 = vmatprep.subr.mxu0 0.0
    %1661 = vmatpush1.msra.mxu0 0.0
    %1662 = vmatprep.subr.mxu0 0.0
    %1663 = vmatpush1.msra.mxu0 0.0
    %1664 = vmatprep.subr.mxu0 0.0
    %1665 = vmatpush1.msra.mxu0 0.0
    %1666 = vmatprep.subr.mxu0 0.0
    %1667 = vmatpush1.msra.mxu0 0.0
    %1668 = vmatprep.subr.mxu0 0.0
    %1669 = vmatpush1.msra.mxu0 0.0
    %1670 = vmatprep.mubr.f32.mxu0 0.0
    %1671 = vmatmul.mubr.f32.gmra.mrb[0].mxu0 %v1601
    %v1672 = vpop.f32.mrb[0].mxu0
    %v1673 = vadd.f32 %v1597, %v1672
    %v1674 = vpop.f32.mrb[0].mxu0
    %1675 = vmatprep.mubr.f32.mxu0 0.0
    %1676 = vmatmul.mubr.f32.gmra.mrb[0].mxu0 %v1604
    %v1677 = vpop.f32.mrb[0].mxu0
    %v1678 = vadd.f32 %v1597, %v1677
    %v1679 = vpop.f32.mrb[0].mxu0
    %1680 = vdwg.mxu0
    %v1681 = vadd.f32 %v1486, %v1673
    %v1682 = vadd.f32 %v1487, %v1678
    %v1683 = vsel %vm229, %v1681, 0.0
    %1684 = vadd.xlane.f32.xlu0 %v1683
    %v1685 = vpop.xlane.xlu0 %1684
    %v1686 = vsel %vm229, %v1682, 0.0
    %1687 = vadd.xlane.f32.xlu0 %v1686
    %v1688 = vpop.xlane.xlu0 %1687
    %v1689 = vmul.f32 %v1685, %v1451
    %v1690 = vmul.f32 %v1688, %v1451
    %v1691 = vsub.f32 %v1681, %v1689
    %v1692 = vsub.f32 %v1682, %v1690
    %v1693 = vmul.f32 %v1691, %v1691
    %v1694 = vmul.f32 %v1692, %v1692
    %v1695 = vsel %vm229, %v1693, 0.0
    %1696 = vadd.xlane.f32.xlu0 %v1695
    %v1697 = vpop.xlane.xlu0 %1696
    %v1698 = vsel %vm229, %v1694, 0.0
    %1699 = vadd.xlane.f32.xlu0 %v1698
    %v1700 = vpop.xlane.xlu0 %1699
    %v1701 = vmul.f32 %v1697, %v1451
    %v1702 = vmul.f32 %v1700, %v1451
    %v1703 = vadd.f32 %v1701, 1e-12
    %v1704 = vadd.f32 %v1702, 1e-12
    %v1705 = vrsqrt.pop %v1703
    %v1706 = vrsqrt.pop %v1704
    %v1707 = vmul.f32 %v1691, %v1705
    %v1708 = vmul.f32 %v1692, %v1706
    %v1710 = vlaneseq
    %v1711 = vshrl.u32 %v1710, 7
    %v1712 = vsub.s32 0, %v1711
    %v1713 = vrot.slane %v221, %v1712
    %v1715 = vmul.f32 %v1707, %v1713
    %v1716 = vmul.f32 %v1708, %v1713
    %v1718 = vlaneseq
    %v1719 = vshrl.u32 %v1718, 7
    %v1720 = vsub.s32 0, %v1719
    %v1721 = vrot.slane %v222, %v1720
    %v1723 = vadd.f32 %v1715, %v1721
    %v1724 = vadd.f32 %v1716, %v1721
    %v1726 = vsel %vm229, %v1723, 0
    %v1729 = vsel %vm229, %v1724, 0
    %1731 = vmatprep.subr.mxu0 0.0
    %1732 = vmatpush1.msra.mxu0 %v185
    %1733 = vmatprep.subr.mxu0 0.0
    %1734 = vmatpush1.msra.mxu0 %v186
    %1735 = vmatprep.subr.mxu0 0.0
    %1736 = vmatpush1.msra.mxu0 %v187
    %1737 = vmatprep.subr.mxu0 0.0
    %1738 = vmatpush1.msra.mxu0 %v188
    %1739 = vmatprep.subr.mxu0 0.0
    %1740 = vmatpush1.msra.mxu0 0.0
    %1741 = vmatprep.subr.mxu0 0.0
    %1742 = vmatpush1.msra.mxu0 0.0
    %1743 = vmatprep.subr.mxu0 0.0
    %1744 = vmatpush1.msra.mxu0 0.0
    %1745 = vmatprep.subr.mxu0 0.0
    %1746 = vmatpush1.msra.mxu0 0.0
    %1747 = vmatprep.subr.mxu0 0.0
    %1748 = vmatpush1.msra.mxu0 0.0
    %1749 = vmatprep.subr.mxu0 0.0
    %1750 = vmatpush1.msra.mxu0 0.0
    %1751 = vmatprep.subr.mxu0 0.0
    %1752 = vmatpush1.msra.mxu0 0.0
    %1753 = vmatprep.subr.mxu0 0.0
    %1754 = vmatpush1.msra.mxu0 0.0
    %1755 = vmatprep.subr.mxu0 0.0
    %1756 = vmatpush1.msra.mxu0 0.0
    %1757 = vmatprep.subr.mxu0 0.0
    %1758 = vmatpush1.msra.mxu0 0.0
    %1759 = vmatprep.subr.mxu0 0.0
    %1760 = vmatpush1.msra.mxu0 0.0
    %1761 = vmatprep.subr.mxu0 0.0
    %1762 = vmatpush1.msra.mxu0 0.0
    %1763 = vmatprep.subr.mxu0 0.0
    %1764 = vmatpush1.msra.mxu0 0.0
    %1765 = vmatprep.subr.mxu0 0.0
    %1766 = vmatpush1.msra.mxu0 0.0
    %1767 = vmatprep.subr.mxu0 0.0
    %1768 = vmatpush1.msra.mxu0 0.0
    %1769 = vmatprep.subr.mxu0 0.0
    %1770 = vmatpush1.msra.mxu0 0.0
    %1771 = vmatprep.subr.mxu0 0.0
    %1772 = vmatpush1.msra.mxu0 0.0
    %1773 = vmatprep.subr.mxu0 0.0
    %1774 = vmatpush1.msra.mxu0 0.0
    %1775 = vmatprep.subr.mxu0 0.0
    %1776 = vmatpush1.msra.mxu0 0.0
    %1777 = vmatprep.subr.mxu0 0.0
    %1778 = vmatpush1.msra.mxu0 0.0
    %1779 = vmatprep.subr.mxu0 0.0
    %1780 = vmatpush1.msra.mxu0 0.0
    %1781 = vmatprep.subr.mxu0 0.0
    %1782 = vmatpush1.msra.mxu0 0.0
    %1783 = vmatprep.subr.mxu0 0.0
    %1784 = vmatpush1.msra.mxu0 0.0
    %1785 = vmatprep.subr.mxu0 0.0
    %1786 = vmatpush1.msra.mxu0 0.0
    %1787 = vmatprep.subr.mxu0 0.0
    %1788 = vmatpush1.msra.mxu0 0.0
    %1789 = vmatprep.subr.mxu0 0.0
    %1790 = vmatpush1.msra.mxu0 0.0
    %1791 = vmatprep.subr.mxu0 0.0
    %1792 = vmatpush1.msra.mxu0 0.0
    %1793 = vmatprep.subr.mxu0 0.0
    %1794 = vmatpush1.msra.mxu0 0.0
    %1795 = vmatprep.mubr.f32.mxu0 0.0
    %1796 = vmatmul.mubr.f32.gmra.mrb[0].mxu0 %v1726
    %v1797 = vpop.f32.mrb[0].mxu0
    %v1798 = vadd.f32 %v227, %v1797
    %v1799 = vpop.f32.mrb[0].mxu0
    %1800 = vmatprep.mubr.f32.mxu0 0.0
    %1801 = vmatmul.mubr.f32.gmra.mrb[0].mxu0 %v1729
    %v1802 = vpop.f32.mrb[0].mxu0
    %v1803 = vadd.f32 %v227, %v1802
    %v1804 = vpop.f32.mrb[0].mxu0
    %1805 = vdwg.mxu0
    %1806 = vmatprep.subr.mxu0 0.0
    %1807 = vmatpush1.msra.mxu0 %v190
    %1808 = vmatprep.subr.mxu0 0.0
    %1809 = vmatpush1.msra.mxu0 %v191
    %1810 = vmatprep.subr.mxu0 0.0
    %1811 = vmatpush1.msra.mxu0 %v192
    %1812 = vmatprep.subr.mxu0 0.0
    %1813 = vmatpush1.msra.mxu0 %v193
    %1814 = vmatprep.subr.mxu0 0.0
    %1815 = vmatpush1.msra.mxu0 0.0
    %1816 = vmatprep.subr.mxu0 0.0
    %1817 = vmatpush1.msra.mxu0 0.0
    %1818 = vmatprep.subr.mxu0 0.0
    %1819 = vmatpush1.msra.mxu0 0.0
    %1820 = vmatprep.subr.mxu0 0.0
    %1821 = vmatpush1.msra.mxu0 0.0
    %1822 = vmatprep.subr.mxu0 0.0
    %1823 = vmatpush1.msra.mxu0 0.0
    %1824 = vmatprep.subr.mxu0 0.0
    %1825 = vmatpush1.msra.mxu0 0.0
    %1826 = vmatprep.subr.mxu0 0.0
    %1827 = vmatpush1.msra.mxu0 0.0
    %1828 = vmatprep.subr.mxu0 0.0
    %1829 = vmatpush1.msra.mxu0 0.0
    %1830 = vmatprep.subr.mxu0 0.0
    %1831 = vmatpush1.msra.mxu0 0.0
    %1832 = vmatprep.subr.mxu0 0.0
    %1833 = vmatpush1.msra.mxu0 0.0
    %1834 = vmatprep.subr.mxu0 0.0
    %1835 = vmatpush1.msra.mxu0 0.0
    %1836 = vmatprep.subr.mxu0 0.0
    %1837 = vmatpush1.msra.mxu0 0.0
    %1838 = vmatprep.subr.mxu0 0.0
    %1839 = vmatpush1.msra.mxu0 0.0
    %1840 = vmatprep.subr.mxu0 0.0
    %1841 = vmatpush1.msra.mxu0 0.0
    %1842 = vmatprep.subr.mxu0 0.0
    %1843 = vmatpush1.msra.mxu0 0.0
    %1844 = vmatprep.subr.mxu0 0.0
    %1845 = vmatpush1.msra.mxu0 0.0
    %1846 = vmatprep.subr.mxu0 0.0
    %1847 = vmatpush1.msra.mxu0 0.0
    %1848 = vmatprep.subr.mxu0 0.0
    %1849 = vmatpush1.msra.mxu0 0.0
    %1850 = vmatprep.subr.mxu0 0.0
    %1851 = vmatpush1.msra.mxu0 0.0
    %1852 = vmatprep.subr.mxu0 0.0
    %1853 = vmatpush1.msra.mxu0 0.0
    %1854 = vmatprep.subr.mxu0 0.0
    %1855 = vmatpush1.msra.mxu0 0.0
    %1856 = vmatprep.subr.mxu0 0.0
    %1857 = vmatpush1.msra.mxu0 0.0
    %1858 = vmatprep.subr.mxu0 0.0
    %1859 = vmatpush1.msra.mxu0 0.0
    %1860 = vmatprep.subr.mxu0 0.0
    %1861 = vmatpush1.msra.mxu0 0.0
    %1862 = vmatprep.subr.mxu0 0.0
    %1863 = vmatpush1.msra.mxu0 0.0
    %1864 = vmatprep.subr.mxu0 0.0
    %1865 = vmatpush1.msra.mxu0 0.0
    %1866 = vmatprep.subr.mxu0 0.0
    %1867 = vmatpush1.msra.mxu0 0.0
    %1868 = vmatprep.subr.mxu0 0.0
    %1869 = vmatpush1.msra.mxu0 0.0
    %1870 = vmatprep.mubr.f32.mxu0 0.0
    %1871 = vmatmul.mubr.f32.gmra.mrb[0].mxu0 %v1726
    %v1872 = vpop.f32.mrb[0].mxu0
    %v1873 = vadd.f32 %v315, %v1872
    %v1874 = vpop.f32.mrb[0].mxu0
    %1875 = vmatprep.mubr.f32.mxu0 0.0
    %1876 = vmatmul.mubr.f32.gmra.mrb[0].mxu0 %v1729
    %v1877 = vpop.f32.mrb[0].mxu0
    %v1878 = vadd.f32 %v315, %v1877
    %v1879 = vpop.f32.mrb[0].mxu0
    %1880 = vdwg.mxu0
    %1881 = vmatprep.subr.mxu0 0.0
    %1882 = vmatpush1.msra.mxu0 %v195
    %1883 = vmatprep.subr.mxu0 0.0
    %1884 = vmatpush1.msra.mxu0 %v196
    %1885 = vmatprep.subr.mxu0 0.0
    %1886 = vmatpush1.msra.mxu0 %v197
    %1887 = vmatprep.subr.mxu0 0.0
    %1888 = vmatpush1.msra.mxu0 %v198
    %1889 = vmatprep.subr.mxu0 0.0
    %1890 = vmatpush1.msra.mxu0 0.0
    %1891 = vmatprep.subr.mxu0 0.0
    %1892 = vmatpush1.msra.mxu0 0.0
    %1893 = vmatprep.subr.mxu0 0.0
    %1894 = vmatpush1.msra.mxu0 0.0
    %1895 = vmatprep.subr.mxu0 0.0
    %1896 = vmatpush1.msra.mxu0 0.0
    %1897 = vmatprep.subr.mxu0 0.0
    %1898 = vmatpush1.msra.mxu0 0.0
    %1899 = vmatprep.subr.mxu0 0.0
    %1900 = vmatpush1.msra.mxu0 0.0
    %1901 = vmatprep.subr.mxu0 0.0
    %1902 = vmatpush1.msra.mxu0 0.0
    %1903 = vmatprep.subr.mxu0 0.0
    %1904 = vmatpush1.msra.mxu0 0.0
    %1905 = vmatprep.subr.mxu0 0.0
    %1906 = vmatpush1.msra.mxu0 0.0
    %1907 = vmatprep.subr.mxu0 0.0
    %1908 = vmatpush1.msra.mxu0 0.0
    %1909 = vmatprep.subr.mxu0 0.0
    %1910 = vmatpush1.msra.mxu0 0.0
    %1911 = vmatprep.subr.mxu0 0.0
    %1912 = vmatpush1.msra.mxu0 0.0
    %1913 = vmatprep.subr.mxu0 0.0
    %1914 = vmatpush1.msra.mxu0 0.0
    %1915 = vmatprep.subr.mxu0 0.0
    %1916 = vmatpush1.msra.mxu0 0.0
    %1917 = vmatprep.subr.mxu0 0.0
    %1918 = vmatpush1.msra.mxu0 0.0
    %1919 = vmatprep.subr.mxu0 0.0
    %1920 = vmatpush1.msra.mxu0 0.0
    %1921 = vmatprep.subr.mxu0 0.0
    %1922 = vmatpush1.msra.mxu0 0.0
    %1923 = vmatprep.subr.mxu0 0.0
    %1924 = vmatpush1.msra.mxu0 0.0
    %1925 = vmatprep.subr.mxu0 0.0
    %1926 = vmatpush1.msra.mxu0 0.0
    %1927 = vmatprep.subr.mxu0 0.0
    %1928 = vmatpush1.msra.mxu0 0.0
    %1929 = vmatprep.subr.mxu0 0.0
    %1930 = vmatpush1.msra.mxu0 0.0
    %1931 = vmatprep.subr.mxu0 0.0
    %1932 = vmatpush1.msra.mxu0 0.0
    %1933 = vmatprep.subr.mxu0 0.0
    %1934 = vmatpush1.msra.mxu0 0.0
    %1935 = vmatprep.subr.mxu0 0.0
    %1936 = vmatpush1.msra.mxu0 0.0
    %1937 = vmatprep.subr.mxu0 0.0
    %1938 = vmatpush1.msra.mxu0 0.0
    %1939 = vmatprep.subr.mxu0 0.0
    %1940 = vmatpush1.msra.mxu0 0.0
    %1941 = vmatprep.subr.mxu0 0.0
    %1942 = vmatpush1.msra.mxu0 0.0
    %1943 = vmatprep.subr.mxu0 0.0
    %1944 = vmatpush1.msra.mxu0 0.0
    %1945 = vmatprep.mubr.f32.mxu0 0.0
    %1946 = vmatmul.mubr.f32.gmra.mrb[0].mxu0 %v1726
    %v1947 = vpop.f32.mrb[0].mxu0
    %v1948 = vadd.f32 %v396, %v1947
    %v1949 = vpop.f32.mrb[0].mxu0
    %1950 = vmatprep.mubr.f32.mxu0 0.0
    %1951 = vmatmul.mubr.f32.gmra.mrb[0].mxu0 %v1729
    %v1952 = vpop.f32.mrb[0].mxu0
    %v1953 = vadd.f32 %v396, %v1952
    %v1954 = vpop.f32.mrb[0].mxu0
    %1955 = vdwg.mxu0
    %v1957 = vsel %vm473, %v1798, 0
    %v1960 = vsel %vm473, %v1873, 0
    %1962 = vmatprep.subr.mxu0 0.0
    %1963 = vmatpush1.xpose.msra.mxu0 %v1960
    %1964 = vmatprep.subr.mxu0 0.0
    %1965 = vmatpush1.xpose.msra.mxu0 0.0
    %1966 = vmatprep.subr.mxu0 0.0
    %1967 = vmatpush1.xpose.msra.mxu0 0.0
    %1968 = vmatprep.subr.mxu0 0.0
    %1969 = vmatpush1.xpose.msra.mxu0 0.0
    %1970 = vmatprep.subr.mxu0 0.0
    %1971 = vmatpush1.xpose.msra.mxu0 0.0
    %1972 = vmatprep.subr.mxu0 0.0
    %1973 = vmatpush1.xpose.msra.mxu0 0.0
    %1974 = vmatprep.subr.mxu0 0.0
    %1975 = vmatpush1.xpose.msra.mxu0 0.0
    %1976 = vmatprep.subr.mxu0 0.0
    %1977 = vmatpush1.xpose.msra.mxu0 0.0
    %1978 = vmatprep.subr.mxu0 0.0
    %1979 = vmatpush1.xpose.msra.mxu0 0.0
    %1980 = vmatprep.subr.mxu0 0.0
    %1981 = vmatpush1.xpose.msra.mxu0 0.0
    %1982 = vmatprep.subr.mxu0 0.0
    %1983 = vmatpush1.xpose.msra.mxu0 0.0
    %1984 = vmatprep.subr.mxu0 0.0
    %1985 = vmatpush1.xpose.msra.mxu0 0.0
    %1986 = vmatprep.subr.mxu0 0.0
    %1987 = vmatpush1.xpose.msra.mxu0 0.0
    %1988 = vmatprep.subr.mxu0 0.0
    %1989 = vmatpush1.xpose.msra.mxu0 0.0
    %1990 = vmatprep.subr.mxu0 0.0
    %1991 = vmatpush1.xpose.msra.mxu0 0.0
    %1992 = vmatprep.subr.mxu0 0.0
    %1993 = vmatpush1.xpose.msra.mxu0 0.0
    %1994 = vmatprep.subr.mxu0 0.0
    %1995 = vmatpush1.xpose.msra.mxu0 0.0
    %1996 = vmatprep.subr.mxu0 0.0
    %1997 = vmatpush1.xpose.msra.mxu0 0.0
    %1998 = vmatprep.subr.mxu0 0.0
    %1999 = vmatpush1.xpose.msra.mxu0 0.0
    %2000 = vmatprep.subr.mxu0 0.0
    %2001 = vmatpush1.xpose.msra.mxu0 0.0
    %2002 = vmatprep.subr.mxu0 0.0
    %2003 = vmatpush1.xpose.msra.mxu0 0.0
    %2004 = vmatprep.subr.mxu0 0.0
    %2005 = vmatpush1.xpose.msra.mxu0 0.0
    %2006 = vmatprep.subr.mxu0 0.0
    %2007 = vmatpush1.xpose.msra.mxu0 0.0
    %2008 = vmatprep.subr.mxu0 0.0
    %2009 = vmatpush1.xpose.msra.mxu0 0.0
    %2010 = vmatprep.subr.mxu0 0.0
    %2011 = vmatpush1.xpose.msra.mxu0 0.0
    %2012 = vmatprep.subr.mxu0 0.0
    %2013 = vmatpush1.xpose.msra.mxu0 0.0
    %2014 = vmatprep.subr.mxu0 0.0
    %2015 = vmatpush1.xpose.msra.mxu0 0.0
    %2016 = vmatprep.subr.mxu0 0.0
    %2017 = vmatpush1.xpose.msra.mxu0 0.0
    %2018 = vmatprep.subr.mxu0 0.0
    %2019 = vmatpush1.xpose.msra.mxu0 0.0
    %2020 = vmatprep.subr.mxu0 0.0
    %2021 = vmatpush1.xpose.msra.mxu0 0.0
    %2022 = vmatprep.subr.mxu0 0.0
    %2023 = vmatpush1.xpose.msra.mxu0 0.0
    %2024 = vmatprep.subr.mxu0 0.0
    %2025 = vmatpush1.xpose.msra.mxu0 0.0
    %2026 = vmatprep.mubr.f32.mxu0 0.0
    %2027 = vmatmul.mubr.f32.gmra.mrb[0].mxu0 %v1957
    %v2028 = vpop.f32.mrb[0].mxu0
    %v2029 = vadd.f32 0.0, %v2028
    %v2030 = vpop.f32.mrb[0].mxu0
    %2031 = vdwg.mxu0
    %v2032 = vmul.f32 %v2029, 0.25
    %v2033 = vadd.f32 %v2032, %v554
    %v2034 = vsel %vm556, %v2033, -inf
    %2035 = vmax.xlane.f32.xlu0 %v2034
    %v2036 = vpop.xlane.xlu0 %2035
    %v2037 = vsub.f32 %v2033, %v2036
    %v2038 = vmul.f32 %v2037, 1.442695
    %v2039 = vpow.pop %v2038
    %v2040 = vsel %vm556, %v2039, 0.0
    %2041 = vadd.xlane.f32.xlu0 %v2040
    %v2042 = vpop.xlane.xlu0 %2041
    %v2043 = vrcp.pop %v2042
    %v2044 = vmul.f32 %v2039, %v2043
    %v2046 = vsel %vm556, %v2044, 0
    %2048 = vmatprep.subr.mxu0 0.0
    %2049 = vmatpush1.msra.mxu0 %v1948
    %2050 = vmatprep.subr.mxu0 0.0
    %2051 = vmatpush1.msra.mxu0 0.0
    %2052 = vmatprep.subr.mxu0 0.0
    %2053 = vmatpush1.msra.mxu0 0.0
    %2054 = vmatprep.subr.mxu0 0.0
    %2055 = vmatpush1.msra.mxu0 0.0
    %2056 = vmatprep.subr.mxu0 0.0
    %2057 = vmatpush1.msra.mxu0 0.0
    %2058 = vmatprep.subr.mxu0 0.0
    %2059 = vmatpush1.msra.mxu0 0.0
    %2060 = vmatprep.subr.mxu0 0.0
    %2061 = vmatpush1.msra.mxu0 0.0
    %2062 = vmatprep.subr.mxu0 0.0
    %2063 = vmatpush1.msra.mxu0 0.0
    %2064 = vmatprep.subr.mxu0 0.0
    %2065 = vmatpush1.msra.mxu0 0.0
    %2066 = vmatprep.subr.mxu0 0.0
    %2067 = vmatpush1.msra.mxu0 0.0
    %2068 = vmatprep.subr.mxu0 0.0
    %2069 = vmatpush1.msra.mxu0 0.0
    %2070 = vmatprep.subr.mxu0 0.0
    %2071 = vmatpush1.msra.mxu0 0.0
    %2072 = vmatprep.subr.mxu0 0.0
    %2073 = vmatpush1.msra.mxu0 0.0
    %2074 = vmatprep.subr.mxu0 0.0
    %2075 = vmatpush1.msra.mxu0 0.0
    %2076 = vmatprep.subr.mxu0 0.0
    %2077 = vmatpush1.msra.mxu0 0.0
    %2078 = vmatprep.subr.mxu0 0.0
    %2079 = vmatpush1.msra.mxu0 0.0
    %2080 = vmatprep.subr.mxu0 0.0
    %2081 = vmatpush1.msra.mxu0 0.0
    %2082 = vmatprep.subr.mxu0 0.0
    %2083 = vmatpush1.msra.mxu0 0.0
    %2084 = vmatprep.subr.mxu0 0.0
    %2085 = vmatpush1.msra.mxu0 0.0
    %2086 = vmatprep.subr.mxu0 0.0
    %2087 = vmatpush1.msra.mxu0 0.0
    %2088 = vmatprep.subr.mxu0 0.0
    %2089 = vmatpush1.msra.mxu0 0.0
    %2090 = vmatprep.subr.mxu0 0.0
    %2091 = vmatpush1.msra.mxu0 0.0
    %2092 = vmatprep.subr.mxu0 0.0
    %2093 = vmatpush1.msra.mxu0 0.0
    %2094 = vmatprep.subr.mxu0 0.0
    %2095 = vmatpush1.msra.mxu0 0.0
    %2096 = vmatprep.subr.mxu0 0.0
    %2097 = vmatpush1.msra.mxu0 0.0
    %2098 = vmatprep.subr.mxu0 0.0
    %2099 = vmatpush1.msra.mxu0 0.0
    %2100 = vmatprep.subr.mxu0 0.0
    %2101 = vmatpush1.msra.mxu0 0.0
    %2102 = vmatprep.subr.mxu0 0.0
    %2103 = vmatpush1.msra.mxu0 0.0
    %2104 = vmatprep.subr.mxu0 0.0
    %2105 = vmatpush1.msra.mxu0 0.0
    %2106 = vmatprep.subr.mxu0 0.0
    %2107 = vmatpush1.msra.mxu0 0.0
    %2108 = vmatprep.subr.mxu0 0.0
    %2109 = vmatpush1.msra.mxu0 0.0
    %2110 = vmatprep.subr.mxu0 0.0
    %2111 = vmatpush1.msra.mxu0 0.0
    %2112 = vmatprep.mubr.f32.mxu0 0.0
    %2113 = vmatmul.mubr.f32.gmra.mrb[0].mxu0 %v2046
    %v2114 = vpop.f32.mrb[0].mxu0
    %v2115 = vadd.f32 0.0, %v2114
    %v2116 = vpop.f32.mrb[0].mxu0
    %2117 = vdwg.mxu0
    %2118 = vrot.lane.b32.xlu0 %v1798, 112
    %v2119 = vpop.permute.xlu0 %2118
    %2120 = vrot.lane.b32.xlu0 %v1873, 112
    %v2121 = vpop.permute.xlu0 %2120
    %v2122 = vsel %vm473, %v2119, 0
    %v2124 = vsel %vm473, %v2121, 0
    %2126 = vmatprep.subr.mxu0 0.0
    %2127 = vmatpush1.xpose.msra.mxu0 %v2124
    %2128 = vmatprep.subr.mxu0 0.0
    %2129 = vmatpush1.xpose.msra.mxu0 0.0
    %2130 = vmatprep.subr.mxu0 0.0
    %2131 = vmatpush1.xpose.msra.mxu0 0.0
    %2132 = vmatprep.subr.mxu0 0.0
    %2133 = vmatpush1.xpose.msra.mxu0 0.0
    %2134 = vmatprep.subr.mxu0 0.0
    %2135 = vmatpush1.xpose.msra.mxu0 0.0
    %2136 = vmatprep.subr.mxu0 0.0
    %2137 = vmatpush1.xpose.msra.mxu0 0.0
    %2138 = vmatprep.subr.mxu0 0.0
    %2139 = vmatpush1.xpose.msra.mxu0 0.0
    %2140 = vmatprep.subr.mxu0 0.0
    %2141 = vmatpush1.xpose.msra.mxu0 0.0
    %2142 = vmatprep.subr.mxu0 0.0
    %2143 = vmatpush1.xpose.msra.mxu0 0.0
    %2144 = vmatprep.subr.mxu0 0.0
    %2145 = vmatpush1.xpose.msra.mxu0 0.0
    %2146 = vmatprep.subr.mxu0 0.0
    %2147 = vmatpush1.xpose.msra.mxu0 0.0
    %2148 = vmatprep.subr.mxu0 0.0
    %2149 = vmatpush1.xpose.msra.mxu0 0.0
    %2150 = vmatprep.subr.mxu0 0.0
    %2151 = vmatpush1.xpose.msra.mxu0 0.0
    %2152 = vmatprep.subr.mxu0 0.0
    %2153 = vmatpush1.xpose.msra.mxu0 0.0
    %2154 = vmatprep.subr.mxu0 0.0
    %2155 = vmatpush1.xpose.msra.mxu0 0.0
    %2156 = vmatprep.subr.mxu0 0.0
    %2157 = vmatpush1.xpose.msra.mxu0 0.0
    %2158 = vmatprep.subr.mxu0 0.0
    %2159 = vmatpush1.xpose.msra.mxu0 0.0
    %2160 = vmatprep.subr.mxu0 0.0
    %2161 = vmatpush1.xpose.msra.mxu0 0.0
    %2162 = vmatprep.subr.mxu0 0.0
    %2163 = vmatpush1.xpose.msra.mxu0 0.0
    %2164 = vmatprep.subr.mxu0 0.0
    %2165 = vmatpush1.xpose.msra.mxu0 0.0
    %2166 = vmatprep.subr.mxu0 0.0
    %2167 = vmatpush1.xpose.msra.mxu0 0.0
    %2168 = vmatprep.subr.mxu0 0.0
    %2169 = vmatpush1.xpose.msra.mxu0 0.0
    %2170 = vmatprep.subr.mxu0 0.0
    %2171 = vmatpush1.xpose.msra.mxu0 0.0
    %2172 = vmatprep.subr.mxu0 0.0
    %2173 = vmatpush1.xpose.msra.mxu0 0.0
    %2174 = vmatprep.subr.mxu0 0.0
    %2175 = vmatpush1.xpose.msra.mxu0 0.0
    %2176 = vmatprep.subr.mxu0 0.0
    %2177 = vmatpush1.xpose.msra.mxu0 0.0
    %2178 = vmatprep.subr.mxu0 0.0
    %2179 = vmatpush1.xpose.msra.mxu0 0.0
    %2180 = vmatprep.subr.mxu0 0.0
    %2181 = vmatpush1.xpose.msra.mxu0 0.0
    %2182 = vmatprep.subr.mxu0 0.0
    %2183 = vmatpush1.xpose.msra.mxu0 0.0
    %2184 = vmatprep.subr.mxu0 0.0
    %2185 = vmatpush1.xpose.msra.mxu0 0.0
    %2186 = vmatprep.subr.mxu0 0.0
    %2187 = vmatpush1.xpose.msra.mxu0 0.0
    %2188 = vmatprep.subr.mxu0 0.0
    %2189 = vmatpush1.xpose.msra.mxu0 0.0
    %2190 = vmatprep.mubr.f32.mxu0 0.0
    %2191 = vmatmul.mubr.f32.gmra.mrb[0].mxu0 %v2122
    %v2192 = vpop.f32.mrb[0].mxu0
    %v2193 = vadd.f32 0.0, %v2192
    %v2194 = vpop.f32.mrb[0].mxu0
    %2195 = vdwg.mxu0
    %v2196 = vmul.f32 %v2193, 0.25
    %v2197 = vadd.f32 %v2196, %v554
    %v2198 = vsel %vm556, %v2197, -inf
    %2199 = vmax.xlane.f32.xlu0 %v2198
    %v2200 = vpop.xlane.xlu0 %2199
    %v2201 = vsub.f32 %v2197, %v2200
    %v2202 = vmul.f32 %v2201, 1.442695
    %v2203 = vpow.pop %v2202
    %v2204 = vsel %vm556, %v2203, 0.0
    %2205 = vadd.xlane.f32.xlu0 %v2204
    %v2206 = vpop.xlane.xlu0 %2205
    %v2207 = vrcp.pop %v2206
    %v2208 = vmul.f32 %v2203, %v2207
    %2210 = vrot.lane.b32.xlu0 %v1948, 112
    %v2211 = vpop.permute.xlu0 %2210
    %v2214 = vsel %vm556, %v2208, 0
    %2216 = vmatprep.subr.mxu0 0.0
    %2217 = vmatpush1.msra.mxu0 %v2211
    %2218 = vmatprep.subr.mxu0 0.0
    %2219 = vmatpush1.msra.mxu0 0.0
    %2220 = vmatprep.subr.mxu0 0.0
    %2221 = vmatpush1.msra.mxu0 0.0
    %2222 = vmatprep.subr.mxu0 0.0
    %2223 = vmatpush1.msra.mxu0 0.0
    %2224 = vmatprep.subr.mxu0 0.0
    %2225 = vmatpush1.msra.mxu0 0.0
    %2226 = vmatprep.subr.mxu0 0.0
    %2227 = vmatpush1.msra.mxu0 0.0
    %2228 = vmatprep.subr.mxu0 0.0
    %2229 = vmatpush1.msra.mxu0 0.0
    %2230 = vmatprep.subr.mxu0 0.0
    %2231 = vmatpush1.msra.mxu0 0.0
    %2232 = vmatprep.subr.mxu0 0.0
    %2233 = vmatpush1.msra.mxu0 0.0
    %2234 = vmatprep.subr.mxu0 0.0
    %2235 = vmatpush1.msra.mxu0 0.0
    %2236 = vmatprep.subr.mxu0 0.0
    %2237 = vmatpush1.msra.mxu0 0.0
    %2238 = vmatprep.subr.mxu0 0.0
    %2239 = vmatpush1.msra.mxu0 0.0
    %2240 = vmatprep.subr.mxu0 0.0
    %2241 = vmatpush1.msra.mxu0 0.0
    %2242 = vmatprep.subr.mxu0 0.0
    %2243 = vmatpush1.msra.mxu0 0.0
    %2244 = vmatprep.subr.mxu0 0.0
    %2245 = vmatpush1.msra.mxu0 0.0
    %2246 = vmatprep.subr.mxu0 0.0
    %2247 = vmatpush1.msra.mxu0 0.0
    %2248 = vmatprep.subr.mxu0 0.0
    %2249 = vmatpush1.msra.mxu0 0.0
    %2250 = vmatprep.subr.mxu0 0.0
    %2251 = vmatpush1.msra.mxu0 0.0
    %2252 = vmatprep.subr.mxu0 0.0
    %2253 = vmatpush1.msra.mxu0 0.0
    %2254 = vmatprep.subr.mxu0 0.0
    %2255 = vmatpush1.msra.mxu0 0.0
    %2256 = vmatprep.subr.mxu0 0.0
    %2257 = vmatpush1.msra.mxu0 0.0
    %2258 = vmatprep.subr.mxu0 0.0
    %2259 = vmatpush1.msra.mxu0 0.0
    %2260 = vmatprep.subr.mxu0 0.0
    %2261 = vmatpush1.msra.mxu0 0.0
    %2262 = vmatprep.subr.mxu0 0.0
    %2263 = vmatpush1.msra.mxu0 0.0
    %2264 = vmatprep.subr.mxu0 0.0
    %2265 = vmatpush1.msra.mxu0 0.0
    %2266 = vmatprep.subr.mxu0 0.0
    %2267 = vmatpush1.msra.mxu0 0.0
    %2268 = vmatprep.subr.mxu0 0.0
    %2269 = vmatpush1.msra.mxu0 0.0
    %2270 = vmatprep.subr.mxu0 0.0
    %2271 = vmatpush1.msra.mxu0 0.0
    %2272 = vmatprep.subr.mxu0 0.0
    %2273 = vmatpush1.msra.mxu0 0.0
    %2274 = vmatprep.subr.mxu0 0.0
    %2275 = vmatpush1.msra.mxu0 0.0
    %2276 = vmatprep.subr.mxu0 0.0
    %2277 = vmatpush1.msra.mxu0 0.0
    %2278 = vmatprep.subr.mxu0 0.0
    %2279 = vmatpush1.msra.mxu0 0.0
    %2280 = vmatprep.mubr.f32.mxu0 0.0
    %2281 = vmatmul.mubr.f32.gmra.mrb[0].mxu0 %v2214
    %v2282 = vpop.f32.mrb[0].mxu0
    %v2283 = vadd.f32 0.0, %v2282
    %v2284 = vpop.f32.mrb[0].mxu0
    %2285 = vdwg.mxu0
    %v2287 = vsel %vm473, %v2283, 0
    %2289 = vmatprep.subr.mxu0 0.0
    %2290 = vmatpush1.msra.mxu0 %v202
    %2291 = vmatprep.subr.mxu0 0.0
    %2292 = vmatpush1.msra.mxu0 %v203
    %2293 = vmatprep.subr.mxu0 0.0
    %2294 = vmatpush1.msra.mxu0 0.0
    %2295 = vmatprep.subr.mxu0 0.0
    %2296 = vmatpush1.msra.mxu0 0.0
    %2297 = vmatprep.subr.mxu0 0.0
    %2298 = vmatpush1.msra.mxu0 0.0
    %2299 = vmatprep.subr.mxu0 0.0
    %2300 = vmatpush1.msra.mxu0 0.0
    %2301 = vmatprep.subr.mxu0 0.0
    %2302 = vmatpush1.msra.mxu0 0.0
    %2303 = vmatprep.subr.mxu0 0.0
    %2304 = vmatpush1.msra.mxu0 0.0
    %2305 = vmatprep.subr.mxu0 0.0
    %2306 = vmatpush1.msra.mxu0 0.0
    %2307 = vmatprep.subr.mxu0 0.0
    %2308 = vmatpush1.msra.mxu0 0.0
    %2309 = vmatprep.subr.mxu0 0.0
    %2310 = vmatpush1.msra.mxu0 0.0
    %2311 = vmatprep.subr.mxu0 0.0
    %2312 = vmatpush1.msra.mxu0 0.0
    %2313 = vmatprep.subr.mxu0 0.0
    %2314 = vmatpush1.msra.mxu0 0.0
    %2315 = vmatprep.subr.mxu0 0.0
    %2316 = vmatpush1.msra.mxu0 0.0
    %2317 = vmatprep.subr.mxu0 0.0
    %2318 = vmatpush1.msra.mxu0 0.0
    %2319 = vmatprep.subr.mxu0 0.0
    %2320 = vmatpush1.msra.mxu0 0.0
    %2321 = vmatprep.subr.mxu0 0.0
    %2322 = vmatpush1.msra.mxu0 0.0
    %2323 = vmatprep.subr.mxu0 0.0
    %2324 = vmatpush1.msra.mxu0 0.0
    %2325 = vmatprep.subr.mxu0 0.0
    %2326 = vmatpush1.msra.mxu0 0.0
    %2327 = vmatprep.subr.mxu0 0.0
    %2328 = vmatpush1.msra.mxu0 0.0
    %2329 = vmatprep.subr.mxu0 0.0
    %2330 = vmatpush1.msra.mxu0 0.0
    %2331 = vmatprep.subr.mxu0 0.0
    %2332 = vmatpush1.msra.mxu0 0.0
    %2333 = vmatprep.subr.mxu0 0.0
    %2334 = vmatpush1.msra.mxu0 0.0
    %2335 = vmatprep.subr.mxu0 0.0
    %2336 = vmatpush1.msra.mxu0 0.0
    %2337 = vmatprep.subr.mxu0 0.0
    %2338 = vmatpush1.msra.mxu0 0.0
    %2339 = vmatprep.subr.mxu0 0.0
    %2340 = vmatpush1.msra.mxu0 0.0
    %2341 = vmatprep.subr.mxu0 0.0
    %2342 = vmatpush1.msra.mxu0 0.0
    %2343 = vmatprep.subr.mxu0 0.0
    %2344 = vmatpush1.msra.mxu0 0.0
    %2345 = vmatprep.subr.mxu0 0.0
    %2346 = vmatpush1.msra.mxu0 0.0
    %2347 = vmatprep.subr.mxu0 0.0
    %2348 = vmatpush1.msra.mxu0 0.0
    %2349 = vmatprep.subr.mxu0 0.0
    %2350 = vmatpush1.msra.mxu0 0.0
    %2351 = vmatprep.subr.mxu0 0.0
    %2352 = vmatpush1.msra.mxu0 0.0
    %2353 = vmatprep.mubr.f32.mxu0 0.0
    %2354 = vmatmul.mubr.f32.gmra.mrb[0].mxu0 %v2287
    %v2355 = vpop.f32.mrb[0].mxu0
    %v2356 = vadd.f32 0.0, %v2355
    %v2357 = vpop.f32.mrb[0].mxu0
    %2358 = vdwg.mxu0
    %v2360 = vsel %vm473, %v2115, 0
    %2362 = vmatprep.subr.mxu0 0.0
    %2363 = vmatpush1.msra.mxu0 %v200
    %2364 = vmatprep.subr.mxu0 0.0
    %2365 = vmatpush1.msra.mxu0 %v201
    %2366 = vmatprep.subr.mxu0 0.0
    %2367 = vmatpush1.msra.mxu0 0.0
    %2368 = vmatprep.subr.mxu0 0.0
    %2369 = vmatpush1.msra.mxu0 0.0
    %2370 = vmatprep.subr.mxu0 0.0
    %2371 = vmatpush1.msra.mxu0 0.0
    %2372 = vmatprep.subr.mxu0 0.0
    %2373 = vmatpush1.msra.mxu0 0.0
    %2374 = vmatprep.subr.mxu0 0.0
    %2375 = vmatpush1.msra.mxu0 0.0
    %2376 = vmatprep.subr.mxu0 0.0
    %2377 = vmatpush1.msra.mxu0 0.0
    %2378 = vmatprep.subr.mxu0 0.0
    %2379 = vmatpush1.msra.mxu0 0.0
    %2380 = vmatprep.subr.mxu0 0.0
    %2381 = vmatpush1.msra.mxu0 0.0
    %2382 = vmatprep.subr.mxu0 0.0
    %2383 = vmatpush1.msra.mxu0 0.0
    %2384 = vmatprep.subr.mxu0 0.0
    %2385 = vmatpush1.msra.mxu0 0.0
    %2386 = vmatprep.subr.mxu0 0.0
    %2387 = vmatpush1.msra.mxu0 0.0
    %2388 = vmatprep.subr.mxu0 0.0
    %2389 = vmatpush1.msra.mxu0 0.0
    %2390 = vmatprep.subr.mxu0 0.0
    %2391 = vmatpush1.msra.mxu0 0.0
    %2392 = vmatprep.subr.mxu0 0.0
    %2393 = vmatpush1.msra.mxu0 0.0
    %2394 = vmatprep.subr.mxu0 0.0
    %2395 = vmatpush1.msra.mxu0 0.0
    %2396 = vmatprep.subr.mxu0 0.0
    %2397 = vmatpush1.msra.mxu0 0.0
    %2398 = vmatprep.subr.mxu0 0.0
    %2399 = vmatpush1.msra.mxu0 0.0
    %2400 = vmatprep.subr.mxu0 0.0
    %2401 = vmatpush1.msra.mxu0 0.0
    %2402 = vmatprep.subr.mxu0 0.0
    %2403 = vmatpush1.msra.mxu0 0.0
    %2404 = vmatprep.subr.mxu0 0.0
    %2405 = vmatpush1.msra.mxu0 0.0
    %2406 = vmatprep.subr.mxu0 0.0
    %2407 = vmatpush1.msra.mxu0 0.0
    %2408 = vmatprep.subr.mxu0 0.0
    %2409 = vmatpush1.msra.mxu0 0.0
    %2410 = vmatprep.subr.mxu0 0.0
    %2411 = vmatpush1.msra.mxu0 0.0
    %2412 = vmatprep.subr.mxu0 0.0
    %2413 = vmatpush1.msra.mxu0 0.0
    %2414 = vmatprep.subr.mxu0 0.0
    %2415 = vmatpush1.msra.mxu0 0.0
    %2416 = vmatprep.subr.mxu0 0.0
    %2417 = vmatpush1.msra.mxu0 0.0
    %2418 = vmatprep.subr.mxu0 0.0
    %2419 = vmatpush1.msra.mxu0 0.0
    %2420 = vmatprep.subr.mxu0 0.0
    %2421 = vmatpush1.msra.mxu0 0.0
    %2422 = vmatprep.subr.mxu0 0.0
    %2423 = vmatpush1.msra.mxu0 0.0
    %2424 = vmatprep.subr.mxu0 0.0
    %2425 = vmatpush1.msra.mxu0 0.0
    %2426 = vmatprep.mubr.f32.mxu0 0.0
    %2427 = vmatmul.mubr.f32.gmra.mrb[0].mxu0 %v2360
    %v2428 = vpop.f32.mrb[0].mxu0
    %v2429 = vadd.f32 %v2356, %v2428
    %v2430 = vpop.f32.mrb[0].mxu0
    %2431 = vdwg.mxu0
    %v2432 = vadd.f32 %v2429, %v959
    %v2434 = vsel %vm473, %v1803, 0
    %v2437 = vsel %vm473, %v1878, 0
    %2439 = vmatprep.subr.mxu0 0.0
    %2440 = vmatpush1.xpose.msra.mxu0 %v2437
    %2441 = vmatprep.subr.mxu0 0.0
    %2442 = vmatpush1.xpose.msra.mxu0 0.0
    %2443 = vmatprep.subr.mxu0 0.0
    %2444 = vmatpush1.xpose.msra.mxu0 0.0
    %2445 = vmatprep.subr.mxu0 0.0
    %2446 = vmatpush1.xpose.msra.mxu0 0.0
    %2447 = vmatprep.subr.mxu0 0.0
    %2448 = vmatpush1.xpose.msra.mxu0 0.0
    %2449 = vmatprep.subr.mxu0 0.0
    %2450 = vmatpush1.xpose.msra.mxu0 0.0
    %2451 = vmatprep.subr.mxu0 0.0
    %2452 = vmatpush1.xpose.msra.mxu0 0.0
    %2453 = vmatprep.subr.mxu0 0.0
    %2454 = vmatpush1.xpose.msra.mxu0 0.0
    %2455 = vmatprep.subr.mxu0 0.0
    %2456 = vmatpush1.xpose.msra.mxu0 0.0
    %2457 = vmatprep.subr.mxu0 0.0
    %2458 = vmatpush1.xpose.msra.mxu0 0.0
    %2459 = vmatprep.subr.mxu0 0.0
    %2460 = vmatpush1.xpose.msra.mxu0 0.0
    %2461 = vmatprep.subr.mxu0 0.0
    %2462 = vmatpush1.xpose.msra.mxu0 0.0
    %2463 = vmatprep.subr.mxu0 0.0
    %2464 = vmatpush1.xpose.msra.mxu0 0.0
    %2465 = vmatprep.subr.mxu0 0.0
    %2466 = vmatpush1.xpose.msra.mxu0 0.0
    %2467 = vmatprep.subr.mxu0 0.0
    %2468 = vmatpush1.xpose.msra.mxu0 0.0
    %2469 = vmatprep.subr.mxu0 0.0
    %2470 = vmatpush1.xpose.msra.mxu0 0.0
    %2471 = vmatprep.subr.mxu0 0.0
    %2472 = vmatpush1.xpose.msra.mxu0 0.0
    %2473 = vmatprep.subr.mxu0 0.0
    %2474 = vmatpush1.xpose.msra.mxu0 0.0
    %2475 = vmatprep.subr.mxu0 0.0
    %2476 = vmatpush1.xpose.msra.mxu0 0.0
    %2477 = vmatprep.subr.mxu0 0.0
    %2478 = vmatpush1.xpose.msra.mxu0 0.0
    %2479 = vmatprep.subr.mxu0 0.0
    %2480 = vmatpush1.xpose.msra.mxu0 0.0
    %2481 = vmatprep.subr.mxu0 0.0
    %2482 = vmatpush1.xpose.msra.mxu0 0.0
    %2483 = vmatprep.subr.mxu0 0.0
    %2484 = vmatpush1.xpose.msra.mxu0 0.0
    %2485 = vmatprep.subr.mxu0 0.0
    %2486 = vmatpush1.xpose.msra.mxu0 0.0
    %2487 = vmatprep.subr.mxu0 0.0
    %2488 = vmatpush1.xpose.msra.mxu0 0.0
    %2489 = vmatprep.subr.mxu0 0.0
    %2490 = vmatpush1.xpose.msra.mxu0 0.0
    %2491 = vmatprep.subr.mxu0 0.0
    %2492 = vmatpush1.xpose.msra.mxu0 0.0
    %2493 = vmatprep.subr.mxu0 0.0
    %2494 = vmatpush1.xpose.msra.mxu0 0.0
    %2495 = vmatprep.subr.mxu0 0.0
    %2496 = vmatpush1.xpose.msra.mxu0 0.0
    %2497 = vmatprep.subr.mxu0 0.0
    %2498 = vmatpush1.xpose.msra.mxu0 0.0
    %2499 = vmatprep.subr.mxu0 0.0
    %2500 = vmatpush1.xpose.msra.mxu0 0.0
    %2501 = vmatprep.subr.mxu0 0.0
    %2502 = vmatpush1.xpose.msra.mxu0 0.0
    %2503 = vmatprep.mubr.f32.mxu0 0.0
    %2504 = vmatmul.mubr.f32.gmra.mrb[0].mxu0 %v2434
    %v2505 = vpop.f32.mrb[0].mxu0
    %v2506 = vadd.f32 0.0, %v2505
    %v2507 = vpop.f32.mrb[0].mxu0
    %2508 = vdwg.mxu0
    %v2509 = vmul.f32 %v2506, 0.25
    %v2510 = vadd.f32 %v2509, %v1042
    %v2511 = vsel %vm556, %v2510, -inf
    %2512 = vmax.xlane.f32.xlu0 %v2511
    %v2513 = vpop.xlane.xlu0 %2512
    %v2514 = vsub.f32 %v2510, %v2513
    %v2515 = vmul.f32 %v2514, 1.442695
    %v2516 = vpow.pop %v2515
    %v2517 = vsel %vm556, %v2516, 0.0
    %2518 = vadd.xlane.f32.xlu0 %v2517
    %v2519 = vpop.xlane.xlu0 %2518
    %v2520 = vrcp.pop %v2519
    %v2521 = vmul.f32 %v2516, %v2520
    %v2523 = vsel %vm556, %v2521, 0
    %2525 = vmatprep.subr.mxu0 0.0
    %2526 = vmatpush1.msra.mxu0 %v1953
    %2527 = vmatprep.subr.mxu0 0.0
    %2528 = vmatpush1.msra.mxu0 0.0
    %2529 = vmatprep.subr.mxu0 0.0
    %2530 = vmatpush1.msra.mxu0 0.0
    %2531 = vmatprep.subr.mxu0 0.0
    %2532 = vmatpush1.msra.mxu0 0.0
    %2533 = vmatprep.subr.mxu0 0.0
    %2534 = vmatpush1.msra.mxu0 0.0
    %2535 = vmatprep.subr.mxu0 0.0
    %2536 = vmatpush1.msra.mxu0 0.0
    %2537 = vmatprep.subr.mxu0 0.0
    %2538 = vmatpush1.msra.mxu0 0.0
    %2539 = vmatprep.subr.mxu0 0.0
    %2540 = vmatpush1.msra.mxu0 0.0
    %2541 = vmatprep.subr.mxu0 0.0
    %2542 = vmatpush1.msra.mxu0 0.0
    %2543 = vmatprep.subr.mxu0 0.0
    %2544 = vmatpush1.msra.mxu0 0.0
    %2545 = vmatprep.subr.mxu0 0.0
    %2546 = vmatpush1.msra.mxu0 0.0
    %2547 = vmatprep.subr.mxu0 0.0
    %2548 = vmatpush1.msra.mxu0 0.0
    %2549 = vmatprep.subr.mxu0 0.0
    %2550 = vmatpush1.msra.mxu0 0.0
    %2551 = vmatprep.subr.mxu0 0.0
    %2552 = vmatpush1.msra.mxu0 0.0
    %2553 = vmatprep.subr.mxu0 0.0
    %2554 = vmatpush1.msra.mxu0 0.0
    %2555 = vmatprep.subr.mxu0 0.0
    %2556 = vmatpush1.msra.mxu0 0.0
    %2557 = vmatprep.subr.mxu0 0.0
    %2558 = vmatpush1.msra.mxu0 0.0
    %2559 = vmatprep.subr.mxu0 0.0
    %2560 = vmatpush1.msra.mxu0 0.0
    %2561 = vmatprep.subr.mxu0 0.0
    %2562 = vmatpush1.msra.mxu0 0.0
    %2563 = vmatprep.subr.mxu0 0.0
    %2564 = vmatpush1.msra.mxu0 0.0
    %2565 = vmatprep.subr.mxu0 0.0
    %2566 = vmatpush1.msra.mxu0 0.0
    %2567 = vmatprep.subr.mxu0 0.0
    %2568 = vmatpush1.msra.mxu0 0.0
    %2569 = vmatprep.subr.mxu0 0.0
    %2570 = vmatpush1.msra.mxu0 0.0
    %2571 = vmatprep.subr.mxu0 0.0
    %2572 = vmatpush1.msra.mxu0 0.0
    %2573 = vmatprep.subr.mxu0 0.0
    %2574 = vmatpush1.msra.mxu0 0.0
    %2575 = vmatprep.subr.mxu0 0.0
    %2576 = vmatpush1.msra.mxu0 0.0
    %2577 = vmatprep.subr.mxu0 0.0
    %2578 = vmatpush1.msra.mxu0 0.0
    %2579 = vmatprep.subr.mxu0 0.0
    %2580 = vmatpush1.msra.mxu0 0.0
    %2581 = vmatprep.subr.mxu0 0.0
    %2582 = vmatpush1.msra.mxu0 0.0
    %2583 = vmatprep.subr.mxu0 0.0
    %2584 = vmatpush1.msra.mxu0 0.0
    %2585 = vmatprep.subr.mxu0 0.0
    %2586 = vmatpush1.msra.mxu0 0.0
    %2587 = vmatprep.subr.mxu0 0.0
    %2588 = vmatpush1.msra.mxu0 0.0
    %2589 = vmatprep.mubr.f32.mxu0 0.0
    %2590 = vmatmul.mubr.f32.gmra.mrb[0].mxu0 %v2523
    %v2591 = vpop.f32.mrb[0].mxu0
    %v2592 = vadd.f32 0.0, %v2591
    %v2593 = vpop.f32.mrb[0].mxu0
    %2594 = vdwg.mxu0
    %2595 = vrot.lane.b32.xlu0 %v1803, 112
    %v2596 = vpop.permute.xlu0 %2595
    %2597 = vrot.lane.b32.xlu0 %v1878, 112
    %v2598 = vpop.permute.xlu0 %2597
    %v2599 = vsel %vm473, %v2596, 0
    %v2601 = vsel %vm473, %v2598, 0
    %2603 = vmatprep.subr.mxu0 0.0
    %2604 = vmatpush1.xpose.msra.mxu0 %v2601
    %2605 = vmatprep.subr.mxu0 0.0
    %2606 = vmatpush1.xpose.msra.mxu0 0.0
    %2607 = vmatprep.subr.mxu0 0.0
    %2608 = vmatpush1.xpose.msra.mxu0 0.0
    %2609 = vmatprep.subr.mxu0 0.0
    %2610 = vmatpush1.xpose.msra.mxu0 0.0
    %2611 = vmatprep.subr.mxu0 0.0
    %2612 = vmatpush1.xpose.msra.mxu0 0.0
    %2613 = vmatprep.subr.mxu0 0.0
    %2614 = vmatpush1.xpose.msra.mxu0 0.0
    %2615 = vmatprep.subr.mxu0 0.0
    %2616 = vmatpush1.xpose.msra.mxu0 0.0
    %2617 = vmatprep.subr.mxu0 0.0
    %2618 = vmatpush1.xpose.msra.mxu0 0.0
    %2619 = vmatprep.subr.mxu0 0.0
    %2620 = vmatpush1.xpose.msra.mxu0 0.0
    %2621 = vmatprep.subr.mxu0 0.0
    %2622 = vmatpush1.xpose.msra.mxu0 0.0
    %2623 = vmatprep.subr.mxu0 0.0
    %2624 = vmatpush1.xpose.msra.mxu0 0.0
    %2625 = vmatprep.subr.mxu0 0.0
    %2626 = vmatpush1.xpose.msra.mxu0 0.0
    %2627 = vmatprep.subr.mxu0 0.0
    %2628 = vmatpush1.xpose.msra.mxu0 0.0
    %2629 = vmatprep.subr.mxu0 0.0
    %2630 = vmatpush1.xpose.msra.mxu0 0.0
    %2631 = vmatprep.subr.mxu0 0.0
    %2632 = vmatpush1.xpose.msra.mxu0 0.0
    %2633 = vmatprep.subr.mxu0 0.0
    %2634 = vmatpush1.xpose.msra.mxu0 0.0
    %2635 = vmatprep.subr.mxu0 0.0
    %2636 = vmatpush1.xpose.msra.mxu0 0.0
    %2637 = vmatprep.subr.mxu0 0.0
    %2638 = vmatpush1.xpose.msra.mxu0 0.0
    %2639 = vmatprep.subr.mxu0 0.0
    %2640 = vmatpush1.xpose.msra.mxu0 0.0
    %2641 = vmatprep.subr.mxu0 0.0
    %2642 = vmatpush1.xpose.msra.mxu0 0.0
    %2643 = vmatprep.subr.mxu0 0.0
    %2644 = vmatpush1.xpose.msra.mxu0 0.0
    %2645 = vmatprep.subr.mxu0 0.0
    %2646 = vmatpush1.xpose.msra.mxu0 0.0
    %2647 = vmatprep.subr.mxu0 0.0
    %2648 = vmatpush1.xpose.msra.mxu0 0.0
    %2649 = vmatprep.subr.mxu0 0.0
    %2650 = vmatpush1.xpose.msra.mxu0 0.0
    %2651 = vmatprep.subr.mxu0 0.0
    %2652 = vmatpush1.xpose.msra.mxu0 0.0
    %2653 = vmatprep.subr.mxu0 0.0
    %2654 = vmatpush1.xpose.msra.mxu0 0.0
    %2655 = vmatprep.subr.mxu0 0.0
    %2656 = vmatpush1.xpose.msra.mxu0 0.0
    %2657 = vmatprep.subr.mxu0 0.0
    %2658 = vmatpush1.xpose.msra.mxu0 0.0
    %2659 = vmatprep.subr.mxu0 0.0
    %2660 = vmatpush1.xpose.msra.mxu0 0.0
    %2661 = vmatprep.subr.mxu0 0.0
    %2662 = vmatpush1.xpose.msra.mxu0 0.0
    %2663 = vmatprep.subr.mxu0 0.0
    %2664 = vmatpush1.xpose.msra.mxu0 0.0
    %2665 = vmatprep.subr.mxu0 0.0
    %2666 = vmatpush1.xpose.msra.mxu0 0.0
    %2667 = vmatprep.mubr.f32.mxu0 0.0
    %2668 = vmatmul.mubr.f32.gmra.mrb[0].mxu0 %v2599
    %v2669 = vpop.f32.mrb[0].mxu0
    %v2670 = vadd.f32 0.0, %v2669
    %v2671 = vpop.f32.mrb[0].mxu0
    %2672 = vdwg.mxu0
    %v2673 = vmul.f32 %v2670, 0.25
    %v2674 = vadd.f32 %v2673, %v1042
    %v2675 = vsel %vm556, %v2674, -inf
    %2676 = vmax.xlane.f32.xlu0 %v2675
    %v2677 = vpop.xlane.xlu0 %2676
    %v2678 = vsub.f32 %v2674, %v2677
    %v2679 = vmul.f32 %v2678, 1.442695
    %v2680 = vpow.pop %v2679
    %v2681 = vsel %vm556, %v2680, 0.0
    %2682 = vadd.xlane.f32.xlu0 %v2681
    %v2683 = vpop.xlane.xlu0 %2682
    %v2684 = vrcp.pop %v2683
    %v2685 = vmul.f32 %v2680, %v2684
    %2687 = vrot.lane.b32.xlu0 %v1953, 112
    %v2688 = vpop.permute.xlu0 %2687
    %v2691 = vsel %vm556, %v2685, 0
    %2693 = vmatprep.subr.mxu0 0.0
    %2694 = vmatpush1.msra.mxu0 %v2688
    %2695 = vmatprep.subr.mxu0 0.0
    %2696 = vmatpush1.msra.mxu0 0.0
    %2697 = vmatprep.subr.mxu0 0.0
    %2698 = vmatpush1.msra.mxu0 0.0
    %2699 = vmatprep.subr.mxu0 0.0
    %2700 = vmatpush1.msra.mxu0 0.0
    %2701 = vmatprep.subr.mxu0 0.0
    %2702 = vmatpush1.msra.mxu0 0.0
    %2703 = vmatprep.subr.mxu0 0.0
    %2704 = vmatpush1.msra.mxu0 0.0
    %2705 = vmatprep.subr.mxu0 0.0
    %2706 = vmatpush1.msra.mxu0 0.0
    %2707 = vmatprep.subr.mxu0 0.0
    %2708 = vmatpush1.msra.mxu0 0.0
    %2709 = vmatprep.subr.mxu0 0.0
    %2710 = vmatpush1.msra.mxu0 0.0
    %2711 = vmatprep.subr.mxu0 0.0
    %2712 = vmatpush1.msra.mxu0 0.0
    %2713 = vmatprep.subr.mxu0 0.0
    %2714 = vmatpush1.msra.mxu0 0.0
    %2715 = vmatprep.subr.mxu0 0.0
    %2716 = vmatpush1.msra.mxu0 0.0
    %2717 = vmatprep.subr.mxu0 0.0
    %2718 = vmatpush1.msra.mxu0 0.0
    %2719 = vmatprep.subr.mxu0 0.0
    %2720 = vmatpush1.msra.mxu0 0.0
    %2721 = vmatprep.subr.mxu0 0.0
    %2722 = vmatpush1.msra.mxu0 0.0
    %2723 = vmatprep.subr.mxu0 0.0
    %2724 = vmatpush1.msra.mxu0 0.0
    %2725 = vmatprep.subr.mxu0 0.0
    %2726 = vmatpush1.msra.mxu0 0.0
    %2727 = vmatprep.subr.mxu0 0.0
    %2728 = vmatpush1.msra.mxu0 0.0
    %2729 = vmatprep.subr.mxu0 0.0
    %2730 = vmatpush1.msra.mxu0 0.0
    %2731 = vmatprep.subr.mxu0 0.0
    %2732 = vmatpush1.msra.mxu0 0.0
    %2733 = vmatprep.subr.mxu0 0.0
    %2734 = vmatpush1.msra.mxu0 0.0
    %2735 = vmatprep.subr.mxu0 0.0
    %2736 = vmatpush1.msra.mxu0 0.0
    %2737 = vmatprep.subr.mxu0 0.0
    %2738 = vmatpush1.msra.mxu0 0.0
    %2739 = vmatprep.subr.mxu0 0.0
    %2740 = vmatpush1.msra.mxu0 0.0
    %2741 = vmatprep.subr.mxu0 0.0
    %2742 = vmatpush1.msra.mxu0 0.0
    %2743 = vmatprep.subr.mxu0 0.0
    %2744 = vmatpush1.msra.mxu0 0.0
    %2745 = vmatprep.subr.mxu0 0.0
    %2746 = vmatpush1.msra.mxu0 0.0
    %2747 = vmatprep.subr.mxu0 0.0
    %2748 = vmatpush1.msra.mxu0 0.0
    %2749 = vmatprep.subr.mxu0 0.0
    %2750 = vmatpush1.msra.mxu0 0.0
    %2751 = vmatprep.subr.mxu0 0.0
    %2752 = vmatpush1.msra.mxu0 0.0
    %2753 = vmatprep.subr.mxu0 0.0
    %2754 = vmatpush1.msra.mxu0 0.0
    %2755 = vmatprep.subr.mxu0 0.0
    %2756 = vmatpush1.msra.mxu0 0.0
    %2757 = vmatprep.mubr.f32.mxu0 0.0
    %2758 = vmatmul.mubr.f32.gmra.mrb[0].mxu0 %v2691
    %v2759 = vpop.f32.mrb[0].mxu0
    %v2760 = vadd.f32 0.0, %v2759
    %v2761 = vpop.f32.mrb[0].mxu0
    %2762 = vdwg.mxu0
    %v2764 = vsel %vm473, %v2760, 0
    %2766 = vmatprep.subr.mxu0 0.0
    %2767 = vmatpush1.msra.mxu0 %v202
    %2768 = vmatprep.subr.mxu0 0.0
    %2769 = vmatpush1.msra.mxu0 %v203
    %2770 = vmatprep.subr.mxu0 0.0
    %2771 = vmatpush1.msra.mxu0 0.0
    %2772 = vmatprep.subr.mxu0 0.0
    %2773 = vmatpush1.msra.mxu0 0.0
    %2774 = vmatprep.subr.mxu0 0.0
    %2775 = vmatpush1.msra.mxu0 0.0
    %2776 = vmatprep.subr.mxu0 0.0
    %2777 = vmatpush1.msra.mxu0 0.0
    %2778 = vmatprep.subr.mxu0 0.0
    %2779 = vmatpush1.msra.mxu0 0.0
    %2780 = vmatprep.subr.mxu0 0.0
    %2781 = vmatpush1.msra.mxu0 0.0
    %2782 = vmatprep.subr.mxu0 0.0
    %2783 = vmatpush1.msra.mxu0 0.0
    %2784 = vmatprep.subr.mxu0 0.0
    %2785 = vmatpush1.msra.mxu0 0.0
    %2786 = vmatprep.subr.mxu0 0.0
    %2787 = vmatpush1.msra.mxu0 0.0
    %2788 = vmatprep.subr.mxu0 0.0
    %2789 = vmatpush1.msra.mxu0 0.0
    %2790 = vmatprep.subr.mxu0 0.0
    %2791 = vmatpush1.msra.mxu0 0.0
    %2792 = vmatprep.subr.mxu0 0.0
    %2793 = vmatpush1.msra.mxu0 0.0
    %2794 = vmatprep.subr.mxu0 0.0
    %2795 = vmatpush1.msra.mxu0 0.0
    %2796 = vmatprep.subr.mxu0 0.0
    %2797 = vmatpush1.msra.mxu0 0.0
    %2798 = vmatprep.subr.mxu0 0.0
    %2799 = vmatpush1.msra.mxu0 0.0
    %2800 = vmatprep.subr.mxu0 0.0
    %2801 = vmatpush1.msra.mxu0 0.0
    %2802 = vmatprep.subr.mxu0 0.0
    %2803 = vmatpush1.msra.mxu0 0.0
    %2804 = vmatprep.subr.mxu0 0.0
    %2805 = vmatpush1.msra.mxu0 0.0
    %2806 = vmatprep.subr.mxu0 0.0
    %2807 = vmatpush1.msra.mxu0 0.0
    %2808 = vmatprep.subr.mxu0 0.0
    %2809 = vmatpush1.msra.mxu0 0.0
    %2810 = vmatprep.subr.mxu0 0.0
    %2811 = vmatpush1.msra.mxu0 0.0
    %2812 = vmatprep.subr.mxu0 0.0
    %2813 = vmatpush1.msra.mxu0 0.0
    %2814 = vmatprep.subr.mxu0 0.0
    %2815 = vmatpush1.msra.mxu0 0.0
    %2816 = vmatprep.subr.mxu0 0.0
    %2817 = vmatpush1.msra.mxu0 0.0
    %2818 = vmatprep.subr.mxu0 0.0
    %2819 = vmatpush1.msra.mxu0 0.0
    %2820 = vmatprep.subr.mxu0 0.0
    %2821 = vmatpush1.msra.mxu0 0.0
    %2822 = vmatprep.subr.mxu0 0.0
    %2823 = vmatpush1.msra.mxu0 0.0
    %2824 = vmatprep.subr.mxu0 0.0
    %2825 = vmatpush1.msra.mxu0 0.0
    %2826 = vmatprep.subr.mxu0 0.0
    %2827 = vmatpush1.msra.mxu0 0.0
    %2828 = vmatprep.subr.mxu0 0.0
    %2829 = vmatpush1.msra.mxu0 0.0
    %2830 = vmatprep.mubr.f32.mxu0 0.0
    %2831 = vmatmul.mubr.f32.gmra.mrb[0].mxu0 %v2764
    %v2832 = vpop.f32.mrb[0].mxu0
    %v2833 = vadd.f32 0.0, %v2832
    %v2834 = vpop.f32.mrb[0].mxu0
    %2835 = vdwg.mxu0
    %v2837 = vsel %vm473, %v2592, 0
    %2839 = vmatprep.subr.mxu0 0.0
    %2840 = vmatpush1.msra.mxu0 %v200
    %2841 = vmatprep.subr.mxu0 0.0
    %2842 = vmatpush1.msra.mxu0 %v201
    %2843 = vmatprep.subr.mxu0 0.0
    %2844 = vmatpush1.msra.mxu0 0.0
    %2845 = vmatprep.subr.mxu0 0.0
    %2846 = vmatpush1.msra.mxu0 0.0
    %2847 = vmatprep.subr.mxu0 0.0
    %2848 = vmatpush1.msra.mxu0 0.0
    %2849 = vmatprep.subr.mxu0 0.0
    %2850 = vmatpush1.msra.mxu0 0.0
    %2851 = vmatprep.subr.mxu0 0.0
    %2852 = vmatpush1.msra.mxu0 0.0
    %2853 = vmatprep.subr.mxu0 0.0
    %2854 = vmatpush1.msra.mxu0 0.0
    %2855 = vmatprep.subr.mxu0 0.0
    %2856 = vmatpush1.msra.mxu0 0.0
    %2857 = vmatprep.subr.mxu0 0.0
    %2858 = vmatpush1.msra.mxu0 0.0
    %2859 = vmatprep.subr.mxu0 0.0
    %2860 = vmatpush1.msra.mxu0 0.0
    %2861 = vmatprep.subr.mxu0 0.0
    %2862 = vmatpush1.msra.mxu0 0.0
    %2863 = vmatprep.subr.mxu0 0.0
    %2864 = vmatpush1.msra.mxu0 0.0
    %2865 = vmatprep.subr.mxu0 0.0
    %2866 = vmatpush1.msra.mxu0 0.0
    %2867 = vmatprep.subr.mxu0 0.0
    %2868 = vmatpush1.msra.mxu0 0.0
    %2869 = vmatprep.subr.mxu0 0.0
    %2870 = vmatpush1.msra.mxu0 0.0
    %2871 = vmatprep.subr.mxu0 0.0
    %2872 = vmatpush1.msra.mxu0 0.0
    %2873 = vmatprep.subr.mxu0 0.0
    %2874 = vmatpush1.msra.mxu0 0.0
    %2875 = vmatprep.subr.mxu0 0.0
    %2876 = vmatpush1.msra.mxu0 0.0
    %2877 = vmatprep.subr.mxu0 0.0
    %2878 = vmatpush1.msra.mxu0 0.0
    %2879 = vmatprep.subr.mxu0 0.0
    %2880 = vmatpush1.msra.mxu0 0.0
    %2881 = vmatprep.subr.mxu0 0.0
    %2882 = vmatpush1.msra.mxu0 0.0
    %2883 = vmatprep.subr.mxu0 0.0
    %2884 = vmatpush1.msra.mxu0 0.0
    %2885 = vmatprep.subr.mxu0 0.0
    %2886 = vmatpush1.msra.mxu0 0.0
    %2887 = vmatprep.subr.mxu0 0.0
    %2888 = vmatpush1.msra.mxu0 0.0
    %2889 = vmatprep.subr.mxu0 0.0
    %2890 = vmatpush1.msra.mxu0 0.0
    %2891 = vmatprep.subr.mxu0 0.0
    %2892 = vmatpush1.msra.mxu0 0.0
    %2893 = vmatprep.subr.mxu0 0.0
    %2894 = vmatpush1.msra.mxu0 0.0
    %2895 = vmatprep.subr.mxu0 0.0
    %2896 = vmatpush1.msra.mxu0 0.0
    %2897 = vmatprep.subr.mxu0 0.0
    %2898 = vmatpush1.msra.mxu0 0.0
    %2899 = vmatprep.subr.mxu0 0.0
    %2900 = vmatpush1.msra.mxu0 0.0
    %2901 = vmatprep.subr.mxu0 0.0
    %2902 = vmatpush1.msra.mxu0 0.0
    %2903 = vmatprep.mubr.f32.mxu0 0.0
    %2904 = vmatmul.mubr.f32.gmra.mrb[0].mxu0 %v2837
    %v2905 = vpop.f32.mrb[0].mxu0
    %v2906 = vadd.f32 %v2833, %v2905
    %v2907 = vpop.f32.mrb[0].mxu0
    %2908 = vdwg.mxu0
    %v2909 = vadd.f32 %v2906, %v959
    %v2910 = vadd.f32 %v1723, %v2432
    %v2911 = vadd.f32 %v1724, %v2909
    %v2912 = vsel %vm229, %v2910, 0.0
    %2913 = vadd.xlane.f32.xlu0 %v2912
    %v2914 = vpop.xlane.xlu0 %2913
    %v2915 = vsel %vm229, %v2911, 0.0
    %2916 = vadd.xlane.f32.xlu0 %v2915
    %v2917 = vpop.xlane.xlu0 %2916
    %v2918 = vmul.f32 %v2914, %v1451
    %v2919 = vmul.f32 %v2917, %v1451
    %v2920 = vsub.f32 %v2910, %v2918
    %v2921 = vsub.f32 %v2911, %v2919
    %v2922 = vmul.f32 %v2920, %v2920
    %v2923 = vmul.f32 %v2921, %v2921
    %v2924 = vsel %vm229, %v2922, 0.0
    %2925 = vadd.xlane.f32.xlu0 %v2924
    %v2926 = vpop.xlane.xlu0 %2925
    %v2927 = vsel %vm229, %v2923, 0.0
    %2928 = vadd.xlane.f32.xlu0 %v2927
    %v2929 = vpop.xlane.xlu0 %2928
    %v2930 = vmul.f32 %v2926, %v1451
    %v2931 = vmul.f32 %v2929, %v1451
    %v2932 = vadd.f32 %v2930, 1e-12
    %v2933 = vadd.f32 %v2931, 1e-12
    %v2934 = vrsqrt.pop %v2932
    %v2935 = vrsqrt.pop %v2933
    %v2936 = vmul.f32 %v2920, %v2934
    %v2937 = vmul.f32 %v2921, %v2935
    %v2938 = vmul.f32 %v2936, %v1476
    %v2939 = vmul.f32 %v2937, %v1476
    %v2940 = vadd.f32 %v2938, %v1484
    %v2941 = vadd.f32 %v2939, %v1484
    %v2943 = vsel %vm229, %v2940, 0
    %v2946 = vsel %vm229, %v2941, 0
    %2948 = vmatprep.subr.mxu0 0.0
    %2949 = vmatpush1.msra.mxu0 %v207
    %2950 = vmatprep.subr.mxu0 0.0
    %2951 = vmatpush1.msra.mxu0 %v208
    %2952 = vmatprep.subr.mxu0 0.0
    %2953 = vmatpush1.msra.mxu0 %v209
    %2954 = vmatprep.subr.mxu0 0.0
    %2955 = vmatpush1.msra.mxu0 %v210
    %2956 = vmatprep.subr.mxu0 0.0
    %2957 = vmatpush1.msra.mxu0 0.0
    %2958 = vmatprep.subr.mxu0 0.0
    %2959 = vmatpush1.msra.mxu0 0.0
    %2960 = vmatprep.subr.mxu0 0.0
    %2961 = vmatpush1.msra.mxu0 0.0
    %2962 = vmatprep.subr.mxu0 0.0
    %2963 = vmatpush1.msra.mxu0 0.0
    %2964 = vmatprep.subr.mxu0 0.0
    %2965 = vmatpush1.msra.mxu0 0.0
    %2966 = vmatprep.subr.mxu0 0.0
    %2967 = vmatpush1.msra.mxu0 0.0
    %2968 = vmatprep.subr.mxu0 0.0
    %2969 = vmatpush1.msra.mxu0 0.0
    %2970 = vmatprep.subr.mxu0 0.0
    %2971 = vmatpush1.msra.mxu0 0.0
    %2972 = vmatprep.subr.mxu0 0.0
    %2973 = vmatpush1.msra.mxu0 0.0
    %2974 = vmatprep.subr.mxu0 0.0
    %2975 = vmatpush1.msra.mxu0 0.0
    %2976 = vmatprep.subr.mxu0 0.0
    %2977 = vmatpush1.msra.mxu0 0.0
    %2978 = vmatprep.subr.mxu0 0.0
    %2979 = vmatpush1.msra.mxu0 0.0
    %2980 = vmatprep.subr.mxu0 0.0
    %2981 = vmatpush1.msra.mxu0 0.0
    %2982 = vmatprep.subr.mxu0 0.0
    %2983 = vmatpush1.msra.mxu0 0.0
    %2984 = vmatprep.subr.mxu0 0.0
    %2985 = vmatpush1.msra.mxu0 0.0
    %2986 = vmatprep.subr.mxu0 0.0
    %2987 = vmatpush1.msra.mxu0 0.0
    %2988 = vmatprep.subr.mxu0 0.0
    %2989 = vmatpush1.msra.mxu0 0.0
    %2990 = vmatprep.subr.mxu0 0.0
    %2991 = vmatpush1.msra.mxu0 0.0
    %2992 = vmatprep.subr.mxu0 0.0
    %2993 = vmatpush1.msra.mxu0 0.0
    %2994 = vmatprep.subr.mxu0 0.0
    %2995 = vmatpush1.msra.mxu0 0.0
    %2996 = vmatprep.subr.mxu0 0.0
    %2997 = vmatpush1.msra.mxu0 0.0
    %2998 = vmatprep.subr.mxu0 0.0
    %2999 = vmatpush1.msra.mxu0 0.0
    %3000 = vmatprep.subr.mxu0 0.0
    %3001 = vmatpush1.msra.mxu0 0.0
    %3002 = vmatprep.subr.mxu0 0.0
    %3003 = vmatpush1.msra.mxu0 0.0
    %3004 = vmatprep.subr.mxu0 0.0
    %3005 = vmatpush1.msra.mxu0 0.0
    %3006 = vmatprep.subr.mxu0 0.0
    %3007 = vmatpush1.msra.mxu0 0.0
    %3008 = vmatprep.subr.mxu0 0.0
    %3009 = vmatpush1.msra.mxu0 0.0
    %3010 = vmatprep.subr.mxu0 0.0
    %3011 = vmatpush1.msra.mxu0 0.0
    %3012 = vmatprep.mubr.f32.mxu0 0.0
    %3013 = vmatmul.mubr.f32.gmra.mrb[0].mxu0 %v2943
    %v3014 = vpop.f32.mrb[0].mxu0
    %v3015 = vadd.f32 %v1492, %v3014
    %v3016 = vpop.f32.mrb[0].mxu0
    %3017 = vmatprep.mubr.f32.mxu0 0.0
    %3018 = vmatmul.mubr.f32.gmra.mrb[0].mxu0 %v2946
    %v3019 = vpop.f32.mrb[0].mxu0
    %v3020 = vadd.f32 %v1492, %v3019
    %v3021 = vpop.f32.mrb[0].mxu0
    %3022 = vdwg.mxu0
    %v3023 = vmul.f32 %v3015, 0.5
    %v3024 = vmul.f32 %v3020, 0.5
    %v3025 = vmul.f32 %v3015, 0.044715
    %v3026 = vmul.f32 %v3020, 0.044715
    %v3027 = vmul.f32 %v3025, %v3015
    %v3028 = vmul.f32 %v3026, %v3020
    %v3029 = vmul.f32 %v3027, %v3015
    %v3030 = vmul.f32 %v3028, %v3020
    %v3031 = vadd.f32 %v3015, %v3029
    %v3032 = vadd.f32 %v3020, %v3030
    %v3033 = vmul.f32 %v3031, 0.7978846
    %v3034 = vmul.f32 %v3032, 0.7978846
    %v3035 = vtanh.pop %v3033
    %v3036 = vtanh.pop %v3034
    %v3037 = vadd.f32 %v3035, 1.0
    %v3038 = vadd.f32 %v3036, 1.0
    %v3039 = vmul.f32 %v3023, %v3037
    %v3040 = vmul.f32 %v3024, %v3038
    %v3042 = vsel %vm1599, %v3039, 0
    %v3045 = vsel %vm1599, %v3040, 0
    %3047 = vmatprep.subr.mxu0 0.0
    %3048 = vmatpush1.msra.mxu0 %v212
    %3049 = vmatprep.subr.mxu0 0.0
    %3050 = vmatpush1.msra.mxu0 %v213
    %3051 = vmatprep.subr.mxu0 0.0
    %3052 = vmatpush1.msra.mxu0 %v214
    %3053 = vmatprep.subr.mxu0 0.0
    %3054 = vmatpush1.msra.mxu0 %v215
    %3055 = vmatprep.subr.mxu0 0.0
    %3056 = vmatpush1.msra.mxu0 %v216
    %3057 = vmatprep.subr.mxu0 0.0
    %3058 = vmatpush1.msra.mxu0 %v217
    %3059 = vmatprep.subr.mxu0 0.0
    %3060 = vmatpush1.msra.mxu0 %v218
    %3061 = vmatprep.subr.mxu0 0.0
    %3062 = vmatpush1.msra.mxu0 %v219
    %3063 = vmatprep.subr.mxu0 0.0
    %3064 = vmatpush1.msra.mxu0 0.0
    %3065 = vmatprep.subr.mxu0 0.0
    %3066 = vmatpush1.msra.mxu0 0.0
    %3067 = vmatprep.subr.mxu0 0.0
    %3068 = vmatpush1.msra.mxu0 0.0
    %3069 = vmatprep.subr.mxu0 0.0
    %3070 = vmatpush1.msra.mxu0 0.0
    %3071 = vmatprep.subr.mxu0 0.0
    %3072 = vmatpush1.msra.mxu0 0.0
    %3073 = vmatprep.subr.mxu0 0.0
    %3074 = vmatpush1.msra.mxu0 0.0
    %3075 = vmatprep.subr.mxu0 0.0
    %3076 = vmatpush1.msra.mxu0 0.0
    %3077 = vmatprep.subr.mxu0 0.0
    %3078 = vmatpush1.msra.mxu0 0.0
    %3079 = vmatprep.subr.mxu0 0.0
    %3080 = vmatpush1.msra.mxu0 0.0
    %3081 = vmatprep.subr.mxu0 0.0
    %3082 = vmatpush1.msra.mxu0 0.0
    %3083 = vmatprep.subr.mxu0 0.0
    %3084 = vmatpush1.msra.mxu0 0.0
    %3085 = vmatprep.subr.mxu0 0.0
    %3086 = vmatpush1.msra.mxu0 0.0
    %3087 = vmatprep.subr.mxu0 0.0
    %3088 = vmatpush1.msra.mxu0 0.0
    %3089 = vmatprep.subr.mxu0 0.0
    %3090 = vmatpush1.msra.mxu0 0.0
    %3091 = vmatprep.subr.mxu0 0.0
    %3092 = vmatpush1.msra.mxu0 0.0
    %3093 = vmatprep.subr.mxu0 0.0
    %3094 = vmatpush1.msra.mxu0 0.0
    %3095 = vmatprep.subr.mxu0 0.0
    %3096 = vmatpush1.msra.mxu0 0.0
    %3097 = vmatprep.subr.mxu0 0.0
    %3098 = vmatpush1.msra.mxu0 0.0
    %3099 = vmatprep.subr.mxu0 0.0
    %3100 = vmatpush1.msra.mxu0 0.0
    %3101 = vmatprep.subr.mxu0 0.0
    %3102 = vmatpush1.msra.mxu0 0.0
    %3103 = vmatprep.subr.mxu0 0.0
    %3104 = vmatpush1.msra.mxu0 0.0
    %3105 = vmatprep.subr.mxu0 0.0
    %3106 = vmatpush1.msra.mxu0 0.0
    %3107 = vmatprep.subr.mxu0 0.0
    %3108 = vmatpush1.msra.mxu0 0.0
    %3109 = vmatprep.subr.mxu0 0.0
    %3110 = vmatpush1.msra.mxu0 0.0
    %3111 = vmatprep.mubr.f32.mxu0 0.0
    %3112 = vmatmul.mubr.f32.gmra.mrb[0].mxu0 %v3042
    %v3113 = vpop.f32.mrb[0].mxu0
    %v3114 = vadd.f32 %v1597, %v3113
    %v3115 = vpop.f32.mrb[0].mxu0
    %3116 = vmatprep.mubr.f32.mxu0 0.0
    %3117 = vmatmul.mubr.f32.gmra.mrb[0].mxu0 %v3045
    %v3118 = vpop.f32.mrb[0].mxu0
    %v3119 = vadd.f32 %v1597, %v3118
    %v3120 = vpop.f32.mrb[0].mxu0
    %3121 = vdwg.mxu0
    %v3122 = vadd.f32 %v2940, %v3114
    %v3123 = vadd.f32 %v2941, %v3119
    %v3124 = vsel %vm229, %v3122, 0.0
    %3125 = vadd.xlane.f32.xlu0 %v3124
    %v3126 = vpop.xlane.xlu0 %3125
    %v3127 = vsel %vm229, %v3123, 0.0
    %3128 = vadd.xlane.f32.xlu0 %v3127
    %v3129 = vpop.xlane.xlu0 %3128
    %v3130 = vmul.f32 %v3126, %v1451
    %v3131 = vmul.f32 %v3129, %v1451
    %v3132 = vsub.f32 %v3122, %v3130
    %v3133 = vsub.f32 %v3123, %v3131
    %v3134 = vmul.f32 %v3132, %v3132
    %v3135 = vmul.f32 %v3133, %v3133
    %v3136 = vsel %vm229, %v3134, 0.0
    %3137 = vadd.xlane.f32.xlu0 %v3136
    %v3138 = vpop.xlane.xlu0 %3137
    %v3139 = vsel %vm229, %v3135, 0.0
    %3140 = vadd.xlane.f32.xlu0 %v3139
    %v3141 = vpop.xlane.xlu0 %3140
    %v3142 = vmul.f32 %v3138, %v1451
    %v3143 = vmul.f32 %v3141, %v1451
    %v3144 = vadd.f32 %v3142, 1e-12
    %v3145 = vadd.f32 %v3143, 1e-12
    %v3146 = vrsqrt.pop %v3144
    %v3147 = vrsqrt.pop %v3145
    %v3148 = vmul.f32 %v3132, %v3146
    %v3149 = vmul.f32 %v3133, %v3147
    %v3150 = vmul.f32 %v3148, %v1713
    %v3151 = vmul.f32 %v3149, %v1713
    %v3152 = vadd.f32 %v3150, %v1721
    %v3153 = vadd.f32 %v3151, %v1721
    %v3155 = vrot.slane %v3153, 7
    %vm3157 = vcmask 1040384
    %v3158 = vsel %vm3157, %v3152, %v3155
    %v3159 = vld [vmem:[#allocation13] sm:$0xff]
    %v3160 = vld [vmem:[#allocation13 + $0x8] sm:$0xff]
    %v3161 = vld [vmem:[#allocation13 + $0x10] sm:$0xff]
    %v3162 = vld [vmem:[#allocation13 + $0x18] sm:$0xff]
    %v3163 = vld [vmem:[#allocation14] sm:$0x1]
    %v3165 = vlaneseq
    %v3166 = vshrl.u32 %v3165, 7
    %v3167 = vsub.s32 0, %v3166
    %v3168 = vrot.slane %v3163, %v3167
    %v3171 = vsel %vm229, %v3158, 0
    %3173 = vmatprep.subr.mxu0 0.0
    %3174 = vmatpush1.msra.mxu0 %v3159
    %3175 = vmatprep.subr.mxu0 0.0
    %3176 = vmatpush1.msra.mxu0 %v3160
    %3177 = vmatprep.subr.mxu0 0.0
    %3178 = vmatpush1.msra.mxu0 %v3161
    %3179 = vmatprep.subr.mxu0 0.0
    %3180 = vmatpush1.msra.mxu0 %v3162
    %3181 = vmatprep.subr.mxu0 0.0
    %3182 = vmatpush1.msra.mxu0 0.0
    %3183 = vmatprep.subr.mxu0 0.0
    %3184 = vmatpush1.msra.mxu0 0.0
    %3185 = vmatprep.subr.mxu0 0.0
    %3186 = vmatpush1.msra.mxu0 0.0
    %3187 = vmatprep.subr.mxu0 0.0
    %3188 = vmatpush1.msra.mxu0 0.0
    %3189 = vmatprep.subr.mxu0 0.0
    %3190 = vmatpush1.msra.mxu0 0.0
    %3191 = vmatprep.subr.mxu0 0.0
    %3192 = vmatpush1.msra.mxu0 0.0
    %3193 = vmatprep.subr.mxu0 0.0
    %3194 = vmatpush1.msra.mxu0 0.0
    %3195 = vmatprep.subr.mxu0 0.0
    %3196 = vmatpush1.msra.mxu0 0.0
    %3197 = vmatprep.subr.mxu0 0.0
    %3198 = vmatpush1.msra.mxu0 0.0
    %3199 = vmatprep.subr.mxu0 0.0
    %3200 = vmatpush1.msra.mxu0 0.0
    %3201 = vmatprep.subr.mxu0 0.0
    %3202 = vmatpush1.msra.mxu0 0.0
    %3203 = vmatprep.subr.mxu0 0.0
    %3204 = vmatpush1.msra.mxu0 0.0
    %3205 = vmatprep.subr.mxu0 0.0
    %3206 = vmatpush1.msra.mxu0 0.0
    %3207 = vmatprep.subr.mxu0 0.0
    %3208 = vmatpush1.msra.mxu0 0.0
    %3209 = vmatprep.subr.mxu0 0.0
    %3210 = vmatpush1.msra.mxu0 0.0
    %3211 = vmatprep.subr.mxu0 0.0
    %3212 = vmatpush1.msra.mxu0 0.0
    %3213 = vmatprep.subr.mxu0 0.0
    %3214 = vmatpush1.msra.mxu0 0.0
    %3215 = vmatprep.subr.mxu0 0.0
    %3216 = vmatpush1.msra.mxu0 0.0
    %3217 = vmatprep.subr.mxu0 0.0
    %3218 = vmatpush1.msra.mxu0 0.0
    %3219 = vmatprep.subr.mxu0 0.0
    %3220 = vmatpush1.msra.mxu0 0.0
    %3221 = vmatprep.subr.mxu0 0.0
    %3222 = vmatpush1.msra.mxu0 0.0
    %3223 = vmatprep.subr.mxu0 0.0
    %3224 = vmatpush1.msra.mxu0 0.0
    %3225 = vmatprep.subr.mxu0 0.0
    %3226 = vmatpush1.msra.mxu0 0.0
    %3227 = vmatprep.subr.mxu0 0.0
    %3228 = vmatpush1.msra.mxu0 0.0
    %3229 = vmatprep.subr.mxu0 0.0
    %3230 = vmatpush1.msra.mxu0 0.0
    %3231 = vmatprep.subr.mxu0 0.0
    %3232 = vmatpush1.msra.mxu0 0.0
    %3233 = vmatprep.subr.mxu0 0.0
    %3234 = vmatpush1.msra.mxu0 0.0
    %3235 = vmatprep.subr.mxu0 0.0
    %3236 = vmatpush1.msra.mxu0 0.0
    %3237 = vmatprep.mubr.f32.mxu0 0.0
    %3238 = vmatmul.mubr.f32.gmra.mrb[0].mxu0 %v3171
    %v3239 = vpop.f32.mrb[0].mxu0
    %v3240 = vadd.f32 %v3168, %v3239
    %v3241 = vpop.f32.mrb[0].mxu0
    %3242 = vdwg.mxu0
    %3243 = vst [vmem:[#allocation17] sm:$0x3] %v3240
    %v3244 = vld [vmem:[%s20] sm:$0xff]
    %v3245 = vld [vmem:[%s20 + $0x8] sm:$0xff]
    %v3246 = vld [vmem:[%s20 + $0x10] sm:$0xff]
    %v3247 = vld [vmem:[%s20 + $0x18] sm:$0xff]
    %v3248 = vld [vmem:[%s20 + $0x20] sm:$0xff]
    %v3249 = vld [vmem:[%s20 + $0x28] sm:$0xff]
    %v3250 = vld [vmem:[%s20 + $0x30] sm:$0xff]
    %v3251 = vld [vmem:[%s20 + $0x38] sm:$0xff]
    %v3252 = vld [vmem:[%s20 + $0x40] sm:$0xff]
    %v3253 = vld [vmem:[%s20 + $0x48] sm:$0xff]
    %v3254 = vld [vmem:[%s20 + $0x50] sm:$0xff]
    %v3255 = vld [vmem:[%s20 + $0x58] sm:$0xff]
    %v3256 = vld [vmem:[%s20 + $0x60] sm:$0xff]
    %v3257 = vld [vmem:[%s20 + $0x68] sm:$0xff]
    %v3258 = vld [vmem:[%s20 + $0x70] sm:$0xff]
    %v3259 = vld [vmem:[%s20 + $0x78] sm:$0xff]
    %v3260 = vld [vmem:[%s21] sm:$0x1]
    %v3262 = vlaneseq
    %v3263 = vshrl.u32 %v3262, 7
    %v3264 = vsub.s32 0, %v3263
    %v3265 = vrot.slane %v3260, %v3264
    %3267 = vmatprep.subr.mxu0 0.0
    %3268 = vmatpush1.msra.mxu0 %v3244
    %3269 = vmatprep.subr.mxu0 0.0
    %3270 = vmatpush1.msra.mxu0 %v3245
    %3271 = vmatprep.subr.mxu0 0.0
    %3272 = vmatpush1.msra.mxu0 %v3246
    %3273 = vmatprep.subr.mxu0 0.0
    %3274 = vmatpush1.msra.mxu0 %v3247
    %3275 = vmatprep.subr.mxu0 0.0
    %3276 = vmatpush1.msra.mxu0 %v3248
    %3277 = vmatprep.subr.mxu0 0.0
    %3278 = vmatpush1.msra.mxu0 %v3249
    %3279 = vmatprep.subr.mxu0 0.0
    %3280 = vmatpush1.msra.mxu0 %v3250
    %3281 = vmatprep.subr.mxu0 0.0
    %3282 = vmatpush1.msra.mxu0 %v3251
    %3283 = vmatprep.subr.mxu0 0.0
    %3284 = vmatpush1.msra.mxu0 %v3252
    %3285 = vmatprep.subr.mxu0 0.0
    %3286 = vmatpush1.msra.mxu0 %v3253
    %3287 = vmatprep.subr.mxu0 0.0
    %3288 = vmatpush1.msra.mxu0 %v3254
    %3289 = vmatprep.subr.mxu0 0.0
    %3290 = vmatpush1.msra.mxu0 %v3255
    %3291 = vmatprep.subr.mxu0 0.0
    %3292 = vmatpush1.msra.mxu0 %v3256
    %3293 = vmatprep.subr.mxu0 0.0
    %3294 = vmatpush1.msra.mxu0 %v3257
    %3295 = vmatprep.subr.mxu0 0.0
    %3296 = vmatpush1.msra.mxu0 %v3258
    %3297 = vmatprep.subr.mxu0 0.0
    %3298 = vmatpush1.msra.mxu0 %v3259
    %3299 = vmatprep.subr.mxu0 0.0
    %3300 = vmatpush1.msra.mxu0 0.0
    %3301 = vmatprep.subr.mxu0 0.0
    %3302 = vmatpush1.msra.mxu0 0.0
    %3303 = vmatprep.subr.mxu0 0.0
    %3304 = vmatpush1.msra.mxu0 0.0
    %3305 = vmatprep.subr.mxu0 0.0
    %3306 = vmatpush1.msra.mxu0 0.0
    %3307 = vmatprep.subr.mxu0 0.0
    %3308 = vmatpush1.msra.mxu0 0.0
    %3309 = vmatprep.subr.mxu0 0.0
    %3310 = vmatpush1.msra.mxu0 0.0
    %3311 = vmatprep.subr.mxu0 0.0
    %3312 = vmatpush1.msra.mxu0 0.0
    %3313 = vmatprep.subr.mxu0 0.0
    %3314 = vmatpush1.msra.mxu0 0.0
    %3315 = vmatprep.subr.mxu0 0.0
    %3316 = vmatpush1.msra.mxu0 0.0
    %3317 = vmatprep.subr.mxu0 0.0
    %3318 = vmatpush1.msra.mxu0 0.0
    %3319 = vmatprep.subr.mxu0 0.0
    %3320 = vmatpush1.msra.mxu0 0.0
    %3321 = vmatprep.subr.mxu0 0.0
    %3322 = vmatpush1.msra.mxu0 0.0
    %3323 = vmatprep.subr.mxu0 0.0
    %3324 = vmatpush1.msra.mxu0 0.0
    %3325 = vmatprep.subr.mxu0 0.0
    %3326 = vmatpush1.msra.mxu0 0.0
    %3327 = vmatprep.subr.mxu0 0.0
    %3328 = vmatpush1.msra.mxu0 0.0
    %3329 = vmatprep.subr.mxu0 0.0
    %3330 = vmatpush1.msra.mxu0 0.0
    %3331 = vmatprep.mubr.f32.mxu0 0.0
    %3332 = vmatmul.mubr.f32.gmra.mrb[0].mxu0 %v3240
    %v3333 = vpop.f32.mrb[0].mxu0
    %v3334 = vadd.f32 %v3265, %v3333
    %v3335 = vpop.f32.mrb[0].mxu0
    %3336 = vdwg.mxu0
    %3337 = vst [vmem:[#allocation16] sm:$0x3] %v3334
    // Predicated region
    $region122: #{tpu_custom_call.1} parent=1 // pred_check
      _
    $region123: #{tpu_custom_call.1} parent=1 // pred_check_branch
      %3339 = sbr.rel (0) target = $region125
    $region124: #{tpu_custom_call.1} parent=1 // pred_region
      %s3341 = ssub.s32 32, 32
      %3342 = vsyncadd [#allocation4], %s3341
      %s3344 = sshll.u32 [#allocation16], 4
      %s3345 = int_to_ptr.vmem [resolvable:$true] %s3344
      %3347 = dma.vmem_to_hbm [thread:$0]  %s3345, 32, %s22, [#allocation4]
    $region125: #{tpu_custom_call.1} parent=1 // pred_fallthru
      _
    // Predicated region
    $region126: #{tpu_custom_call.1} parent=1 // pred_check
      _
    $region127: #{tpu_custom_call.1} parent=1 // pred_check_branch
      %3349 = sbr.rel (0) target = $region129
    $region128: #{tpu_custom_call.1} parent=1 // pred_region
      %s3351 = ssub.s32 32, 32
      %3352 = vsyncadd [#allocation18], %s3351
      %s3354 = sshll.u32 [#allocation17], 4
      %s3355 = int_to_ptr.vmem [resolvable:$true] %s3354
      %3357 = dma.vmem_to_hbm [thread:$0]  %s3355, 32, %s23, [#allocation18]
    $region129: #{tpu_custom_call.1} parent=1 // pred_fallthru
      _
    // Predicated region
    $region130: #{tpu_custom_call.1} parent=1 // pred_check
      _
    $region131: #{tpu_custom_call.1} parent=1 // pred_check_branch
      %3359 = sbr.rel (0) target = $region133
    $region132: #{tpu_custom_call.1} parent=1 // pred_region
      %3360 = dma.done [#allocation4], 32
    $region133: #{tpu_custom_call.1} parent=1 // pred_fallthru
      _
    // Predicated region
    $region134: #{tpu_custom_call.1} parent=1 // pred_check
      _
    $region135: #{tpu_custom_call.1} parent=1 // pred_check_branch
      %3362 = sbr.rel (0) target = $region137
    $region136: #{tpu_custom_call.1} parent=1 // pred_region
      %3363 = dma.done [#allocation18], 32
    $region137: #{tpu_custom_call.1} parent=1 // pred_fallthru
      _
    %3364 = vsyncpa [#allocation3], 1
    %3365 = vsyncpa [#allocation6], 1
    %3366 = vsyncpa [#allocation9], 1
    %3367 = vsyncpa [#allocation12], 1
    %3368 = vsyncpa [#allocation15], 1
    %3369 = vsyncpa [#allocation4], 1
    %3370 = vsyncpa [#allocation18], 1

</llo_original>
